<compile_context>
chip_gen: v7x
topology: tpu7x:2x2x1
jax: 0.10.0
libtpu: 0.0.40
codegen_flags: <defaults>
</compile_context>

<pallas_src>
import math
from functools import partial

import jax
import jax.numpy as jnp
from jax.experimental import pallas as pl
from jax.experimental.pallas import tpu as pltpu

# ---- model config (ModelArgs defaults, small shapes) ----
N_LAYERS = 2
VOCAB = 8
MAX_SEQ_LEN = 16
DIM = 16
N_HEADS = 4
HEAD_DIM = DIM // N_HEADS
HIDDEN = 4 * DIM
LN_EPS = 1e-5
LANE_PAD = 128          # lane-dense padded width for the logits store


def _layer_norm(x, w, b, eps=LN_EPS):
    # x: (..., D), w/b: (1, D) -- PyTorch LayerNorm (biased variance)
    mu = jnp.mean(x, axis=-1, keepdims=True)
    var = jnp.mean((x - mu) ** 2, axis=-1, keepdims=True)
    return (x - mu) * jax.lax.rsqrt(var + eps) * w + b


def _gelu_exact(x):
    # nn.GELU() default (approximate='none'): 0.5*x*(1+erf(x/sqrt(2)))
    return 0.5 * x * (1.0 + jax.lax.erf(x * (1.0 / math.sqrt(2.0))))


def fused_transformer_kernel(h_ref, ln_ref, wqkv_ref, wo_ref, w1_ref, b1_ref,
                             w2_ref, b2_ref, wout_ref, o_ref,
                             *, n_layers, n_heads):
    """Entire forward in one kernel invocation (no grid; everything fits in VMEM).

    Packed operand layouts (built host-side once by pack_params):
      h_ref    : (B, S, D)            embeddings + positional encodings
      ln_ref   : (4*L + 2, 1, D)      [ln1_w, ln1_b, ln2_w, ln2_b] * L, final_w, final_b
      wqkv_ref : (L, D, 3*D)          [Wq | Wk | Wv] per layer, (in, out) orientation
      wo_ref   : (L, D, D)            Wo per layer, (in, out)
      w1_ref   : (L, D, HIDDEN)       W1 per layer, (in, out)
      b1_ref   : (L, 1, HIDDEN)
      w2_ref   : (L, HIDDEN, D)       W2 per layer, natural (in, out) orientation
      b2_ref   : (L, 1, D)
      wout_ref : (D, 128)             tied output projection, lane-padded
      o_ref    : (B, S, 128)          lane-dense logits (sliced to vocab outside)
    """
    h = h_ref[...]                                      # (B, S, D) f32
    B, S, D = h.shape
    H = n_heads
    hd = D // H
    scale = 1.0 / math.sqrt(hd)

    # causal mask, hoisted once for all layers
    row = jax.lax.broadcasted_iota(jnp.int32, (S, S), 0)
    col = jax.lax.broadcasted_iota(jnp.int32, (S, S), 1)
    causal = (col <= row)[None, :, :]                   # (1, S, S)

    for l in range(n_layers):                           # static unroll (N_LAYERS == 2)
        # ---- attention sub-block: h = h + Wo(SDPA(Wq,Wk,Wv of LN1(h))) ----
        xn = _layer_norm(h, ln_ref[4 * l + 0], ln_ref[4 * l + 1])
        # ONE fused QKV matmul on the flattened activations.
        qkv = jnp.dot(xn.reshape(B * S, D), wqkv_ref[l],
                      preferred_element_type=jnp.float32)       # (B*S, 3D)
        qkv = qkv.reshape(B, S, 3 * D)

        head_outs = []
        for hh in range(H):                             # static unroll (N_HEADS == 4)
            q_h = qkv[:, :, hh * hd:(hh + 1) * hd]              # (B, S, hd)
            k_h = qkv[:, :, D + hh * hd:D + (hh + 1) * hd]
            v_h = qkv[:, :, 2 * D + hh * hd:2 * D + (hh + 1) * hd]
            s = jnp.einsum('bqe,bke->bqk', q_h, k_h,
                           preferred_element_type=jnp.float32) * scale
            # -inf mask is safe: the diagonal is always kept, so the row max is finite.
            s = jnp.where(causal, s, -jnp.inf)
            s = s - jnp.max(s, axis=-1, keepdims=True)
            p = jnp.exp(s)
            p = p / jnp.sum(p, axis=-1, keepdims=True)          # exact softmax denom
            head_outs.append(jnp.einsum('bqk,bke->bqe', p, v_h,
                                        preferred_element_type=jnp.float32))
        # Heads concatenated back onto the lane axis (hd=4, stays inside one vreg row),
        # then a single (D, D) output projection merges them.
        oh = jnp.concatenate(head_outs, axis=-1)                # (B, S, D)
        attn = jnp.dot(oh.reshape(B * S, D), wo_ref[l],
                       preferred_element_type=jnp.float32).reshape(B, S, D)
        h = h + attn                                    # resid_dropout == identity (eval)

        # ---- feed-forward sub-block: h = h + W2(GELU(W1(LN2(h)))) ----
        hn = _layer_norm(h, ln_ref[4 * l + 2], ln_ref[4 * l + 3])
        ff = jnp.dot(hn.reshape(B * S, D), w1_ref[l],
                     preferred_element_type=jnp.float32) + b1_ref[l]    # (B*S, HIDDEN)
        ff = _gelu_exact(ff)
        ff = jnp.dot(ff, w2_ref[l],
                     preferred_element_type=jnp.float32) + b2_ref[l]    # (B*S, D)
        h = h + ff.reshape(B, S, D)

    # ---- final LayerNorm + weight-tied output projection (lane-dense store) ----
    hn = _layer_norm(h, ln_ref[4 * n_layers + 0], ln_ref[4 * n_layers + 1])
    logits = jnp.dot(hn.reshape(B * S, D), wout_ref[...],
                     preferred_element_type=jnp.float32)                # (B*S, 128)
    o_ref[...] = logits.reshape(B, S, wout_ref.shape[1])


def transformer_forward(tokens, pk):
    """tokens: (B, S) int32 -> logits (B, S, VOCAB) float32."""
    B, S = tokens.shape
    assert S <= MAX_SEQ_LEN
    # embedding gather + positional add: tiny glue, lives in the same jitted program
    h = jnp.take(pk['tok_emb'], tokens, axis=0) + pk['pos_emb'][:S][None, :, :]
    vmem_spec = lambda: pl.BlockSpec(memory_space=pltpu.MemorySpace.VMEM)
    out_pad = pl.pallas_call(
        partial(fused_transformer_kernel, n_layers=N_LAYERS, n_heads=N_HEADS),
        out_shape=jax.ShapeDtypeStruct((B, S, LANE_PAD), jnp.float32),
        in_specs=[vmem_spec() for _ in range(9)],
        out_specs=vmem_spec(),
        cost_estimate=pl.CostEstimate(flops=300_000, transcendentals=4_096,
                                      bytes_accessed=64_000),
    )(h, pk['ln_all'], pk['wqkv'], pk['wo'], pk['w1'], pk['b1'],
      pk['w2'], pk['b2'], pk['w_out'])
    return out_pad[:, :, :VOCAB]                        # slice the lane padding back off


transformer_forward_jit = jax.jit(transformer_forward)


def init_params(key):
    """Raw parameters; Linear weights stored pre-transposed to (in, out)."""
    ks = jax.random.split(key, 2 + N_LAYERS)
    std = 0.02

    def nrm(k, shape):
        return jax.random.normal(k, shape, dtype=jnp.float32) * std

    params = {
        'tok_emb': nrm(ks[0], (VOCAB, DIM)),
        'pos_emb': nrm(ks[1], (MAX_SEQ_LEN, DIM)),
        'final_ln_w': jnp.ones((1, DIM), jnp.float32),
        'final_ln_b': jnp.zeros((1, DIM), jnp.float32),
        'layers': [],
    }
    for layer in range(N_LAYERS):
        lk = jax.random.split(ks[2 + layer], 8)
        params['layers'].append({
            'ln1_w': jnp.ones((1, DIM), jnp.float32),
            'ln1_b': jnp.zeros((1, DIM), jnp.float32),
            'wq': nrm(lk[0], (DIM, DIM)),
            'wk': nrm(lk[1], (DIM, DIM)),
            'wv': nrm(lk[2], (DIM, DIM)),
            'wo': nrm(lk[3], (DIM, DIM)),
            'ln2_w': jnp.ones((1, DIM), jnp.float32),
            'ln2_b': jnp.zeros((1, DIM), jnp.float32),
            'w1': nrm(lk[4], (DIM, HIDDEN)),
            'b1': nrm(lk[5], (1, HIDDEN)),
            'w2': nrm(lk[6], (HIDDEN, DIM)),
            'b2': nrm(lk[7], (1, DIM)),
        })
    return params


def pack_params(params):
    """One-time host-side packing into stacked, lane-dense kernel operands.
    (No batch-size baked in anywhere.)"""
    ln_rows, wqkv_rows, wo_rows = [], [], []
    w1_rows, b1_rows, w2_rows, b2_rows = [], [], [], []
    for lp in params['layers']:
        ln_rows += [lp['ln1_w'], lp['ln1_b'], lp['ln2_w'], lp['ln2_b']]
        wqkv_rows.append(jnp.concatenate([lp['wq'], lp['wk'], lp['wv']], axis=1))
        wo_rows.append(lp['wo'])
        w1_rows.append(lp['w1'])
        b1_rows.append(lp['b1'])
        w2_rows.append(lp['w2'])                        # natural (HIDDEN, D)
        b2_rows.append(lp['b2'])
    ln_rows += [params['final_ln_w'], params['final_ln_b']]

    w_out = params['tok_emb'].T                                     # (D, VOCAB) weight tying
    w_out_pad = jnp.zeros((DIM, LANE_PAD), jnp.float32).at[:, :VOCAB].set(w_out)

    return {
        'tok_emb': params['tok_emb'],
        'pos_emb': params['pos_emb'],
        'ln_all': jnp.stack(ln_rows),          # (4L+2, 1, D)
        'wqkv': jnp.stack(wqkv_rows),          # (L, D, 3D)
        'wo': jnp.stack(wo_rows),              # (L, D, D)
        'w1': jnp.stack(w1_rows),              # (L, D, HIDDEN)
        'b1': jnp.stack(b1_rows),              # (L, 1, HIDDEN)
        'w2': jnp.stack(w2_rows),              # (L, HIDDEN, D)
        'b2': jnp.stack(b2_rows),              # (L, 1, D)
        'w_out': w_out_pad,                    # (D, 128) lane-dense
    }


def reference_forward(tokens, params):
    """Pure-JAX reference mirroring the PyTorch forward (eval mode)."""
    P = jax.lax.Precision.HIGHEST
    B, S = tokens.shape
    H, hd = N_HEADS, HEAD_DIM
    h = jnp.take(params['tok_emb'], tokens, axis=0) + params['pos_emb'][:S][None, :, :]
    row = jax.lax.broadcasted_iota(jnp.int32, (S, S), 0)
    col = jax.lax.broadcasted_iota(jnp.int32, (S, S), 1)
    causal = (col <= row)
    for lp in params['layers']:
        xn = _layer_norm(h, lp['ln1_w'], lp['ln1_b'])
        q = jnp.einsum('bsd,de->bse', xn, lp['wq'], precision=P)
        k = jnp.einsum('bsd,de->bse', xn, lp['wk'], precision=P)
        v = jnp.einsum('bsd,de->bse', xn, lp['wv'], precision=P)
        qh = q.reshape(B, S, H, hd).transpose(0, 2, 1, 3)
        kh = k.reshape(B, S, H, hd).transpose(0, 2, 1, 3)
        vh = v.reshape(B, S, H, hd).transpose(0, 2, 1, 3)
        s = jnp.einsum('bhqd,bhkd->bhqk', qh, kh, precision=P) / math.sqrt(hd)
        s = jnp.where(causal[None, None], s, -jnp.inf)
        p = jax.nn.softmax(s, axis=-1)
        oh = jnp.einsum('bhqk,bhkd->bhqd', p, vh, precision=P)
        cat = oh.transpose(0, 2, 1, 3).reshape(B, S, DIM)
        h = h + jnp.einsum('bsd,de->bse', cat, lp['wo'], precision=P)
        hn = _layer_norm(h, lp['ln2_w'], lp['ln2_b'])
        ff = jnp.einsum('bsd,dh->bsh', hn, lp['w1'], precision=P) + lp['b1']
        ff = _gelu_exact(ff)
        ff = jnp.einsum('bsh,hd->bsd', ff, lp['w2'], precision=P) + lp['b2']
        h = h + ff
    hn = _layer_norm(h, params['final_ln_w'], params['final_ln_b'])
    return jnp.einsum('bsd,dv->bsv', hn, params['tok_emb'].T, precision=P)


if __name__ == "__main__":
    key = jax.random.PRNGKey(0)
    pkey, tkey = jax.random.split(key)
    params = init_params(pkey)

    B, S = 2, 8
    tokens = jax.random.randint(tkey, (B, S), 0, VOCAB, dtype=jnp.int32)

    packed = pack_params(params)                   # one-time host-side packing
    out = transformer_forward_jit(tokens, packed)
    out = jax.block_until_ready(out)

    assert out.shape == (B, S, VOCAB), out.shape
    assert out.dtype == jnp.float32, out.dtype
    assert bool(jnp.all(jnp.isfinite(out)))

    # sanity check against a pure-JAX reference of the PyTorch forward
    ref = reference_forward(tokens, params)
    assert bool(jnp.allclose(out, ref, rtol=2e-2, atol=1e-3)), \
        float(jnp.max(jnp.abs(out - ref)))

    print("KERNEL_OK")
</pallas_src>

<mosaic_0001>
module attributes {stable_mosaic.version = 11 : i64} {
  func.func @fused_transformer_kernel(%arg0: memref<2x8x16xf32, #tpu.memory_space<vmem>>, %arg1: memref<10x1x16xf32, #tpu.memory_space<vmem>>, %arg2: memref<2x16x48xf32, #tpu.memory_space<vmem>>, %arg3: memref<2x16x16xf32, #tpu.memory_space<vmem>>, %arg4: memref<2x16x64xf32, #tpu.memory_space<vmem>>, %arg5: memref<2x1x64xf32, #tpu.memory_space<vmem>>, %arg6: memref<2x64x16xf32, #tpu.memory_space<vmem>>, %arg7: memref<2x1x16xf32, #tpu.memory_space<vmem>>, %arg8: memref<16x128xf32, #tpu.memory_space<vmem>>, %arg9: memref<2x8x128xf32, #tpu.memory_space<vmem>>) attributes {dimension_semantics = [], scalar_prefetch = 0 : i64, scratch_operands = 0 : i64, tpu.core_type = #tpu.core_type<tc>} {
    %c0 = arith.constant 0 : index
    %c0_0 = arith.constant 0 : index
    %c0_1 = arith.constant 0 : index
    %0 = vector.load %arg0[%c0, %c0_0, %c0_1] : memref<2x8x16xf32, #tpu.memory_space<vmem>>, vector<2x8x16xf32>
    %1 = tpu.iota {dimensions = array<i32: 0>} : vector<8x8xi32>
    %2 = tpu.iota {dimensions = array<i32: 1>} : vector<8x8xi32>
    %3 = arith.cmpi sle, %2, %1 : vector<8x8xi32>
    %4 = vector.shape_cast %3 : vector<8x8xi1> to vector<1x8x8xi1>
    %c0_2 = arith.constant 0 : index
    %c0_3 = arith.constant 0 : index
    %c0_4 = arith.constant 0 : index
    %5 = vector.load %arg1[%c0_2, %c0_3, %c0_4] : memref<10x1x16xf32, #tpu.memory_space<vmem>>, vector<1x1x16xf32>
    %6 = vector.shape_cast %5 : vector<1x1x16xf32> to vector<1x16xf32>
    %c1 = arith.constant 1 : index
    %c0_5 = arith.constant 0 : index
    %c0_6 = arith.constant 0 : index
    %7 = vector.load %arg1[%c1, %c0_5, %c0_6] : memref<10x1x16xf32, #tpu.memory_space<vmem>>, vector<1x1x16xf32>
    %8 = vector.shape_cast %7 : vector<1x1x16xf32> to vector<1x16xf32>
    %cst = arith.constant dense<0.000000e+00> : vector<2x8xf32>
    %9 = vector.multi_reduction <add>, %0, %cst [2] : vector<2x8x16xf32> to vector<2x8xf32>
    %10 = vector.shape_cast %9 : vector<2x8xf32> to vector<2x8x1xf32>
    %cst_7 = arith.constant 1.600000e+01 : f32
    %11 = vector.broadcast %cst_7 : f32 to vector<2x8x1xf32>
    %12 = arith.divf %10, %11 : vector<2x8x1xf32>
    %13 = vector.broadcast %12 : vector<2x8x1xf32> to vector<2x8x16xf32>
    %14 = arith.subf %0, %13 : vector<2x8x16xf32>
    %15 = arith.mulf %14, %14 : vector<2x8x16xf32>
    %cst_8 = arith.constant dense<0.000000e+00> : vector<2x8xf32>
    %16 = vector.multi_reduction <add>, %15, %cst_8 [2] : vector<2x8x16xf32> to vector<2x8xf32>
    %17 = vector.shape_cast %16 : vector<2x8xf32> to vector<2x8x1xf32>
    %cst_9 = arith.constant 1.600000e+01 : f32
    %18 = vector.broadcast %cst_9 : f32 to vector<2x8x1xf32>
    %19 = arith.divf %17, %18 : vector<2x8x1xf32>
    %20 = vector.broadcast %12 : vector<2x8x1xf32> to vector<2x8x16xf32>
    %21 = arith.subf %0, %20 : vector<2x8x16xf32>
    %cst_10 = arith.constant 9.99999974E-6 : f32
    %22 = vector.broadcast %cst_10 : f32 to vector<2x8x1xf32>
    %23 = arith.addf %19, %22 : vector<2x8x1xf32>
    %24 = math.rsqrt %23 : vector<2x8x1xf32>
    %25 = vector.broadcast %24 : vector<2x8x1xf32> to vector<2x8x16xf32>
    %26 = arith.mulf %21, %25 : vector<2x8x16xf32>
    %27 = vector.shape_cast %6 : vector<1x16xf32> to vector<1x1x16xf32>
    %28 = vector.broadcast %27 : vector<1x1x16xf32> to vector<2x8x16xf32>
    %29 = arith.mulf %26, %28 : vector<2x8x16xf32>
    %30 = vector.shape_cast %8 : vector<1x16xf32> to vector<1x1x16xf32>
    %31 = vector.broadcast %30 : vector<1x1x16xf32> to vector<2x8x16xf32>
    %32 = arith.addf %29, %31 : vector<2x8x16xf32>
    %33 = vector.shape_cast %32 : vector<2x8x16xf32> to vector<16x16xf32>
    %c0_11 = arith.constant 0 : index
    %c0_12 = arith.constant 0 : index
    %c0_13 = arith.constant 0 : index
    %34 = vector.load %arg2[%c0_11, %c0_12, %c0_13] : memref<2x16x48xf32, #tpu.memory_space<vmem>>, vector<1x16x48xf32>
    %35 = vector.shape_cast %34 : vector<1x16x48xf32> to vector<16x48xf32>
    %cst_14 = arith.constant dense<0.000000e+00> : vector<16x48xf32>
    %36 = tpu.matmul %33, %35, %cst_14 {dimension_numbers = #tpu.dot_dimension_numbers<[1], [0], [0], [1], [0, 0, 1, 1], [], []>} : vector<16x16xf32>, vector<16x48xf32>, vector<16x48xf32> -> vector<16x48xf32>
    %37 = vector.shape_cast %36 : vector<16x48xf32> to vector<2x8x48xf32>
    %38 = vector.extract_strided_slice %37 {offsets = [0, 0, 0], sizes = [2, 8, 4], strides = [1, 1, 1]} : vector<2x8x48xf32> to vector<2x8x4xf32>
    %39 = vector.extract_strided_slice %37 {offsets = [0, 0, 16], sizes = [2, 8, 4], strides = [1, 1, 1]} : vector<2x8x48xf32> to vector<2x8x4xf32>
    %40 = vector.extract_strided_slice %37 {offsets = [0, 0, 32], sizes = [2, 8, 4], strides = [1, 1, 1]} : vector<2x8x48xf32> to vector<2x8x4xf32>
    "tpu.trace_start"() <{level = 10 : i32, message = "bqe,bke->bqk"}> : () -> ()
    %cst_15 = arith.constant dense<0.000000e+00> : vector<2x8x8xf32>
    %41 = tpu.matmul %38, %39, %cst_15 {dimension_numbers = #tpu.dot_dimension_numbers<[2], [2], [1], [1], [0, 0, 0, 1, 1, 1], [0], [0]>} : vector<2x8x4xf32>, vector<2x8x4xf32>, vector<2x8x8xf32> -> vector<2x8x8xf32>
    "tpu.trace_stop"() : () -> ()
    %cst_16 = arith.constant 5.000000e-01 : f32
    %42 = vector.broadcast %cst_16 : f32 to vector<2x8x8xf32>
    %43 = arith.mulf %41, %42 : vector<2x8x8xf32>
    %cst_17 = arith.constant 0xFF800000 : f32
    %44 = vector.shape_cast %4 : vector<1x8x8xi1> to vector<1x8x8xi1>
    %45 = vector.broadcast %44 : vector<1x8x8xi1> to vector<2x8x8xi1>
    %46 = vector.broadcast %cst_17 : f32 to vector<2x8x8xf32>
    %47 = arith.select %45, %43, %46 : vector<2x8x8xi1>, vector<2x8x8xf32>
    %cst_18 = arith.constant dense<0xFF800000> : vector<2x8xf32>
    %48 = vector.multi_reduction <maximumf>, %47, %cst_18 [2] : vector<2x8x8xf32> to vector<2x8xf32>
    %49 = vector.shape_cast %48 : vector<2x8xf32> to vector<2x8x1xf32>
    %50 = vector.broadcast %49 : vector<2x8x1xf32> to vector<2x8x8xf32>
    %51 = arith.subf %47, %50 : vector<2x8x8xf32>
    %52 = math.exp %51 : vector<2x8x8xf32>
    %cst_19 = arith.constant dense<0.000000e+00> : vector<2x8xf32>
    %53 = vector.multi_reduction <add>, %52, %cst_19 [2] : vector<2x8x8xf32> to vector<2x8xf32>
    %54 = vector.shape_cast %53 : vector<2x8xf32> to vector<2x8x1xf32>
    %55 = vector.broadcast %54 : vector<2x8x1xf32> to vector<2x8x8xf32>
    %56 = arith.divf %52, %55 : vector<2x8x8xf32>
    "tpu.trace_start"() <{level = 10 : i32, message = "bqk,bke->bqe"}> : () -> ()
    %cst_20 = arith.constant dense<0.000000e+00> : vector<2x8x4xf32>
    %57 = tpu.matmul %56, %40, %cst_20 {dimension_numbers = #tpu.dot_dimension_numbers<[2], [1], [1], [2], [0, 0, 0, 1, 1, 2], [0], [0]>} : vector<2x8x8xf32>, vector<2x8x4xf32>, vector<2x8x4xf32> -> vector<2x8x4xf32>
    "tpu.trace_stop"() : () -> ()
    %58 = vector.extract_strided_slice %37 {offsets = [0, 0, 4], sizes = [2, 8, 4], strides = [1, 1, 1]} : vector<2x8x48xf32> to vector<2x8x4xf32>
    %59 = vector.extract_strided_slice %37 {offsets = [0, 0, 20], sizes = [2, 8, 4], strides = [1, 1, 1]} : vector<2x8x48xf32> to vector<2x8x4xf32>
    %60 = vector.extract_strided_slice %37 {offsets = [0, 0, 36], sizes = [2, 8, 4], strides = [1, 1, 1]} : vector<2x8x48xf32> to vector<2x8x4xf32>
    "tpu.trace_start"() <{level = 10 : i32, message = "bqe,bke->bqk"}> : () -> ()
    %cst_21 = arith.constant dense<0.000000e+00> : vector<2x8x8xf32>
    %61 = tpu.matmul %58, %59, %cst_21 {dimension_numbers = #tpu.dot_dimension_numbers<[2], [2], [1], [1], [0, 0, 0, 1, 1, 1], [0], [0]>} : vector<2x8x4xf32>, vector<2x8x4xf32>, vector<2x8x8xf32> -> vector<2x8x8xf32>
    "tpu.trace_stop"() : () -> ()
    %cst_22 = arith.constant 5.000000e-01 : f32
    %62 = vector.broadcast %cst_22 : f32 to vector<2x8x8xf32>
    %63 = arith.mulf %61, %62 : vector<2x8x8xf32>
    %cst_23 = arith.constant 0xFF800000 : f32
    %64 = vector.shape_cast %4 : vector<1x8x8xi1> to vector<1x8x8xi1>
    %65 = vector.broadcast %64 : vector<1x8x8xi1> to vector<2x8x8xi1>
    %66 = vector.broadcast %cst_23 : f32 to vector<2x8x8xf32>
    %67 = arith.select %65, %63, %66 : vector<2x8x8xi1>, vector<2x8x8xf32>
    %cst_24 = arith.constant dense<0xFF800000> : vector<2x8xf32>
    %68 = vector.multi_reduction <maximumf>, %67, %cst_24 [2] : vector<2x8x8xf32> to vector<2x8xf32>
    %69 = vector.shape_cast %68 : vector<2x8xf32> to vector<2x8x1xf32>
    %70 = vector.broadcast %69 : vector<2x8x1xf32> to vector<2x8x8xf32>
    %71 = arith.subf %67, %70 : vector<2x8x8xf32>
    %72 = math.exp %71 : vector<2x8x8xf32>
    %cst_25 = arith.constant dense<0.000000e+00> : vector<2x8xf32>
    %73 = vector.multi_reduction <add>, %72, %cst_25 [2] : vector<2x8x8xf32> to vector<2x8xf32>
    %74 = vector.shape_cast %73 : vector<2x8xf32> to vector<2x8x1xf32>
    %75 = vector.broadcast %74 : vector<2x8x1xf32> to vector<2x8x8xf32>
    %76 = arith.divf %72, %75 : vector<2x8x8xf32>
    "tpu.trace_start"() <{level = 10 : i32, message = "bqk,bke->bqe"}> : () -> ()
    %cst_26 = arith.constant dense<0.000000e+00> : vector<2x8x4xf32>
    %77 = tpu.matmul %76, %60, %cst_26 {dimension_numbers = #tpu.dot_dimension_numbers<[2], [1], [1], [2], [0, 0, 0, 1, 1, 2], [0], [0]>} : vector<2x8x8xf32>, vector<2x8x4xf32>, vector<2x8x4xf32> -> vector<2x8x4xf32>
    "tpu.trace_stop"() : () -> ()
    %78 = vector.extract_strided_slice %37 {offsets = [0, 0, 8], sizes = [2, 8, 4], strides = [1, 1, 1]} : vector<2x8x48xf32> to vector<2x8x4xf32>
    %79 = vector.extract_strided_slice %37 {offsets = [0, 0, 24], sizes = [2, 8, 4], strides = [1, 1, 1]} : vector<2x8x48xf32> to vector<2x8x4xf32>
    %80 = vector.extract_strided_slice %37 {offsets = [0, 0, 40], sizes = [2, 8, 4], strides = [1, 1, 1]} : vector<2x8x48xf32> to vector<2x8x4xf32>
    "tpu.trace_start"() <{level = 10 : i32, message = "bqe,bke->bqk"}> : () -> ()
    %cst_27 = arith.constant dense<0.000000e+00> : vector<2x8x8xf32>
    %81 = tpu.matmul %78, %79, %cst_27 {dimension_numbers = #tpu.dot_dimension_numbers<[2], [2], [1], [1], [0, 0, 0, 1, 1, 1], [0], [0]>} : vector<2x8x4xf32>, vector<2x8x4xf32>, vector<2x8x8xf32> -> vector<2x8x8xf32>
    "tpu.trace_stop"() : () -> ()
    %cst_28 = arith.constant 5.000000e-01 : f32
    %82 = vector.broadcast %cst_28 : f32 to vector<2x8x8xf32>
    %83 = arith.mulf %81, %82 : vector<2x8x8xf32>
    %cst_29 = arith.constant 0xFF800000 : f32
    %84 = vector.shape_cast %4 : vector<1x8x8xi1> to vector<1x8x8xi1>
    %85 = vector.broadcast %84 : vector<1x8x8xi1> to vector<2x8x8xi1>
    %86 = vector.broadcast %cst_29 : f32 to vector<2x8x8xf32>
    %87 = arith.select %85, %83, %86 : vector<2x8x8xi1>, vector<2x8x8xf32>
    %cst_30 = arith.constant dense<0xFF800000> : vector<2x8xf32>
    %88 = vector.multi_reduction <maximumf>, %87, %cst_30 [2] : vector<2x8x8xf32> to vector<2x8xf32>
    %89 = vector.shape_cast %88 : vector<2x8xf32> to vector<2x8x1xf32>
    %90 = vector.broadcast %89 : vector<2x8x1xf32> to vector<2x8x8xf32>
    %91 = arith.subf %87, %90 : vector<2x8x8xf32>
    %92 = math.exp %91 : vector<2x8x8xf32>
    %cst_31 = arith.constant dense<0.000000e+00> : vector<2x8xf32>
    %93 = vector.multi_reduction <add>, %92, %cst_31 [2] : vector<2x8x8xf32> to vector<2x8xf32>
    %94 = vector.shape_cast %93 : vector<2x8xf32> to vector<2x8x1xf32>
    %95 = vector.broadcast %94 : vector<2x8x1xf32> to vector<2x8x8xf32>
    %96 = arith.divf %92, %95 : vector<2x8x8xf32>
    "tpu.trace_start"() <{level = 10 : i32, message = "bqk,bke->bqe"}> : () -> ()
    %cst_32 = arith.constant dense<0.000000e+00> : vector<2x8x4xf32>
    %97 = tpu.matmul %96, %80, %cst_32 {dimension_numbers = #tpu.dot_dimension_numbers<[2], [1], [1], [2], [0, 0, 0, 1, 1, 2], [0], [0]>} : vector<2x8x8xf32>, vector<2x8x4xf32>, vector<2x8x4xf32> -> vector<2x8x4xf32>
    "tpu.trace_stop"() : () -> ()
    %98 = vector.extract_strided_slice %37 {offsets = [0, 0, 12], sizes = [2, 8, 4], strides = [1, 1, 1]} : vector<2x8x48xf32> to vector<2x8x4xf32>
    %99 = vector.extract_strided_slice %37 {offsets = [0, 0, 28], sizes = [2, 8, 4], strides = [1, 1, 1]} : vector<2x8x48xf32> to vector<2x8x4xf32>
    %100 = vector.extract_strided_slice %37 {offsets = [0, 0, 44], sizes = [2, 8, 4], strides = [1, 1, 1]} : vector<2x8x48xf32> to vector<2x8x4xf32>
    "tpu.trace_start"() <{level = 10 : i32, message = "bqe,bke->bqk"}> : () -> ()
    %cst_33 = arith.constant dense<0.000000e+00> : vector<2x8x8xf32>
    %101 = tpu.matmul %98, %99, %cst_33 {dimension_numbers = #tpu.dot_dimension_numbers<[2], [2], [1], [1], [0, 0, 0, 1, 1, 1], [0], [0]>} : vector<2x8x4xf32>, vector<2x8x4xf32>, vector<2x8x8xf32> -> vector<2x8x8xf32>
    "tpu.trace_stop"() : () -> ()
    %cst_34 = arith.constant 5.000000e-01 : f32
    %102 = vector.broadcast %cst_34 : f32 to vector<2x8x8xf32>
    %103 = arith.mulf %101, %102 : vector<2x8x8xf32>
    %cst_35 = arith.constant 0xFF800000 : f32
    %104 = vector.shape_cast %4 : vector<1x8x8xi1> to vector<1x8x8xi1>
    %105 = vector.broadcast %104 : vector<1x8x8xi1> to vector<2x8x8xi1>
    %106 = vector.broadcast %cst_35 : f32 to vector<2x8x8xf32>
    %107 = arith.select %105, %103, %106 : vector<2x8x8xi1>, vector<2x8x8xf32>
    %cst_36 = arith.constant dense<0xFF800000> : vector<2x8xf32>
    %108 = vector.multi_reduction <maximumf>, %107, %cst_36 [2] : vector<2x8x8xf32> to vector<2x8xf32>
    %109 = vector.shape_cast %108 : vector<2x8xf32> to vector<2x8x1xf32>
    %110 = vector.broadcast %109 : vector<2x8x1xf32> to vector<2x8x8xf32>
    %111 = arith.subf %107, %110 : vector<2x8x8xf32>
    %112 = math.exp %111 : vector<2x8x8xf32>
    %cst_37 = arith.constant dense<0.000000e+00> : vector<2x8xf32>
    %113 = vector.multi_reduction <add>, %112, %cst_37 [2] : vector<2x8x8xf32> to vector<2x8xf32>
    %114 = vector.shape_cast %113 : vector<2x8xf32> to vector<2x8x1xf32>
    %115 = vector.broadcast %114 : vector<2x8x1xf32> to vector<2x8x8xf32>
    %116 = arith.divf %112, %115 : vector<2x8x8xf32>
    "tpu.trace_start"() <{level = 10 : i32, message = "bqk,bke->bqe"}> : () -> ()
    %cst_38 = arith.constant dense<0.000000e+00> : vector<2x8x4xf32>
    %117 = tpu.matmul %116, %100, %cst_38 {dimension_numbers = #tpu.dot_dimension_numbers<[2], [1], [1], [2], [0, 0, 0, 1, 1, 2], [0], [0]>} : vector<2x8x8xf32>, vector<2x8x4xf32>, vector<2x8x4xf32> -> vector<2x8x4xf32>
    "tpu.trace_stop"() : () -> ()
    %118 = tpu.concatenate %57, %77, %97, %117 in 2 : vector<2x8x4xf32>, vector<2x8x4xf32>, vector<2x8x4xf32>, vector<2x8x4xf32> -> vector<2x8x16xf32>
    %119 = vector.shape_cast %118 : vector<2x8x16xf32> to vector<16x16xf32>
    %c0_39 = arith.constant 0 : index
    %c0_40 = arith.constant 0 : index
    %c0_41 = arith.constant 0 : index
    %120 = vector.load %arg3[%c0_39, %c0_40, %c0_41] : memref<2x16x16xf32, #tpu.memory_space<vmem>>, vector<1x16x16xf32>
    %121 = vector.shape_cast %120 : vector<1x16x16xf32> to vector<16x16xf32>
    %cst_42 = arith.constant dense<0.000000e+00> : vector<16x16xf32>
    %122 = tpu.matmul %119, %121, %cst_42 {dimension_numbers = #tpu.dot_dimension_numbers<[1], [0], [0], [1], [0, 0, 1, 1], [], []>} : vector<16x16xf32>, vector<16x16xf32>, vector<16x16xf32> -> vector<16x16xf32>
    %123 = vector.shape_cast %122 : vector<16x16xf32> to vector<2x8x16xf32>
    %124 = arith.addf %0, %123 : vector<2x8x16xf32>
    %c2 = arith.constant 2 : index
    %c0_43 = arith.constant 0 : index
    %c0_44 = arith.constant 0 : index
    %125 = vector.load %arg1[%c2, %c0_43, %c0_44] : memref<10x1x16xf32, #tpu.memory_space<vmem>>, vector<1x1x16xf32>
    %126 = vector.shape_cast %125 : vector<1x1x16xf32> to vector<1x16xf32>
    %c3 = arith.constant 3 : index
    %c0_45 = arith.constant 0 : index
    %c0_46 = arith.constant 0 : index
    %127 = vector.load %arg1[%c3, %c0_45, %c0_46] : memref<10x1x16xf32, #tpu.memory_space<vmem>>, vector<1x1x16xf32>
    %128 = vector.shape_cast %127 : vector<1x1x16xf32> to vector<1x16xf32>
    %cst_47 = arith.constant dense<0.000000e+00> : vector<2x8xf32>
    %129 = vector.multi_reduction <add>, %124, %cst_47 [2] : vector<2x8x16xf32> to vector<2x8xf32>
    %130 = vector.shape_cast %129 : vector<2x8xf32> to vector<2x8x1xf32>
    %cst_48 = arith.constant 1.600000e+01 : f32
    %131 = vector.broadcast %cst_48 : f32 to vector<2x8x1xf32>
    %132 = arith.divf %130, %131 : vector<2x8x1xf32>
    %133 = vector.broadcast %132 : vector<2x8x1xf32> to vector<2x8x16xf32>
    %134 = arith.subf %124, %133 : vector<2x8x16xf32>
    %135 = arith.mulf %134, %134 : vector<2x8x16xf32>
    %cst_49 = arith.constant dense<0.000000e+00> : vector<2x8xf32>
    %136 = vector.multi_reduction <add>, %135, %cst_49 [2] : vector<2x8x16xf32> to vector<2x8xf32>
    %137 = vector.shape_cast %136 : vector<2x8xf32> to vector<2x8x1xf32>
    %cst_50 = arith.constant 1.600000e+01 : f32
    %138 = vector.broadcast %cst_50 : f32 to vector<2x8x1xf32>
    %139 = arith.divf %137, %138 : vector<2x8x1xf32>
    %140 = vector.broadcast %132 : vector<2x8x1xf32> to vector<2x8x16xf32>
    %141 = arith.subf %124, %140 : vector<2x8x16xf32>
    %cst_51 = arith.constant 9.99999974E-6 : f32
    %142 = vector.broadcast %cst_51 : f32 to vector<2x8x1xf32>
    %143 = arith.addf %139, %142 : vector<2x8x1xf32>
    %144 = math.rsqrt %143 : vector<2x8x1xf32>
    %145 = vector.broadcast %144 : vector<2x8x1xf32> to vector<2x8x16xf32>
    %146 = arith.mulf %141, %145 : vector<2x8x16xf32>
    %147 = vector.shape_cast %126 : vector<1x16xf32> to vector<1x1x16xf32>
    %148 = vector.broadcast %147 : vector<1x1x16xf32> to vector<2x8x16xf32>
    %149 = arith.mulf %146, %148 : vector<2x8x16xf32>
    %150 = vector.shape_cast %128 : vector<1x16xf32> to vector<1x1x16xf32>
    %151 = vector.broadcast %150 : vector<1x1x16xf32> to vector<2x8x16xf32>
    %152 = arith.addf %149, %151 : vector<2x8x16xf32>
    %153 = vector.shape_cast %152 : vector<2x8x16xf32> to vector<16x16xf32>
    %c0_52 = arith.constant 0 : index
    %c0_53 = arith.constant 0 : index
    %c0_54 = arith.constant 0 : index
    %154 = vector.load %arg4[%c0_52, %c0_53, %c0_54] : memref<2x16x64xf32, #tpu.memory_space<vmem>>, vector<1x16x64xf32>
    %155 = vector.shape_cast %154 : vector<1x16x64xf32> to vector<16x64xf32>
    %cst_55 = arith.constant dense<0.000000e+00> : vector<16x64xf32>
    %156 = tpu.matmul %153, %155, %cst_55 {dimension_numbers = #tpu.dot_dimension_numbers<[1], [0], [0], [1], [0, 0, 1, 1], [], []>} : vector<16x16xf32>, vector<16x64xf32>, vector<16x64xf32> -> vector<16x64xf32>
    %c0_56 = arith.constant 0 : index
    %c0_57 = arith.constant 0 : index
    %c0_58 = arith.constant 0 : index
    %157 = vector.load %arg5[%c0_56, %c0_57, %c0_58] : memref<2x1x64xf32, #tpu.memory_space<vmem>>, vector<1x1x64xf32>
    %158 = vector.shape_cast %157 : vector<1x1x64xf32> to vector<1x64xf32>
    %159 = vector.broadcast %158 : vector<1x64xf32> to vector<16x64xf32>
    %160 = arith.addf %156, %159 : vector<16x64xf32>
    %cst_59 = arith.constant 5.000000e-01 : f32
    %161 = vector.broadcast %cst_59 : f32 to vector<16x64xf32>
    %162 = arith.mulf %161, %160 : vector<16x64xf32>
    %cst_60 = arith.constant 0.707106769 : f32
    %163 = vector.broadcast %cst_60 : f32 to vector<16x64xf32>
    %164 = arith.mulf %160, %163 : vector<16x64xf32>
    %165 = math.erf %164 : vector<16x64xf32>
    %cst_61 = arith.constant 1.000000e+00 : f32
    %166 = vector.broadcast %cst_61 : f32 to vector<16x64xf32>
    %167 = arith.addf %166, %165 : vector<16x64xf32>
    %168 = arith.mulf %162, %167 : vector<16x64xf32>
    %c0_62 = arith.constant 0 : index
    %c0_63 = arith.constant 0 : index
    %c0_64 = arith.constant 0 : index
    %169 = vector.load %arg6[%c0_62, %c0_63, %c0_64] : memref<2x64x16xf32, #tpu.memory_space<vmem>>, vector<1x64x16xf32>
    %170 = vector.shape_cast %169 : vector<1x64x16xf32> to vector<64x16xf32>
    %cst_65 = arith.constant dense<0.000000e+00> : vector<16x16xf32>
    %171 = tpu.matmul %168, %170, %cst_65 {dimension_numbers = #tpu.dot_dimension_numbers<[1], [0], [0], [1], [0, 0, 1, 1], [], []>} : vector<16x64xf32>, vector<64x16xf32>, vector<16x16xf32> -> vector<16x16xf32>
    %c0_66 = arith.constant 0 : index
    %c0_67 = arith.constant 0 : index
    %c0_68 = arith.constant 0 : index
    %172 = vector.load %arg7[%c0_66, %c0_67, %c0_68] : memref<2x1x16xf32, #tpu.memory_space<vmem>>, vector<1x1x16xf32>
    %173 = vector.shape_cast %172 : vector<1x1x16xf32> to vector<1x16xf32>
    %174 = vector.broadcast %173 : vector<1x16xf32> to vector<16x16xf32>
    %175 = arith.addf %171, %174 : vector<16x16xf32>
    %176 = vector.shape_cast %175 : vector<16x16xf32> to vector<2x8x16xf32>
    %177 = arith.addf %124, %176 : vector<2x8x16xf32>
    %c4 = arith.constant 4 : index
    %c0_69 = arith.constant 0 : index
    %c0_70 = arith.constant 0 : index
    %178 = vector.load %arg1[%c4, %c0_69, %c0_70] : memref<10x1x16xf32, #tpu.memory_space<vmem>>, vector<1x1x16xf32>
    %179 = vector.shape_cast %178 : vector<1x1x16xf32> to vector<1x16xf32>
    %c5 = arith.constant 5 : index
    %c0_71 = arith.constant 0 : index
    %c0_72 = arith.constant 0 : index
    %180 = vector.load %arg1[%c5, %c0_71, %c0_72] : memref<10x1x16xf32, #tpu.memory_space<vmem>>, vector<1x1x16xf32>
    %181 = vector.shape_cast %180 : vector<1x1x16xf32> to vector<1x16xf32>
    %cst_73 = arith.constant dense<0.000000e+00> : vector<2x8xf32>
    %182 = vector.multi_reduction <add>, %177, %cst_73 [2] : vector<2x8x16xf32> to vector<2x8xf32>
    %183 = vector.shape_cast %182 : vector<2x8xf32> to vector<2x8x1xf32>
    %cst_74 = arith.constant 1.600000e+01 : f32
    %184 = vector.broadcast %cst_74 : f32 to vector<2x8x1xf32>
    %185 = arith.divf %183, %184 : vector<2x8x1xf32>
    %186 = vector.broadcast %185 : vector<2x8x1xf32> to vector<2x8x16xf32>
    %187 = arith.subf %177, %186 : vector<2x8x16xf32>
    %188 = arith.mulf %187, %187 : vector<2x8x16xf32>
    %cst_75 = arith.constant dense<0.000000e+00> : vector<2x8xf32>
    %189 = vector.multi_reduction <add>, %188, %cst_75 [2] : vector<2x8x16xf32> to vector<2x8xf32>
    %190 = vector.shape_cast %189 : vector<2x8xf32> to vector<2x8x1xf32>
    %cst_76 = arith.constant 1.600000e+01 : f32
    %191 = vector.broadcast %cst_76 : f32 to vector<2x8x1xf32>
    %192 = arith.divf %190, %191 : vector<2x8x1xf32>
    %193 = vector.broadcast %185 : vector<2x8x1xf32> to vector<2x8x16xf32>
    %194 = arith.subf %177, %193 : vector<2x8x16xf32>
    %cst_77 = arith.constant 9.99999974E-6 : f32
    %195 = vector.broadcast %cst_77 : f32 to vector<2x8x1xf32>
    %196 = arith.addf %192, %195 : vector<2x8x1xf32>
    %197 = math.rsqrt %196 : vector<2x8x1xf32>
    %198 = vector.broadcast %197 : vector<2x8x1xf32> to vector<2x8x16xf32>
    %199 = arith.mulf %194, %198 : vector<2x8x16xf32>
    %200 = vector.shape_cast %179 : vector<1x16xf32> to vector<1x1x16xf32>
    %201 = vector.broadcast %200 : vector<1x1x16xf32> to vector<2x8x16xf32>
    %202 = arith.mulf %199, %201 : vector<2x8x16xf32>
    %203 = vector.shape_cast %181 : vector<1x16xf32> to vector<1x1x16xf32>
    %204 = vector.broadcast %203 : vector<1x1x16xf32> to vector<2x8x16xf32>
    %205 = arith.addf %202, %204 : vector<2x8x16xf32>
    %206 = vector.shape_cast %205 : vector<2x8x16xf32> to vector<16x16xf32>
    %c1_78 = arith.constant 1 : index
    %c0_79 = arith.constant 0 : index
    %c0_80 = arith.constant 0 : index
    %207 = vector.load %arg2[%c1_78, %c0_79, %c0_80] : memref<2x16x48xf32, #tpu.memory_space<vmem>>, vector<1x16x48xf32>
    %208 = vector.shape_cast %207 : vector<1x16x48xf32> to vector<16x48xf32>
    %cst_81 = arith.constant dense<0.000000e+00> : vector<16x48xf32>
    %209 = tpu.matmul %206, %208, %cst_81 {dimension_numbers = #tpu.dot_dimension_numbers<[1], [0], [0], [1], [0, 0, 1, 1], [], []>} : vector<16x16xf32>, vector<16x48xf32>, vector<16x48xf32> -> vector<16x48xf32>
    %210 = vector.shape_cast %209 : vector<16x48xf32> to vector<2x8x48xf32>
    %211 = vector.extract_strided_slice %210 {offsets = [0, 0, 0], sizes = [2, 8, 4], strides = [1, 1, 1]} : vector<2x8x48xf32> to vector<2x8x4xf32>
    %212 = vector.extract_strided_slice %210 {offsets = [0, 0, 16], sizes = [2, 8, 4], strides = [1, 1, 1]} : vector<2x8x48xf32> to vector<2x8x4xf32>
    %213 = vector.extract_strided_slice %210 {offsets = [0, 0, 32], sizes = [2, 8, 4], strides = [1, 1, 1]} : vector<2x8x48xf32> to vector<2x8x4xf32>
    "tpu.trace_start"() <{level = 10 : i32, message = "bqe,bke->bqk"}> : () -> ()
    %cst_82 = arith.constant dense<0.000000e+00> : vector<2x8x8xf32>
    %214 = tpu.matmul %211, %212, %cst_82 {dimension_numbers = #tpu.dot_dimension_numbers<[2], [2], [1], [1], [0, 0, 0, 1, 1, 1], [0], [0]>} : vector<2x8x4xf32>, vector<2x8x4xf32>, vector<2x8x8xf32> -> vector<2x8x8xf32>
    "tpu.trace_stop"() : () -> ()
    %cst_83 = arith.constant 5.000000e-01 : f32
    %215 = vector.broadcast %cst_83 : f32 to vector<2x8x8xf32>
    %216 = arith.mulf %214, %215 : vector<2x8x8xf32>
    %cst_84 = arith.constant 0xFF800000 : f32
    %217 = vector.shape_cast %4 : vector<1x8x8xi1> to vector<1x8x8xi1>
    %218 = vector.broadcast %217 : vector<1x8x8xi1> to vector<2x8x8xi1>
    %219 = vector.broadcast %cst_84 : f32 to vector<2x8x8xf32>
    %220 = arith.select %218, %216, %219 : vector<2x8x8xi1>, vector<2x8x8xf32>
    %cst_85 = arith.constant dense<0xFF800000> : vector<2x8xf32>
    %221 = vector.multi_reduction <maximumf>, %220, %cst_85 [2] : vector<2x8x8xf32> to vector<2x8xf32>
    %222 = vector.shape_cast %221 : vector<2x8xf32> to vector<2x8x1xf32>
    %223 = vector.broadcast %222 : vector<2x8x1xf32> to vector<2x8x8xf32>
    %224 = arith.subf %220, %223 : vector<2x8x8xf32>
    %225 = math.exp %224 : vector<2x8x8xf32>
    %cst_86 = arith.constant dense<0.000000e+00> : vector<2x8xf32>
    %226 = vector.multi_reduction <add>, %225, %cst_86 [2] : vector<2x8x8xf32> to vector<2x8xf32>
    %227 = vector.shape_cast %226 : vector<2x8xf32> to vector<2x8x1xf32>
    %228 = vector.broadcast %227 : vector<2x8x1xf32> to vector<2x8x8xf32>
    %229 = arith.divf %225, %228 : vector<2x8x8xf32>
    "tpu.trace_start"() <{level = 10 : i32, message = "bqk,bke->bqe"}> : () -> ()
    %cst_87 = arith.constant dense<0.000000e+00> : vector<2x8x4xf32>
    %230 = tpu.matmul %229, %213, %cst_87 {dimension_numbers = #tpu.dot_dimension_numbers<[2], [1], [1], [2], [0, 0, 0, 1, 1, 2], [0], [0]>} : vector<2x8x8xf32>, vector<2x8x4xf32>, vector<2x8x4xf32> -> vector<2x8x4xf32>
    "tpu.trace_stop"() : () -> ()
    %231 = vector.extract_strided_slice %210 {offsets = [0, 0, 4], sizes = [2, 8, 4], strides = [1, 1, 1]} : vector<2x8x48xf32> to vector<2x8x4xf32>
    %232 = vector.extract_strided_slice %210 {offsets = [0, 0, 20], sizes = [2, 8, 4], strides = [1, 1, 1]} : vector<2x8x48xf32> to vector<2x8x4xf32>
    %233 = vector.extract_strided_slice %210 {offsets = [0, 0, 36], sizes = [2, 8, 4], strides = [1, 1, 1]} : vector<2x8x48xf32> to vector<2x8x4xf32>
    "tpu.trace_start"() <{level = 10 : i32, message = "bqe,bke->bqk"}> : () -> ()
    %cst_88 = arith.constant dense<0.000000e+00> : vector<2x8x8xf32>
    %234 = tpu.matmul %231, %232, %cst_88 {dimension_numbers = #tpu.dot_dimension_numbers<[2], [2], [1], [1], [0, 0, 0, 1, 1, 1], [0], [0]>} : vector<2x8x4xf32>, vector<2x8x4xf32>, vector<2x8x8xf32> -> vector<2x8x8xf32>
    "tpu.trace_stop"() : () -> ()
    %cst_89 = arith.constant 5.000000e-01 : f32
    %235 = vector.broadcast %cst_89 : f32 to vector<2x8x8xf32>
    %236 = arith.mulf %234, %235 : vector<2x8x8xf32>
    %cst_90 = arith.constant 0xFF800000 : f32
    %237 = vector.shape_cast %4 : vector<1x8x8xi1> to vector<1x8x8xi1>
    %238 = vector.broadcast %237 : vector<1x8x8xi1> to vector<2x8x8xi1>
    %239 = vector.broadcast %cst_90 : f32 to vector<2x8x8xf32>
    %240 = arith.select %238, %236, %239 : vector<2x8x8xi1>, vector<2x8x8xf32>
    %cst_91 = arith.constant dense<0xFF800000> : vector<2x8xf32>
    %241 = vector.multi_reduction <maximumf>, %240, %cst_91 [2] : vector<2x8x8xf32> to vector<2x8xf32>
    %242 = vector.shape_cast %241 : vector<2x8xf32> to vector<2x8x1xf32>
    %243 = vector.broadcast %242 : vector<2x8x1xf32> to vector<2x8x8xf32>
    %244 = arith.subf %240, %243 : vector<2x8x8xf32>
    %245 = math.exp %244 : vector<2x8x8xf32>
    %cst_92 = arith.constant dense<0.000000e+00> : vector<2x8xf32>
    %246 = vector.multi_reduction <add>, %245, %cst_92 [2] : vector<2x8x8xf32> to vector<2x8xf32>
    %247 = vector.shape_cast %246 : vector<2x8xf32> to vector<2x8x1xf32>
    %248 = vector.broadcast %247 : vector<2x8x1xf32> to vector<2x8x8xf32>
    %249 = arith.divf %245, %248 : vector<2x8x8xf32>
    "tpu.trace_start"() <{level = 10 : i32, message = "bqk,bke->bqe"}> : () -> ()
    %cst_93 = arith.constant dense<0.000000e+00> : vector<2x8x4xf32>
    %250 = tpu.matmul %249, %233, %cst_93 {dimension_numbers = #tpu.dot_dimension_numbers<[2], [1], [1], [2], [0, 0, 0, 1, 1, 2], [0], [0]>} : vector<2x8x8xf32>, vector<2x8x4xf32>, vector<2x8x4xf32> -> vector<2x8x4xf32>
    "tpu.trace_stop"() : () -> ()
    %251 = vector.extract_strided_slice %210 {offsets = [0, 0, 8], sizes = [2, 8, 4], strides = [1, 1, 1]} : vector<2x8x48xf32> to vector<2x8x4xf32>
    %252 = vector.extract_strided_slice %210 {offsets = [0, 0, 24], sizes = [2, 8, 4], strides = [1, 1, 1]} : vector<2x8x48xf32> to vector<2x8x4xf32>
    %253 = vector.extract_strided_slice %210 {offsets = [0, 0, 40], sizes = [2, 8, 4], strides = [1, 1, 1]} : vector<2x8x48xf32> to vector<2x8x4xf32>
    "tpu.trace_start"() <{level = 10 : i32, message = "bqe,bke->bqk"}> : () -> ()
    %cst_94 = arith.constant dense<0.000000e+00> : vector<2x8x8xf32>
    %254 = tpu.matmul %251, %252, %cst_94 {dimension_numbers = #tpu.dot_dimension_numbers<[2], [2], [1], [1], [0, 0, 0, 1, 1, 1], [0], [0]>} : vector<2x8x4xf32>, vector<2x8x4xf32>, vector<2x8x8xf32> -> vector<2x8x8xf32>
    "tpu.trace_stop"() : () -> ()
    %cst_95 = arith.constant 5.000000e-01 : f32
    %255 = vector.broadcast %cst_95 : f32 to vector<2x8x8xf32>
    %256 = arith.mulf %254, %255 : vector<2x8x8xf32>
    %cst_96 = arith.constant 0xFF800000 : f32
    %257 = vector.shape_cast %4 : vector<1x8x8xi1> to vector<1x8x8xi1>
    %258 = vector.broadcast %257 : vector<1x8x8xi1> to vector<2x8x8xi1>
    %259 = vector.broadcast %cst_96 : f32 to vector<2x8x8xf32>
    %260 = arith.select %258, %256, %259 : vector<2x8x8xi1>, vector<2x8x8xf32>
    %cst_97 = arith.constant dense<0xFF800000> : vector<2x8xf32>
    %261 = vector.multi_reduction <maximumf>, %260, %cst_97 [2] : vector<2x8x8xf32> to vector<2x8xf32>
    %262 = vector.shape_cast %261 : vector<2x8xf32> to vector<2x8x1xf32>
    %263 = vector.broadcast %262 : vector<2x8x1xf32> to vector<2x8x8xf32>
    %264 = arith.subf %260, %263 : vector<2x8x8xf32>
    %265 = math.exp %264 : vector<2x8x8xf32>
    %cst_98 = arith.constant dense<0.000000e+00> : vector<2x8xf32>
    %266 = vector.multi_reduction <add>, %265, %cst_98 [2] : vector<2x8x8xf32> to vector<2x8xf32>
    %267 = vector.shape_cast %266 : vector<2x8xf32> to vector<2x8x1xf32>
    %268 = vector.broadcast %267 : vector<2x8x1xf32> to vector<2x8x8xf32>
    %269 = arith.divf %265, %268 : vector<2x8x8xf32>
    "tpu.trace_start"() <{level = 10 : i32, message = "bqk,bke->bqe"}> : () -> ()
    %cst_99 = arith.constant dense<0.000000e+00> : vector<2x8x4xf32>
    %270 = tpu.matmul %269, %253, %cst_99 {dimension_numbers = #tpu.dot_dimension_numbers<[2], [1], [1], [2], [0, 0, 0, 1, 1, 2], [0], [0]>} : vector<2x8x8xf32>, vector<2x8x4xf32>, vector<2x8x4xf32> -> vector<2x8x4xf32>
    "tpu.trace_stop"() : () -> ()
    %271 = vector.extract_strided_slice %210 {offsets = [0, 0, 12], sizes = [2, 8, 4], strides = [1, 1, 1]} : vector<2x8x48xf32> to vector<2x8x4xf32>
    %272 = vector.extract_strided_slice %210 {offsets = [0, 0, 28], sizes = [2, 8, 4], strides = [1, 1, 1]} : vector<2x8x48xf32> to vector<2x8x4xf32>
    %273 = vector.extract_strided_slice %210 {offsets = [0, 0, 44], sizes = [2, 8, 4], strides = [1, 1, 1]} : vector<2x8x48xf32> to vector<2x8x4xf32>
    "tpu.trace_start"() <{level = 10 : i32, message = "bqe,bke->bqk"}> : () -> ()
    %cst_100 = arith.constant dense<0.000000e+00> : vector<2x8x8xf32>
    %274 = tpu.matmul %271, %272, %cst_100 {dimension_numbers = #tpu.dot_dimension_numbers<[2], [2], [1], [1], [0, 0, 0, 1, 1, 1], [0], [0]>} : vector<2x8x4xf32>, vector<2x8x4xf32>, vector<2x8x8xf32> -> vector<2x8x8xf32>
    "tpu.trace_stop"() : () -> ()
    %cst_101 = arith.constant 5.000000e-01 : f32
    %275 = vector.broadcast %cst_101 : f32 to vector<2x8x8xf32>
    %276 = arith.mulf %274, %275 : vector<2x8x8xf32>
    %cst_102 = arith.constant 0xFF800000 : f32
    %277 = vector.shape_cast %4 : vector<1x8x8xi1> to vector<1x8x8xi1>
    %278 = vector.broadcast %277 : vector<1x8x8xi1> to vector<2x8x8xi1>
    %279 = vector.broadcast %cst_102 : f32 to vector<2x8x8xf32>
    %280 = arith.select %278, %276, %279 : vector<2x8x8xi1>, vector<2x8x8xf32>
    %cst_103 = arith.constant dense<0xFF800000> : vector<2x8xf32>
    %281 = vector.multi_reduction <maximumf>, %280, %cst_103 [2] : vector<2x8x8xf32> to vector<2x8xf32>
    %282 = vector.shape_cast %281 : vector<2x8xf32> to vector<2x8x1xf32>
    %283 = vector.broadcast %282 : vector<2x8x1xf32> to vector<2x8x8xf32>
    %284 = arith.subf %280, %283 : vector<2x8x8xf32>
    %285 = math.exp %284 : vector<2x8x8xf32>
    %cst_104 = arith.constant dense<0.000000e+00> : vector<2x8xf32>
    %286 = vector.multi_reduction <add>, %285, %cst_104 [2] : vector<2x8x8xf32> to vector<2x8xf32>
    %287 = vector.shape_cast %286 : vector<2x8xf32> to vector<2x8x1xf32>
    %288 = vector.broadcast %287 : vector<2x8x1xf32> to vector<2x8x8xf32>
    %289 = arith.divf %285, %288 : vector<2x8x8xf32>
    "tpu.trace_start"() <{level = 10 : i32, message = "bqk,bke->bqe"}> : () -> ()
    %cst_105 = arith.constant dense<0.000000e+00> : vector<2x8x4xf32>
    %290 = tpu.matmul %289, %273, %cst_105 {dimension_numbers = #tpu.dot_dimension_numbers<[2], [1], [1], [2], [0, 0, 0, 1, 1, 2], [0], [0]>} : vector<2x8x8xf32>, vector<2x8x4xf32>, vector<2x8x4xf32> -> vector<2x8x4xf32>
    "tpu.trace_stop"() : () -> ()
    %291 = tpu.concatenate %230, %250, %270, %290 in 2 : vector<2x8x4xf32>, vector<2x8x4xf32>, vector<2x8x4xf32>, vector<2x8x4xf32> -> vector<2x8x16xf32>
    %292 = vector.shape_cast %291 : vector<2x8x16xf32> to vector<16x16xf32>
    %c1_106 = arith.constant 1 : index
    %c0_107 = arith.constant 0 : index
    %c0_108 = arith.constant 0 : index
    %293 = vector.load %arg3[%c1_106, %c0_107, %c0_108] : memref<2x16x16xf32, #tpu.memory_space<vmem>>, vector<1x16x16xf32>
    %294 = vector.shape_cast %293 : vector<1x16x16xf32> to vector<16x16xf32>
    %cst_109 = arith.constant dense<0.000000e+00> : vector<16x16xf32>
    %295 = tpu.matmul %292, %294, %cst_109 {dimension_numbers = #tpu.dot_dimension_numbers<[1], [0], [0], [1], [0, 0, 1, 1], [], []>} : vector<16x16xf32>, vector<16x16xf32>, vector<16x16xf32> -> vector<16x16xf32>
    %296 = vector.shape_cast %295 : vector<16x16xf32> to vector<2x8x16xf32>
    %297 = arith.addf %177, %296 : vector<2x8x16xf32>
    %c6 = arith.constant 6 : index
    %c0_110 = arith.constant 0 : index
    %c0_111 = arith.constant 0 : index
    %298 = vector.load %arg1[%c6, %c0_110, %c0_111] : memref<10x1x16xf32, #tpu.memory_space<vmem>>, vector<1x1x16xf32>
    %299 = vector.shape_cast %298 : vector<1x1x16xf32> to vector<1x16xf32>
    %c7 = arith.constant 7 : index
    %c0_112 = arith.constant 0 : index
    %c0_113 = arith.constant 0 : index
    %300 = vector.load %arg1[%c7, %c0_112, %c0_113] : memref<10x1x16xf32, #tpu.memory_space<vmem>>, vector<1x1x16xf32>
    %301 = vector.shape_cast %300 : vector<1x1x16xf32> to vector<1x16xf32>
    %cst_114 = arith.constant dense<0.000000e+00> : vector<2x8xf32>
    %302 = vector.multi_reduction <add>, %297, %cst_114 [2] : vector<2x8x16xf32> to vector<2x8xf32>
    %303 = vector.shape_cast %302 : vector<2x8xf32> to vector<2x8x1xf32>
    %cst_115 = arith.constant 1.600000e+01 : f32
    %304 = vector.broadcast %cst_115 : f32 to vector<2x8x1xf32>
    %305 = arith.divf %303, %304 : vector<2x8x1xf32>
    %306 = vector.broadcast %305 : vector<2x8x1xf32> to vector<2x8x16xf32>
    %307 = arith.subf %297, %306 : vector<2x8x16xf32>
    %308 = arith.mulf %307, %307 : vector<2x8x16xf32>
    %cst_116 = arith.constant dense<0.000000e+00> : vector<2x8xf32>
    %309 = vector.multi_reduction <add>, %308, %cst_116 [2] : vector<2x8x16xf32> to vector<2x8xf32>
    %310 = vector.shape_cast %309 : vector<2x8xf32> to vector<2x8x1xf32>
    %cst_117 = arith.constant 1.600000e+01 : f32
    %311 = vector.broadcast %cst_117 : f32 to vector<2x8x1xf32>
    %312 = arith.divf %310, %311 : vector<2x8x1xf32>
    %313 = vector.broadcast %305 : vector<2x8x1xf32> to vector<2x8x16xf32>
    %314 = arith.subf %297, %313 : vector<2x8x16xf32>
    %cst_118 = arith.constant 9.99999974E-6 : f32
    %315 = vector.broadcast %cst_118 : f32 to vector<2x8x1xf32>
    %316 = arith.addf %312, %315 : vector<2x8x1xf32>
    %317 = math.rsqrt %316 : vector<2x8x1xf32>
    %318 = vector.broadcast %317 : vector<2x8x1xf32> to vector<2x8x16xf32>
    %319 = arith.mulf %314, %318 : vector<2x8x16xf32>
    %320 = vector.shape_cast %299 : vector<1x16xf32> to vector<1x1x16xf32>
    %321 = vector.broadcast %320 : vector<1x1x16xf32> to vector<2x8x16xf32>
    %322 = arith.mulf %319, %321 : vector<2x8x16xf32>
    %323 = vector.shape_cast %301 : vector<1x16xf32> to vector<1x1x16xf32>
    %324 = vector.broadcast %323 : vector<1x1x16xf32> to vector<2x8x16xf32>
    %325 = arith.addf %322, %324 : vector<2x8x16xf32>
    %326 = vector.shape_cast %325 : vector<2x8x16xf32> to vector<16x16xf32>
    %c1_119 = arith.constant 1 : index
    %c0_120 = arith.constant 0 : index
    %c0_121 = arith.constant 0 : index
    %327 = vector.load %arg4[%c1_119, %c0_120, %c0_121] : memref<2x16x64xf32, #tpu.memory_space<vmem>>, vector<1x16x64xf32>
    %328 = vector.shape_cast %327 : vector<1x16x64xf32> to vector<16x64xf32>
    %cst_122 = arith.constant dense<0.000000e+00> : vector<16x64xf32>
    %329 = tpu.matmul %326, %328, %cst_122 {dimension_numbers = #tpu.dot_dimension_numbers<[1], [0], [0], [1], [0, 0, 1, 1], [], []>} : vector<16x16xf32>, vector<16x64xf32>, vector<16x64xf32> -> vector<16x64xf32>
    %c1_123 = arith.constant 1 : index
    %c0_124 = arith.constant 0 : index
    %c0_125 = arith.constant 0 : index
    %330 = vector.load %arg5[%c1_123, %c0_124, %c0_125] : memref<2x1x64xf32, #tpu.memory_space<vmem>>, vector<1x1x64xf32>
    %331 = vector.shape_cast %330 : vector<1x1x64xf32> to vector<1x64xf32>
    %332 = vector.broadcast %331 : vector<1x64xf32> to vector<16x64xf32>
    %333 = arith.addf %329, %332 : vector<16x64xf32>
    %cst_126 = arith.constant 5.000000e-01 : f32
    %334 = vector.broadcast %cst_126 : f32 to vector<16x64xf32>
    %335 = arith.mulf %334, %333 : vector<16x64xf32>
    %cst_127 = arith.constant 0.707106769 : f32
    %336 = vector.broadcast %cst_127 : f32 to vector<16x64xf32>
    %337 = arith.mulf %333, %336 : vector<16x64xf32>
    %338 = math.erf %337 : vector<16x64xf32>
    %cst_128 = arith.constant 1.000000e+00 : f32
    %339 = vector.broadcast %cst_128 : f32 to vector<16x64xf32>
    %340 = arith.addf %339, %338 : vector<16x64xf32>
    %341 = arith.mulf %335, %340 : vector<16x64xf32>
    %c1_129 = arith.constant 1 : index
    %c0_130 = arith.constant 0 : index
    %c0_131 = arith.constant 0 : index
    %342 = vector.load %arg6[%c1_129, %c0_130, %c0_131] : memref<2x64x16xf32, #tpu.memory_space<vmem>>, vector<1x64x16xf32>
    %343 = vector.shape_cast %342 : vector<1x64x16xf32> to vector<64x16xf32>
    %cst_132 = arith.constant dense<0.000000e+00> : vector<16x16xf32>
    %344 = tpu.matmul %341, %343, %cst_132 {dimension_numbers = #tpu.dot_dimension_numbers<[1], [0], [0], [1], [0, 0, 1, 1], [], []>} : vector<16x64xf32>, vector<64x16xf32>, vector<16x16xf32> -> vector<16x16xf32>
    %c1_133 = arith.constant 1 : index
    %c0_134 = arith.constant 0 : index
    %c0_135 = arith.constant 0 : index
    %345 = vector.load %arg7[%c1_133, %c0_134, %c0_135] : memref<2x1x16xf32, #tpu.memory_space<vmem>>, vector<1x1x16xf32>
    %346 = vector.shape_cast %345 : vector<1x1x16xf32> to vector<1x16xf32>
    %347 = vector.broadcast %346 : vector<1x16xf32> to vector<16x16xf32>
    %348 = arith.addf %344, %347 : vector<16x16xf32>
    %349 = vector.shape_cast %348 : vector<16x16xf32> to vector<2x8x16xf32>
    %350 = arith.addf %297, %349 : vector<2x8x16xf32>
    %c8 = arith.constant 8 : index
    %c0_136 = arith.constant 0 : index
    %c0_137 = arith.constant 0 : index
    %351 = vector.load %arg1[%c8, %c0_136, %c0_137] : memref<10x1x16xf32, #tpu.memory_space<vmem>>, vector<1x1x16xf32>
    %352 = vector.shape_cast %351 : vector<1x1x16xf32> to vector<1x16xf32>
    %c9 = arith.constant 9 : index
    %c0_138 = arith.constant 0 : index
    %c0_139 = arith.constant 0 : index
    %353 = vector.load %arg1[%c9, %c0_138, %c0_139] : memref<10x1x16xf32, #tpu.memory_space<vmem>>, vector<1x1x16xf32>
    %354 = vector.shape_cast %353 : vector<1x1x16xf32> to vector<1x16xf32>
    %cst_140 = arith.constant dense<0.000000e+00> : vector<2x8xf32>
    %355 = vector.multi_reduction <add>, %350, %cst_140 [2] : vector<2x8x16xf32> to vector<2x8xf32>
    %356 = vector.shape_cast %355 : vector<2x8xf32> to vector<2x8x1xf32>
    %cst_141 = arith.constant 1.600000e+01 : f32
    %357 = vector.broadcast %cst_141 : f32 to vector<2x8x1xf32>
    %358 = arith.divf %356, %357 : vector<2x8x1xf32>
    %359 = vector.broadcast %358 : vector<2x8x1xf32> to vector<2x8x16xf32>
    %360 = arith.subf %350, %359 : vector<2x8x16xf32>
    %361 = arith.mulf %360, %360 : vector<2x8x16xf32>
    %cst_142 = arith.constant dense<0.000000e+00> : vector<2x8xf32>
    %362 = vector.multi_reduction <add>, %361, %cst_142 [2] : vector<2x8x16xf32> to vector<2x8xf32>
    %363 = vector.shape_cast %362 : vector<2x8xf32> to vector<2x8x1xf32>
    %cst_143 = arith.constant 1.600000e+01 : f32
    %364 = vector.broadcast %cst_143 : f32 to vector<2x8x1xf32>
    %365 = arith.divf %363, %364 : vector<2x8x1xf32>
    %366 = vector.broadcast %358 : vector<2x8x1xf32> to vector<2x8x16xf32>
    %367 = arith.subf %350, %366 : vector<2x8x16xf32>
    %cst_144 = arith.constant 9.99999974E-6 : f32
    %368 = vector.broadcast %cst_144 : f32 to vector<2x8x1xf32>
    %369 = arith.addf %365, %368 : vector<2x8x1xf32>
    %370 = math.rsqrt %369 : vector<2x8x1xf32>
    %371 = vector.broadcast %370 : vector<2x8x1xf32> to vector<2x8x16xf32>
    %372 = arith.mulf %367, %371 : vector<2x8x16xf32>
    %373 = vector.shape_cast %352 : vector<1x16xf32> to vector<1x1x16xf32>
    %374 = vector.broadcast %373 : vector<1x1x16xf32> to vector<2x8x16xf32>
    %375 = arith.mulf %372, %374 : vector<2x8x16xf32>
    %376 = vector.shape_cast %354 : vector<1x16xf32> to vector<1x1x16xf32>
    %377 = vector.broadcast %376 : vector<1x1x16xf32> to vector<2x8x16xf32>
    %378 = arith.addf %375, %377 : vector<2x8x16xf32>
    %379 = vector.shape_cast %378 : vector<2x8x16xf32> to vector<16x16xf32>
    %c0_145 = arith.constant 0 : index
    %c0_146 = arith.constant 0 : index
    %380 = vector.load %arg8[%c0_145, %c0_146] : memref<16x128xf32, #tpu.memory_space<vmem>>, vector<16x128xf32>
    %cst_147 = arith.constant dense<0.000000e+00> : vector<16x128xf32>
    %381 = tpu.matmul %379, %380, %cst_147 {dimension_numbers = #tpu.dot_dimension_numbers<[1], [0], [0], [1], [0, 0, 1, 1], [], []>} : vector<16x16xf32>, vector<16x128xf32>, vector<16x128xf32> -> vector<16x128xf32>
    %382 = vector.shape_cast %381 : vector<16x128xf32> to vector<2x8x128xf32>
    %c0_148 = arith.constant 0 : index
    %c0_149 = arith.constant 0 : index
    %c0_150 = arith.constant 0 : index
    %383 = vector.load %arg9[%c0_148, %c0_149, %c0_150] : memref<2x8x128xf32, #tpu.memory_space<vmem>>, vector<2x8x128xf32>
    tpu.vector_store %arg9[%c0_148, %c0_149, %c0_150], %382 {strides = array<i32>} : memref<2x8x128xf32, #tpu.memory_space<vmem>>, vector<2x8x128xf32>,
    return
  }
}

</mosaic_0001>

<llo_original>
// kernel: transformer_forward.1
$region0: #{transformer_forward.1}
  #allocation0 [shape = 'u32[]', space=smem, size = 0x4, offset = 0x4, fixed_abs, tag = 'smem constant byte address 0x4 - core index']
  #allocation1 [shape = 'u32[144,128]{1,0:T(1,128)}', space=vmem, size = 0x12000, scoped, tag = 'internal scratch']
  %s0 = inlined_call_operand.vmem [shape: f32[2,8,16], index: 0, kind: input, shape index: {}]
  %s1 = inlined_call_operand.vmem [shape: f32[10,1,16], index: 1, kind: input, shape index: {}]
  %s2 = inlined_call_operand.vmem [shape: f32[2,16,48], index: 2, kind: input, shape index: {}]
  %s3 = inlined_call_operand.vmem [shape: f32[2,16,16], index: 3, kind: input, shape index: {}]
  %s4 = inlined_call_operand.vmem [shape: f32[2,16,64], index: 4, kind: input, shape index: {}]
  %s5 = inlined_call_operand.vmem [shape: f32[2,1,64], index: 5, kind: input, shape index: {}]
  %s6 = inlined_call_operand.vmem [shape: f32[2,64,16], index: 6, kind: input, shape index: {}]
  %s7 = inlined_call_operand.vmem [shape: f32[2,1,16], index: 7, kind: input, shape index: {}]
  %s8 = inlined_call_operand.vmem [shape: f32[16,128], index: 8, kind: input, shape index: {}]
  %s9 = inlined_call_operand.hbm [shape: f32[2,8,128], index: 9, kind: output, shape index: {}]
  %s10 = sld [smem:[#allocation0]]
  $region46: #{transformer_forward.1} parent=0
    _
  %s12 = ssub.s32 1, %s10
  %s13 = scalar_select 0, %s12, %s10
  $region1: #{transformer_forward.1} parent=0
    #allocation2 [shape = 'u8[8192]{0}', space=vmem, size = 0x2000, scoped, tag = 'output window, operand 0, single buffered']
    #allocation3 [shape = 's32[1]{0}', space=sflag, size = 0x4, scoped, tag = 'scoped memory for transformer_forward.1']
    %14 = vsyncpa [#allocation3], 0
    // Predicated region
    $region2: #{transformer_forward.1} parent=1 // pred_check
      _
    $region3: #{transformer_forward.1} parent=1 // pred_check_branch
      %16 = sbr.rel (0) target = $region5
    $region4: #{transformer_forward.1} parent=1 // pred_region
      _
    $region5: #{transformer_forward.1} parent=1 // pred_fallthru
      _
    // Predicated region
    $region6: #{transformer_forward.1} parent=1 // pred_check
      _
    $region7: #{transformer_forward.1} parent=1 // pred_check_branch
      %18 = sbr.rel (0) target = $region9
    $region8: #{transformer_forward.1} parent=1 // pred_region
      _
    $region9: #{transformer_forward.1} parent=1 // pred_fallthru
      _
    // Predicated region
    $region10: #{transformer_forward.1} parent=1 // pred_check
      _
    $region11: #{transformer_forward.1} parent=1 // pred_check_branch
      %20 = sbr.rel (0) target = $region13
    $region12: #{transformer_forward.1} parent=1 // pred_region
      _
    $region13: #{transformer_forward.1} parent=1 // pred_fallthru
      _
    // Predicated region
    $region14: #{transformer_forward.1} parent=1 // pred_check
      _
    $region15: #{transformer_forward.1} parent=1 // pred_check_branch
      %22 = sbr.rel (0) target = $region17
    $region16: #{transformer_forward.1} parent=1 // pred_region
      _
    $region17: #{transformer_forward.1} parent=1 // pred_fallthru
      _
    // Predicated region
    $region18: #{transformer_forward.1} parent=1 // pred_check
      _
    $region19: #{transformer_forward.1} parent=1 // pred_check_branch
      %24 = sbr.rel (0) target = $region21
    $region20: #{transformer_forward.1} parent=1 // pred_region
      _
    $region21: #{transformer_forward.1} parent=1 // pred_fallthru
      _
    // Predicated region
    $region22: #{transformer_forward.1} parent=1 // pred_check
      _
    $region23: #{transformer_forward.1} parent=1 // pred_check_branch
      %26 = sbr.rel (0) target = $region25
    $region24: #{transformer_forward.1} parent=1 // pred_region
      _
    $region25: #{transformer_forward.1} parent=1 // pred_fallthru
      _
    // Predicated region
    $region26: #{transformer_forward.1} parent=1 // pred_check
      _
    $region27: #{transformer_forward.1} parent=1 // pred_check_branch
      %28 = sbr.rel (0) target = $region29
    $region28: #{transformer_forward.1} parent=1 // pred_region
      _
    $region29: #{transformer_forward.1} parent=1 // pred_fallthru
      _
    // Predicated region
    $region30: #{transformer_forward.1} parent=1 // pred_check
      _
    $region31: #{transformer_forward.1} parent=1 // pred_check_branch
      %30 = sbr.rel (0) target = $region33
    $region32: #{transformer_forward.1} parent=1 // pred_region
      _
    $region33: #{transformer_forward.1} parent=1 // pred_fallthru
      _
    // Predicated region
    $region34: #{transformer_forward.1} parent=1 // pred_check
      _
    $region35: #{transformer_forward.1} parent=1 // pred_check_branch
      %32 = sbr.rel (0) target = $region37
    $region36: #{transformer_forward.1} parent=1 // pred_region
      _
    $region37: #{transformer_forward.1} parent=1 // pred_fallthru
      _
    %v33 = vld [vmem:[%s0] sm:$0xff]
    %v34 = vld [vmem:[%s0 + $0x8] sm:$0xff]
    %v35 = vlaneseq
    %v36 = vshrl.u32 %v35, 7
    %v37 = vlaneseq
    %v38 = vand.u32 %v37, 127
    %vm39 = vcmp.le.s32.totalorder %v38, %v36
    %v40 = vld [vmem:[%s1] sm:$0x1]
    %s41 = scalar_lea.vmem %s1, 1
    %v42 = vld [vmem:[%s41] sm:$0x1]
    %vm43 = vcmask 130048
    %v44 = vsel %vm43, %v33, 0.0
    %45 = vadd.xlane.f32.xlu0 %v44
    %v46 = vpop.xlane.xlu0 %45
    %v47 = vsel %vm43, %v34, 0.0
    %48 = vadd.xlane.f32.xlu0 %v47
    %v49 = vpop.xlane.xlu0 %48
    %v50 = vrcp.pop 16.0
    %v51 = vmul.f32 %v46, %v50
    %v52 = vmul.f32 %v49, %v50
    %v53 = vsub.f32 %v33, %v51
    %v54 = vsub.f32 %v34, %v52
    %v55 = vmul.f32 %v53, %v53
    %v56 = vmul.f32 %v54, %v54
    %v57 = vsel %vm43, %v55, 0.0
    %58 = vadd.xlane.f32.xlu0 %v57
    %v59 = vpop.xlane.xlu0 %58
    %v60 = vsel %vm43, %v56, 0.0
    %61 = vadd.xlane.f32.xlu0 %v60
    %v62 = vpop.xlane.xlu0 %61
    %v63 = vmul.f32 %v59, %v50
    %v64 = vmul.f32 %v62, %v50
    %v65 = vadd.f32 %v63, 1e-05
    %v66 = vadd.f32 %v64, 1e-05
    %v67 = vrsqrt.pop %v65
    %v68 = vrsqrt.pop %v66
    %v69 = vmul.f32 %v53, %v67
    %v70 = vmul.f32 %v54, %v68
    %v72 = vlaneseq
    %v73 = vshrl.u32 %v72, 7
    %v74 = vsub.s32 0, %v73
    %v75 = vrot.slane %v40, %v74
    %v77 = vmul.f32 %v69, %v75
    %v78 = vmul.f32 %v70, %v75
    %v80 = vlaneseq
    %v81 = vshrl.u32 %v80, 7
    %v82 = vsub.s32 0, %v81
    %v83 = vrot.slane %v42, %v82
    %v85 = vadd.f32 %v77, %v83
    %v86 = vadd.f32 %v78, %v83
    %v87 = vld [vmem:[%s2] sm:$0xff]
    %v88 = vld [vmem:[%s2 + $0x8] sm:$0xff]
    %v90 = vsel %vm43, %v85, 0
    %v93 = vsel %vm43, %v86, 0
    %95 = vmatprep.subr.mxu0 0.0
    %96 = vmatpush1.msra.mxu0 %v87
    %97 = vmatprep.subr.mxu0 0.0
    %98 = vmatpush1.msra.mxu0 %v88
    %99 = vmatprep.subr.mxu0 0.0
    %100 = vmatpush1.msra.mxu0 0.0
    %101 = vmatprep.subr.mxu0 0.0
    %102 = vmatpush1.msra.mxu0 0.0
    %103 = vmatprep.subr.mxu0 0.0
    %104 = vmatpush1.msra.mxu0 0.0
    %105 = vmatprep.subr.mxu0 0.0
    %106 = vmatpush1.msra.mxu0 0.0
    %107 = vmatprep.subr.mxu0 0.0
    %108 = vmatpush1.msra.mxu0 0.0
    %109 = vmatprep.subr.mxu0 0.0
    %110 = vmatpush1.msra.mxu0 0.0
    %111 = vmatprep.subr.mxu0 0.0
    %112 = vmatpush1.msra.mxu0 0.0
    %113 = vmatprep.subr.mxu0 0.0
    %114 = vmatpush1.msra.mxu0 0.0
    %115 = vmatprep.subr.mxu0 0.0
    %116 = vmatpush1.msra.mxu0 0.0
    %117 = vmatprep.subr.mxu0 0.0
    %118 = vmatpush1.msra.mxu0 0.0
    %119 = vmatprep.subr.mxu0 0.0
    %120 = vmatpush1.msra.mxu0 0.0
    %121 = vmatprep.subr.mxu0 0.0
    %122 = vmatpush1.msra.mxu0 0.0
    %123 = vmatprep.subr.mxu0 0.0
    %124 = vmatpush1.msra.mxu0 0.0
    %125 = vmatprep.subr.mxu0 0.0
    %126 = vmatpush1.msra.mxu0 0.0
    %127 = vmatprep.subr.mxu0 0.0
    %128 = vmatpush1.msra.mxu0 0.0
    %129 = vmatprep.subr.mxu0 0.0
    %130 = vmatpush1.msra.mxu0 0.0
    %131 = vmatprep.subr.mxu0 0.0
    %132 = vmatpush1.msra.mxu0 0.0
    %133 = vmatprep.subr.mxu0 0.0
    %134 = vmatpush1.msra.mxu0 0.0
    %135 = vmatprep.subr.mxu0 0.0
    %136 = vmatpush1.msra.mxu0 0.0
    %137 = vmatprep.subr.mxu0 0.0
    %138 = vmatpush1.msra.mxu0 0.0
    %139 = vmatprep.subr.mxu0 0.0
    %140 = vmatpush1.msra.mxu0 0.0
    %141 = vmatprep.subr.mxu0 0.0
    %142 = vmatpush1.msra.mxu0 0.0
    %143 = vmatprep.subr.mxu0 0.0
    %144 = vmatpush1.msra.mxu0 0.0
    %145 = vmatprep.subr.mxu0 0.0
    %146 = vmatpush1.msra.mxu0 0.0
    %147 = vmatprep.subr.mxu0 0.0
    %148 = vmatpush1.msra.mxu0 0.0
    %149 = vmatprep.subr.mxu0 0.0
    %150 = vmatpush1.msra.mxu0 0.0
    %151 = vmatprep.subr.mxu0 0.0
    %152 = vmatpush1.msra.mxu0 0.0
    %153 = vmatprep.subr.mxu0 0.0
    %154 = vmatpush1.msra.mxu0 0.0
    %155 = vmatprep.subr.mxu0 0.0
    %156 = vmatpush1.msra.mxu0 0.0
    %157 = vmatprep.subr.mxu0 0.0
    %158 = vmatpush1.msra.mxu0 0.0
    %159 = vmatprep.mubr.f32.mxu0 0.0
    %160 = vmatmul.mubr.f32.gmra.mrb[0].mxu0 %v90
    %v161 = vpop.f32.mrb[0].mxu0
    %v162 = vadd.f32 0.0, %v161
    %v163 = vpop.f32.mrb[0].mxu0
    %164 = vmatprep.mubr.f32.mxu0 0.0
    %165 = vmatmul.mubr.f32.gmra.mrb[0].mxu0 %v93
    %v166 = vpop.f32.mrb[0].mxu0
    %v167 = vadd.f32 0.0, %v166
    %v168 = vpop.f32.mrb[0].mxu0
    %169 = vdwg.mxu0
    %171 = vrot.lane.b32.xlu0 %v162, 112
    %v172 = vpop.permute.xlu0 %171
    %vm173 = vcmask 31744
    %v174 = vsel %vm173, %v162, 0
    %v176 = vsel %vm173, %v172, 0
    %178 = vmatprep.subr.mxu0 0.0
    %179 = vmatpush1.xpose.msra.mxu0 %v176
    %180 = vmatprep.subr.mxu0 0.0
    %181 = vmatpush1.xpose.msra.mxu0 0.0
    %182 = vmatprep.subr.mxu0 0.0
    %183 = vmatpush1.xpose.msra.mxu0 0.0
    %184 = vmatprep.subr.mxu0 0.0
    %185 = vmatpush1.xpose.msra.mxu0 0.0
    %186 = vmatprep.subr.mxu0 0.0
    %187 = vmatpush1.xpose.msra.mxu0 0.0
    %188 = vmatprep.subr.mxu0 0.0
    %189 = vmatpush1.xpose.msra.mxu0 0.0
    %190 = vmatprep.subr.mxu0 0.0
    %191 = vmatpush1.xpose.msra.mxu0 0.0
    %192 = vmatprep.subr.mxu0 0.0
    %193 = vmatpush1.xpose.msra.mxu0 0.0
    %194 = vmatprep.subr.mxu0 0.0
    %195 = vmatpush1.xpose.msra.mxu0 0.0
    %196 = vmatprep.subr.mxu0 0.0
    %197 = vmatpush1.xpose.msra.mxu0 0.0
    %198 = vmatprep.subr.mxu0 0.0
    %199 = vmatpush1.xpose.msra.mxu0 0.0
    %200 = vmatprep.subr.mxu0 0.0
    %201 = vmatpush1.xpose.msra.mxu0 0.0
    %202 = vmatprep.subr.mxu0 0.0
    %203 = vmatpush1.xpose.msra.mxu0 0.0
    %204 = vmatprep.subr.mxu0 0.0
    %205 = vmatpush1.xpose.msra.mxu0 0.0
    %206 = vmatprep.subr.mxu0 0.0
    %207 = vmatpush1.xpose.msra.mxu0 0.0
    %208 = vmatprep.subr.mxu0 0.0
    %209 = vmatpush1.xpose.msra.mxu0 0.0
    %210 = vmatprep.subr.mxu0 0.0
    %211 = vmatpush1.xpose.msra.mxu0 0.0
    %212 = vmatprep.subr.mxu0 0.0
    %213 = vmatpush1.xpose.msra.mxu0 0.0
    %214 = vmatprep.subr.mxu0 0.0
    %215 = vmatpush1.xpose.msra.mxu0 0.0
    %216 = vmatprep.subr.mxu0 0.0
    %217 = vmatpush1.xpose.msra.mxu0 0.0
    %218 = vmatprep.subr.mxu0 0.0
    %219 = vmatpush1.xpose.msra.mxu0 0.0
    %220 = vmatprep.subr.mxu0 0.0
    %221 = vmatpush1.xpose.msra.mxu0 0.0
    %222 = vmatprep.subr.mxu0 0.0
    %223 = vmatpush1.xpose.msra.mxu0 0.0
    %224 = vmatprep.subr.mxu0 0.0
    %225 = vmatpush1.xpose.msra.mxu0 0.0
    %226 = vmatprep.subr.mxu0 0.0
    %227 = vmatpush1.xpose.msra.mxu0 0.0
    %228 = vmatprep.subr.mxu0 0.0
    %229 = vmatpush1.xpose.msra.mxu0 0.0
    %230 = vmatprep.subr.mxu0 0.0
    %231 = vmatpush1.xpose.msra.mxu0 0.0
    %232 = vmatprep.subr.mxu0 0.0
    %233 = vmatpush1.xpose.msra.mxu0 0.0
    %234 = vmatprep.subr.mxu0 0.0
    %235 = vmatpush1.xpose.msra.mxu0 0.0
    %236 = vmatprep.subr.mxu0 0.0
    %237 = vmatpush1.xpose.msra.mxu0 0.0
    %238 = vmatprep.subr.mxu0 0.0
    %239 = vmatpush1.xpose.msra.mxu0 0.0
    %240 = vmatprep.subr.mxu0 0.0
    %241 = vmatpush1.xpose.msra.mxu0 0.0
    %242 = vmatprep.mubr.f32.mxu0 0.0
    %243 = vmatmul.mubr.f32.gmra.mrb[0].mxu0 %v174
    %v244 = vpop.f32.mrb[0].mxu0
    %v245 = vadd.f32 0.0, %v244
    %v246 = vpop.f32.mrb[0].mxu0
    %247 = vdwg.mxu0
    %249 = vrot.lane.b32.xlu0 %v167, 112
    %v250 = vpop.permute.xlu0 %249
    %v251 = vsel %vm173, %v167, 0
    %v253 = vsel %vm173, %v250, 0
    %255 = vmatprep.subr.mxu0 0.0
    %256 = vmatpush1.xpose.msra.mxu0 %v253
    %257 = vmatprep.subr.mxu0 0.0
    %258 = vmatpush1.xpose.msra.mxu0 0.0
    %259 = vmatprep.subr.mxu0 0.0
    %260 = vmatpush1.xpose.msra.mxu0 0.0
    %261 = vmatprep.subr.mxu0 0.0
    %262 = vmatpush1.xpose.msra.mxu0 0.0
    %263 = vmatprep.subr.mxu0 0.0
    %264 = vmatpush1.xpose.msra.mxu0 0.0
    %265 = vmatprep.subr.mxu0 0.0
    %266 = vmatpush1.xpose.msra.mxu0 0.0
    %267 = vmatprep.subr.mxu0 0.0
    %268 = vmatpush1.xpose.msra.mxu0 0.0
    %269 = vmatprep.subr.mxu0 0.0
    %270 = vmatpush1.xpose.msra.mxu0 0.0
    %271 = vmatprep.subr.mxu0 0.0
    %272 = vmatpush1.xpose.msra.mxu0 0.0
    %273 = vmatprep.subr.mxu0 0.0
    %274 = vmatpush1.xpose.msra.mxu0 0.0
    %275 = vmatprep.subr.mxu0 0.0
    %276 = vmatpush1.xpose.msra.mxu0 0.0
    %277 = vmatprep.subr.mxu0 0.0
    %278 = vmatpush1.xpose.msra.mxu0 0.0
    %279 = vmatprep.subr.mxu0 0.0
    %280 = vmatpush1.xpose.msra.mxu0 0.0
    %281 = vmatprep.subr.mxu0 0.0
    %282 = vmatpush1.xpose.msra.mxu0 0.0
    %283 = vmatprep.subr.mxu0 0.0
    %284 = vmatpush1.xpose.msra.mxu0 0.0
    %285 = vmatprep.subr.mxu0 0.0
    %286 = vmatpush1.xpose.msra.mxu0 0.0
    %287 = vmatprep.subr.mxu0 0.0
    %288 = vmatpush1.xpose.msra.mxu0 0.0
    %289 = vmatprep.subr.mxu0 0.0
    %290 = vmatpush1.xpose.msra.mxu0 0.0
    %291 = vmatprep.subr.mxu0 0.0
    %292 = vmatpush1.xpose.msra.mxu0 0.0
    %293 = vmatprep.subr.mxu0 0.0
    %294 = vmatpush1.xpose.msra.mxu0 0.0
    %295 = vmatprep.subr.mxu0 0.0
    %296 = vmatpush1.xpose.msra.mxu0 0.0
    %297 = vmatprep.subr.mxu0 0.0
    %298 = vmatpush1.xpose.msra.mxu0 0.0
    %299 = vmatprep.subr.mxu0 0.0
    %300 = vmatpush1.xpose.msra.mxu0 0.0
    %301 = vmatprep.subr.mxu0 0.0
    %302 = vmatpush1.xpose.msra.mxu0 0.0
    %303 = vmatprep.subr.mxu0 0.0
    %304 = vmatpush1.xpose.msra.mxu0 0.0
    %305 = vmatprep.subr.mxu0 0.0
    %306 = vmatpush1.xpose.msra.mxu0 0.0
    %307 = vmatprep.subr.mxu0 0.0
    %308 = vmatpush1.xpose.msra.mxu0 0.0
    %309 = vmatprep.subr.mxu0 0.0
    %310 = vmatpush1.xpose.msra.mxu0 0.0
    %311 = vmatprep.subr.mxu0 0.0
    %312 = vmatpush1.xpose.msra.mxu0 0.0
    %313 = vmatprep.subr.mxu0 0.0
    %314 = vmatpush1.xpose.msra.mxu0 0.0
    %315 = vmatprep.subr.mxu0 0.0
    %316 = vmatpush1.xpose.msra.mxu0 0.0
    %317 = vmatprep.subr.mxu0 0.0
    %318 = vmatpush1.xpose.msra.mxu0 0.0
    %319 = vmatprep.mubr.f32.mxu0 0.0
    %320 = vmatmul.mubr.f32.gmra.mrb[0].mxu0 %v251
    %v321 = vpop.f32.mrb[0].mxu0
    %v322 = vadd.f32 0.0, %v321
    %v323 = vpop.f32.mrb[0].mxu0
    %324 = vdwg.mxu0
    %v325 = vmul.f32 %v245, 0.5
    %v326 = vmul.f32 %v322, 0.5
    %v327 = vsel %vm39, 1, 0
    %vm328 = vcmp.eq.s32.totalorder %v327, 1
    %v329 = vsel %vm328, %v325, -inf
    %v330 = vsel %vm328, %v326, -inf
    %vm331 = vcmask 64512
    %v332 = vsel %vm331, %v329, -inf
    %333 = vmax.xlane.f32.xlu0 %v332
    %v334 = vpop.xlane.xlu0 %333
    %v335 = vsel %vm331, %v330, -inf
    %336 = vmax.xlane.f32.xlu0 %v335
    %v337 = vpop.xlane.xlu0 %336
    %v338 = vsub.f32 %v329, %v334
    %v339 = vsub.f32 %v330, %v337
    %v340 = vmul.f32 %v338, 1.442695
    %v341 = vpow.pop %v340
    %v342 = vmul.f32 %v339, 1.442695
    %v343 = vpow.pop %v342
    %v344 = vsel %vm331, %v341, 0.0
    %345 = vadd.xlane.f32.xlu0 %v344
    %v346 = vpop.xlane.xlu0 %345
    %v347 = vsel %vm331, %v343, 0.0
    %348 = vadd.xlane.f32.xlu0 %v347
    %v349 = vpop.xlane.xlu0 %348
    %v350 = vrcp.pop %v346
    %v351 = vmul.f32 %v341, %v350
    %v352 = vrcp.pop %v349
    %v353 = vmul.f32 %v343, %v352
    %354 = vrot.lane.b32.xlu0 %v162, 96
    %v355 = vpop.permute.xlu0 %354
    %v358 = vsel %vm331, %v351, 0
    %360 = vmatprep.subr.mxu0 0.0
    %361 = vmatpush1.msra.mxu0 %v355
    %362 = vmatprep.subr.mxu0 0.0
    %363 = vmatpush1.msra.mxu0 0.0
    %364 = vmatprep.subr.mxu0 0.0
    %365 = vmatpush1.msra.mxu0 0.0
    %366 = vmatprep.subr.mxu0 0.0
    %367 = vmatpush1.msra.mxu0 0.0
    %368 = vmatprep.subr.mxu0 0.0
    %369 = vmatpush1.msra.mxu0 0.0
    %370 = vmatprep.subr.mxu0 0.0
    %371 = vmatpush1.msra.mxu0 0.0
    %372 = vmatprep.subr.mxu0 0.0
    %373 = vmatpush1.msra.mxu0 0.0
    %374 = vmatprep.subr.mxu0 0.0
    %375 = vmatpush1.msra.mxu0 0.0
    %376 = vmatprep.subr.mxu0 0.0
    %377 = vmatpush1.msra.mxu0 0.0
    %378 = vmatprep.subr.mxu0 0.0
    %379 = vmatpush1.msra.mxu0 0.0
    %380 = vmatprep.subr.mxu0 0.0
    %381 = vmatpush1.msra.mxu0 0.0
    %382 = vmatprep.subr.mxu0 0.0
    %383 = vmatpush1.msra.mxu0 0.0
    %384 = vmatprep.subr.mxu0 0.0
    %385 = vmatpush1.msra.mxu0 0.0
    %386 = vmatprep.subr.mxu0 0.0
    %387 = vmatpush1.msra.mxu0 0.0
    %388 = vmatprep.subr.mxu0 0.0
    %389 = vmatpush1.msra.mxu0 0.0
    %390 = vmatprep.subr.mxu0 0.0
    %391 = vmatpush1.msra.mxu0 0.0
    %392 = vmatprep.subr.mxu0 0.0
    %393 = vmatpush1.msra.mxu0 0.0
    %394 = vmatprep.subr.mxu0 0.0
    %395 = vmatpush1.msra.mxu0 0.0
    %396 = vmatprep.subr.mxu0 0.0
    %397 = vmatpush1.msra.mxu0 0.0
    %398 = vmatprep.subr.mxu0 0.0
    %399 = vmatpush1.msra.mxu0 0.0
    %400 = vmatprep.subr.mxu0 0.0
    %401 = vmatpush1.msra.mxu0 0.0
    %402 = vmatprep.subr.mxu0 0.0
    %403 = vmatpush1.msra.mxu0 0.0
    %404 = vmatprep.subr.mxu0 0.0
    %405 = vmatpush1.msra.mxu0 0.0
    %406 = vmatprep.subr.mxu0 0.0
    %407 = vmatpush1.msra.mxu0 0.0
    %408 = vmatprep.subr.mxu0 0.0
    %409 = vmatpush1.msra.mxu0 0.0
    %410 = vmatprep.subr.mxu0 0.0
    %411 = vmatpush1.msra.mxu0 0.0
    %412 = vmatprep.subr.mxu0 0.0
    %413 = vmatpush1.msra.mxu0 0.0
    %414 = vmatprep.subr.mxu0 0.0
    %415 = vmatpush1.msra.mxu0 0.0
    %416 = vmatprep.subr.mxu0 0.0
    %417 = vmatpush1.msra.mxu0 0.0
    %418 = vmatprep.subr.mxu0 0.0
    %419 = vmatpush1.msra.mxu0 0.0
    %420 = vmatprep.subr.mxu0 0.0
    %421 = vmatpush1.msra.mxu0 0.0
    %422 = vmatprep.subr.mxu0 0.0
    %423 = vmatpush1.msra.mxu0 0.0
    %424 = vmatprep.mubr.f32.mxu0 0.0
    %425 = vmatmul.mubr.f32.gmra.mrb[0].mxu0 %v358
    %v426 = vpop.f32.mrb[0].mxu0
    %v427 = vadd.f32 0.0, %v426
    %v428 = vpop.f32.mrb[0].mxu0
    %429 = vdwg.mxu0
    %430 = vrot.lane.b32.xlu0 %v167, 96
    %v431 = vpop.permute.xlu0 %430
    %v434 = vsel %vm331, %v353, 0
    %436 = vmatprep.subr.mxu0 0.0
    %437 = vmatpush1.msra.mxu0 %v431
    %438 = vmatprep.subr.mxu0 0.0
    %439 = vmatpush1.msra.mxu0 0.0
    %440 = vmatprep.subr.mxu0 0.0
    %441 = vmatpush1.msra.mxu0 0.0
    %442 = vmatprep.subr.mxu0 0.0
    %443 = vmatpush1.msra.mxu0 0.0
    %444 = vmatprep.subr.mxu0 0.0
    %445 = vmatpush1.msra.mxu0 0.0
    %446 = vmatprep.subr.mxu0 0.0
    %447 = vmatpush1.msra.mxu0 0.0
    %448 = vmatprep.subr.mxu0 0.0
    %449 = vmatpush1.msra.mxu0 0.0
    %450 = vmatprep.subr.mxu0 0.0
    %451 = vmatpush1.msra.mxu0 0.0
    %452 = vmatprep.subr.mxu0 0.0
    %453 = vmatpush1.msra.mxu0 0.0
    %454 = vmatprep.subr.mxu0 0.0
    %455 = vmatpush1.msra.mxu0 0.0
    %456 = vmatprep.subr.mxu0 0.0
    %457 = vmatpush1.msra.mxu0 0.0
    %458 = vmatprep.subr.mxu0 0.0
    %459 = vmatpush1.msra.mxu0 0.0
    %460 = vmatprep.subr.mxu0 0.0
    %461 = vmatpush1.msra.mxu0 0.0
    %462 = vmatprep.subr.mxu0 0.0
    %463 = vmatpush1.msra.mxu0 0.0
    %464 = vmatprep.subr.mxu0 0.0
    %465 = vmatpush1.msra.mxu0 0.0
    %466 = vmatprep.subr.mxu0 0.0
    %467 = vmatpush1.msra.mxu0 0.0
    %468 = vmatprep.subr.mxu0 0.0
    %469 = vmatpush1.msra.mxu0 0.0
    %470 = vmatprep.subr.mxu0 0.0
    %471 = vmatpush1.msra.mxu0 0.0
    %472 = vmatprep.subr.mxu0 0.0
    %473 = vmatpush1.msra.mxu0 0.0
    %474 = vmatprep.subr.mxu0 0.0
    %475 = vmatpush1.msra.mxu0 0.0
    %476 = vmatprep.subr.mxu0 0.0
    %477 = vmatpush1.msra.mxu0 0.0
    %478 = vmatprep.subr.mxu0 0.0
    %479 = vmatpush1.msra.mxu0 0.0
    %480 = vmatprep.subr.mxu0 0.0
    %481 = vmatpush1.msra.mxu0 0.0
    %482 = vmatprep.subr.mxu0 0.0
    %483 = vmatpush1.msra.mxu0 0.0
    %484 = vmatprep.subr.mxu0 0.0
    %485 = vmatpush1.msra.mxu0 0.0
    %486 = vmatprep.subr.mxu0 0.0
    %487 = vmatpush1.msra.mxu0 0.0
    %488 = vmatprep.subr.mxu0 0.0
    %489 = vmatpush1.msra.mxu0 0.0
    %490 = vmatprep.subr.mxu0 0.0
    %491 = vmatpush1.msra.mxu0 0.0
    %492 = vmatprep.subr.mxu0 0.0
    %493 = vmatpush1.msra.mxu0 0.0
    %494 = vmatprep.subr.mxu0 0.0
    %495 = vmatpush1.msra.mxu0 0.0
    %496 = vmatprep.subr.mxu0 0.0
    %497 = vmatpush1.msra.mxu0 0.0
    %498 = vmatprep.subr.mxu0 0.0
    %499 = vmatpush1.msra.mxu0 0.0
    %500 = vmatprep.mubr.f32.mxu0 0.0
    %501 = vmatmul.mubr.f32.gmra.mrb[0].mxu0 %v434
    %v502 = vpop.f32.mrb[0].mxu0
    %v503 = vadd.f32 0.0, %v502
    %v504 = vpop.f32.mrb[0].mxu0
    %505 = vdwg.mxu0
    %506 = vrot.lane.b32.xlu0 %v162, 124
    %v507 = vpop.permute.xlu0 %506
    %508 = vrot.lane.b32.xlu0 %v162, 108
    %v509 = vpop.permute.xlu0 %508
    %v510 = vsel %vm173, %v507, 0
    %v512 = vsel %vm173, %v509, 0
    %514 = vmatprep.subr.mxu0 0.0
    %515 = vmatpush1.xpose.msra.mxu0 %v512
    %516 = vmatprep.subr.mxu0 0.0
    %517 = vmatpush1.xpose.msra.mxu0 0.0
    %518 = vmatprep.subr.mxu0 0.0
    %519 = vmatpush1.xpose.msra.mxu0 0.0
    %520 = vmatprep.subr.mxu0 0.0
    %521 = vmatpush1.xpose.msra.mxu0 0.0
    %522 = vmatprep.subr.mxu0 0.0
    %523 = vmatpush1.xpose.msra.mxu0 0.0
    %524 = vmatprep.subr.mxu0 0.0
    %525 = vmatpush1.xpose.msra.mxu0 0.0
    %526 = vmatprep.subr.mxu0 0.0
    %527 = vmatpush1.xpose.msra.mxu0 0.0
    %528 = vmatprep.subr.mxu0 0.0
    %529 = vmatpush1.xpose.msra.mxu0 0.0
    %530 = vmatprep.subr.mxu0 0.0
    %531 = vmatpush1.xpose.msra.mxu0 0.0
    %532 = vmatprep.subr.mxu0 0.0
    %533 = vmatpush1.xpose.msra.mxu0 0.0
    %534 = vmatprep.subr.mxu0 0.0
    %535 = vmatpush1.xpose.msra.mxu0 0.0
    %536 = vmatprep.subr.mxu0 0.0
    %537 = vmatpush1.xpose.msra.mxu0 0.0
    %538 = vmatprep.subr.mxu0 0.0
    %539 = vmatpush1.xpose.msra.mxu0 0.0
    %540 = vmatprep.subr.mxu0 0.0
    %541 = vmatpush1.xpose.msra.mxu0 0.0
    %542 = vmatprep.subr.mxu0 0.0
    %543 = vmatpush1.xpose.msra.mxu0 0.0
    %544 = vmatprep.subr.mxu0 0.0
    %545 = vmatpush1.xpose.msra.mxu0 0.0
    %546 = vmatprep.subr.mxu0 0.0
    %547 = vmatpush1.xpose.msra.mxu0 0.0
    %548 = vmatprep.subr.mxu0 0.0
    %549 = vmatpush1.xpose.msra.mxu0 0.0
    %550 = vmatprep.subr.mxu0 0.0
    %551 = vmatpush1.xpose.msra.mxu0 0.0
    %552 = vmatprep.subr.mxu0 0.0
    %553 = vmatpush1.xpose.msra.mxu0 0.0
    %554 = vmatprep.subr.mxu0 0.0
    %555 = vmatpush1.xpose.msra.mxu0 0.0
    %556 = vmatprep.subr.mxu0 0.0
    %557 = vmatpush1.xpose.msra.mxu0 0.0
    %558 = vmatprep.subr.mxu0 0.0
    %559 = vmatpush1.xpose.msra.mxu0 0.0
    %560 = vmatprep.subr.mxu0 0.0
    %561 = vmatpush1.xpose.msra.mxu0 0.0
    %562 = vmatprep.subr.mxu0 0.0
    %563 = vmatpush1.xpose.msra.mxu0 0.0
    %564 = vmatprep.subr.mxu0 0.0
    %565 = vmatpush1.xpose.msra.mxu0 0.0
    %566 = vmatprep.subr.mxu0 0.0
    %567 = vmatpush1.xpose.msra.mxu0 0.0
    %568 = vmatprep.subr.mxu0 0.0
    %569 = vmatpush1.xpose.msra.mxu0 0.0
    %570 = vmatprep.subr.mxu0 0.0
    %571 = vmatpush1.xpose.msra.mxu0 0.0
    %572 = vmatprep.subr.mxu0 0.0
    %573 = vmatpush1.xpose.msra.mxu0 0.0
    %574 = vmatprep.subr.mxu0 0.0
    %575 = vmatpush1.xpose.msra.mxu0 0.0
    %576 = vmatprep.subr.mxu0 0.0
    %577 = vmatpush1.xpose.msra.mxu0 0.0
    %578 = vmatprep.mubr.f32.mxu0 0.0
    %579 = vmatmul.mubr.f32.gmra.mrb[0].mxu0 %v510
    %v580 = vpop.f32.mrb[0].mxu0
    %v581 = vadd.f32 0.0, %v580
    %v582 = vpop.f32.mrb[0].mxu0
    %583 = vdwg.mxu0
    %584 = vrot.lane.b32.xlu0 %v167, 124
    %v585 = vpop.permute.xlu0 %584
    %586 = vrot.lane.b32.xlu0 %v167, 108
    %v587 = vpop.permute.xlu0 %586
    %v588 = vsel %vm173, %v585, 0
    %v590 = vsel %vm173, %v587, 0
    %592 = vmatprep.subr.mxu0 0.0
    %593 = vmatpush1.xpose.msra.mxu0 %v590
    %594 = vmatprep.subr.mxu0 0.0
    %595 = vmatpush1.xpose.msra.mxu0 0.0
    %596 = vmatprep.subr.mxu0 0.0
    %597 = vmatpush1.xpose.msra.mxu0 0.0
    %598 = vmatprep.subr.mxu0 0.0
    %599 = vmatpush1.xpose.msra.mxu0 0.0
    %600 = vmatprep.subr.mxu0 0.0
    %601 = vmatpush1.xpose.msra.mxu0 0.0
    %602 = vmatprep.subr.mxu0 0.0
    %603 = vmatpush1.xpose.msra.mxu0 0.0
    %604 = vmatprep.subr.mxu0 0.0
    %605 = vmatpush1.xpose.msra.mxu0 0.0
    %606 = vmatprep.subr.mxu0 0.0
    %607 = vmatpush1.xpose.msra.mxu0 0.0
    %608 = vmatprep.subr.mxu0 0.0
    %609 = vmatpush1.xpose.msra.mxu0 0.0
    %610 = vmatprep.subr.mxu0 0.0
    %611 = vmatpush1.xpose.msra.mxu0 0.0
    %612 = vmatprep.subr.mxu0 0.0
    %613 = vmatpush1.xpose.msra.mxu0 0.0
    %614 = vmatprep.subr.mxu0 0.0
    %615 = vmatpush1.xpose.msra.mxu0 0.0
    %616 = vmatprep.subr.mxu0 0.0
    %617 = vmatpush1.xpose.msra.mxu0 0.0
    %618 = vmatprep.subr.mxu0 0.0
    %619 = vmatpush1.xpose.msra.mxu0 0.0
    %620 = vmatprep.subr.mxu0 0.0
    %621 = vmatpush1.xpose.msra.mxu0 0.0
    %622 = vmatprep.subr.mxu0 0.0
    %623 = vmatpush1.xpose.msra.mxu0 0.0
    %624 = vmatprep.subr.mxu0 0.0
    %625 = vmatpush1.xpose.msra.mxu0 0.0
    %626 = vmatprep.subr.mxu0 0.0
    %627 = vmatpush1.xpose.msra.mxu0 0.0
    %628 = vmatprep.subr.mxu0 0.0
    %629 = vmatpush1.xpose.msra.mxu0 0.0
    %630 = vmatprep.subr.mxu0 0.0
    %631 = vmatpush1.xpose.msra.mxu0 0.0
    %632 = vmatprep.subr.mxu0 0.0
    %633 = vmatpush1.xpose.msra.mxu0 0.0
    %634 = vmatprep.subr.mxu0 0.0
    %635 = vmatpush1.xpose.msra.mxu0 0.0
    %636 = vmatprep.subr.mxu0 0.0
    %637 = vmatpush1.xpose.msra.mxu0 0.0
    %638 = vmatprep.subr.mxu0 0.0
    %639 = vmatpush1.xpose.msra.mxu0 0.0
    %640 = vmatprep.subr.mxu0 0.0
    %641 = vmatpush1.xpose.msra.mxu0 0.0
    %642 = vmatprep.subr.mxu0 0.0
    %643 = vmatpush1.xpose.msra.mxu0 0.0
    %644 = vmatprep.subr.mxu0 0.0
    %645 = vmatpush1.xpose.msra.mxu0 0.0
    %646 = vmatprep.subr.mxu0 0.0
    %647 = vmatpush1.xpose.msra.mxu0 0.0
    %648 = vmatprep.subr.mxu0 0.0
    %649 = vmatpush1.xpose.msra.mxu0 0.0
    %650 = vmatprep.subr.mxu0 0.0
    %651 = vmatpush1.xpose.msra.mxu0 0.0
    %652 = vmatprep.subr.mxu0 0.0
    %653 = vmatpush1.xpose.msra.mxu0 0.0
    %654 = vmatprep.subr.mxu0 0.0
    %655 = vmatpush1.xpose.msra.mxu0 0.0
    %656 = vmatprep.mubr.f32.mxu0 0.0
    %657 = vmatmul.mubr.f32.gmra.mrb[0].mxu0 %v588
    %v658 = vpop.f32.mrb[0].mxu0
    %v659 = vadd.f32 0.0, %v658
    %v660 = vpop.f32.mrb[0].mxu0
    %661 = vdwg.mxu0
    %v662 = vmul.f32 %v581, 0.5
    %v663 = vmul.f32 %v659, 0.5
    %v664 = vsel %vm328, %v662, -inf
    %v665 = vsel %vm328, %v663, -inf
    %v666 = vsel %vm331, %v664, -inf
    %667 = vmax.xlane.f32.xlu0 %v666
    %v668 = vpop.xlane.xlu0 %667
    %v669 = vsel %vm331, %v665, -inf
    %670 = vmax.xlane.f32.xlu0 %v669
    %v671 = vpop.xlane.xlu0 %670
    %v672 = vsub.f32 %v664, %v668
    %v673 = vsub.f32 %v665, %v671
    %v674 = vmul.f32 %v672, 1.442695
    %v675 = vpow.pop %v674
    %v676 = vmul.f32 %v673, 1.442695
    %v677 = vpow.pop %v676
    %v678 = vsel %vm331, %v675, 0.0
    %679 = vadd.xlane.f32.xlu0 %v678
    %v680 = vpop.xlane.xlu0 %679
    %v681 = vsel %vm331, %v677, 0.0
    %682 = vadd.xlane.f32.xlu0 %v681
    %v683 = vpop.xlane.xlu0 %682
    %v684 = vrcp.pop %v680
    %v685 = vmul.f32 %v675, %v684
    %v686 = vrcp.pop %v683
    %v687 = vmul.f32 %v677, %v686
    %688 = vrot.lane.b32.xlu0 %v162, 92
    %v689 = vpop.permute.xlu0 %688
    %v692 = vsel %vm331, %v685, 0
    %694 = vmatprep.subr.mxu0 0.0
    %695 = vmatpush1.msra.mxu0 %v689
    %696 = vmatprep.subr.mxu0 0.0
    %697 = vmatpush1.msra.mxu0 0.0
    %698 = vmatprep.subr.mxu0 0.0
    %699 = vmatpush1.msra.mxu0 0.0
    %700 = vmatprep.subr.mxu0 0.0
    %701 = vmatpush1.msra.mxu0 0.0
    %702 = vmatprep.subr.mxu0 0.0
    %703 = vmatpush1.msra.mxu0 0.0
    %704 = vmatprep.subr.mxu0 0.0
    %705 = vmatpush1.msra.mxu0 0.0
    %706 = vmatprep.subr.mxu0 0.0
    %707 = vmatpush1.msra.mxu0 0.0
    %708 = vmatprep.subr.mxu0 0.0
    %709 = vmatpush1.msra.mxu0 0.0
    %710 = vmatprep.subr.mxu0 0.0
    %711 = vmatpush1.msra.mxu0 0.0
    %712 = vmatprep.subr.mxu0 0.0
    %713 = vmatpush1.msra.mxu0 0.0
    %714 = vmatprep.subr.mxu0 0.0
    %715 = vmatpush1.msra.mxu0 0.0
    %716 = vmatprep.subr.mxu0 0.0
    %717 = vmatpush1.msra.mxu0 0.0
    %718 = vmatprep.subr.mxu0 0.0
    %719 = vmatpush1.msra.mxu0 0.0
    %720 = vmatprep.subr.mxu0 0.0
    %721 = vmatpush1.msra.mxu0 0.0
    %722 = vmatprep.subr.mxu0 0.0
    %723 = vmatpush1.msra.mxu0 0.0
    %724 = vmatprep.subr.mxu0 0.0
    %725 = vmatpush1.msra.mxu0 0.0
    %726 = vmatprep.subr.mxu0 0.0
    %727 = vmatpush1.msra.mxu0 0.0
    %728 = vmatprep.subr.mxu0 0.0
    %729 = vmatpush1.msra.mxu0 0.0
    %730 = vmatprep.subr.mxu0 0.0
    %731 = vmatpush1.msra.mxu0 0.0
    %732 = vmatprep.subr.mxu0 0.0
    %733 = vmatpush1.msra.mxu0 0.0
    %734 = vmatprep.subr.mxu0 0.0
    %735 = vmatpush1.msra.mxu0 0.0
    %736 = vmatprep.subr.mxu0 0.0
    %737 = vmatpush1.msra.mxu0 0.0
    %738 = vmatprep.subr.mxu0 0.0
    %739 = vmatpush1.msra.mxu0 0.0
    %740 = vmatprep.subr.mxu0 0.0
    %741 = vmatpush1.msra.mxu0 0.0
    %742 = vmatprep.subr.mxu0 0.0
    %743 = vmatpush1.msra.mxu0 0.0
    %744 = vmatprep.subr.mxu0 0.0
    %745 = vmatpush1.msra.mxu0 0.0
    %746 = vmatprep.subr.mxu0 0.0
    %747 = vmatpush1.msra.mxu0 0.0
    %748 = vmatprep.subr.mxu0 0.0
    %749 = vmatpush1.msra.mxu0 0.0
    %750 = vmatprep.subr.mxu0 0.0
    %751 = vmatpush1.msra.mxu0 0.0
    %752 = vmatprep.subr.mxu0 0.0
    %753 = vmatpush1.msra.mxu0 0.0
    %754 = vmatprep.subr.mxu0 0.0
    %755 = vmatpush1.msra.mxu0 0.0
    %756 = vmatprep.subr.mxu0 0.0
    %757 = vmatpush1.msra.mxu0 0.0
    %758 = vmatprep.mubr.f32.mxu0 0.0
    %759 = vmatmul.mubr.f32.gmra.mrb[0].mxu0 %v692
    %v760 = vpop.f32.mrb[0].mxu0
    %v761 = vadd.f32 0.0, %v760
    %v762 = vpop.f32.mrb[0].mxu0
    %763 = vdwg.mxu0
    %764 = vrot.lane.b32.xlu0 %v167, 92
    %v765 = vpop.permute.xlu0 %764
    %v768 = vsel %vm331, %v687, 0
    %770 = vmatprep.subr.mxu0 0.0
    %771 = vmatpush1.msra.mxu0 %v765
    %772 = vmatprep.subr.mxu0 0.0
    %773 = vmatpush1.msra.mxu0 0.0
    %774 = vmatprep.subr.mxu0 0.0
    %775 = vmatpush1.msra.mxu0 0.0
    %776 = vmatprep.subr.mxu0 0.0
    %777 = vmatpush1.msra.mxu0 0.0
    %778 = vmatprep.subr.mxu0 0.0
    %779 = vmatpush1.msra.mxu0 0.0
    %780 = vmatprep.subr.mxu0 0.0
    %781 = vmatpush1.msra.mxu0 0.0
    %782 = vmatprep.subr.mxu0 0.0
    %783 = vmatpush1.msra.mxu0 0.0
    %784 = vmatprep.subr.mxu0 0.0
    %785 = vmatpush1.msra.mxu0 0.0
    %786 = vmatprep.subr.mxu0 0.0
    %787 = vmatpush1.msra.mxu0 0.0
    %788 = vmatprep.subr.mxu0 0.0
    %789 = vmatpush1.msra.mxu0 0.0
    %790 = vmatprep.subr.mxu0 0.0
    %791 = vmatpush1.msra.mxu0 0.0
    %792 = vmatprep.subr.mxu0 0.0
    %793 = vmatpush1.msra.mxu0 0.0
    %794 = vmatprep.subr.mxu0 0.0
    %795 = vmatpush1.msra.mxu0 0.0
    %796 = vmatprep.subr.mxu0 0.0
    %797 = vmatpush1.msra.mxu0 0.0
    %798 = vmatprep.subr.mxu0 0.0
    %799 = vmatpush1.msra.mxu0 0.0
    %800 = vmatprep.subr.mxu0 0.0
    %801 = vmatpush1.msra.mxu0 0.0
    %802 = vmatprep.subr.mxu0 0.0
    %803 = vmatpush1.msra.mxu0 0.0
    %804 = vmatprep.subr.mxu0 0.0
    %805 = vmatpush1.msra.mxu0 0.0
    %806 = vmatprep.subr.mxu0 0.0
    %807 = vmatpush1.msra.mxu0 0.0
    %808 = vmatprep.subr.mxu0 0.0
    %809 = vmatpush1.msra.mxu0 0.0
    %810 = vmatprep.subr.mxu0 0.0
    %811 = vmatpush1.msra.mxu0 0.0
    %812 = vmatprep.subr.mxu0 0.0
    %813 = vmatpush1.msra.mxu0 0.0
    %814 = vmatprep.subr.mxu0 0.0
    %815 = vmatpush1.msra.mxu0 0.0
    %816 = vmatprep.subr.mxu0 0.0
    %817 = vmatpush1.msra.mxu0 0.0
    %818 = vmatprep.subr.mxu0 0.0
    %819 = vmatpush1.msra.mxu0 0.0
    %820 = vmatprep.subr.mxu0 0.0
    %821 = vmatpush1.msra.mxu0 0.0
    %822 = vmatprep.subr.mxu0 0.0
    %823 = vmatpush1.msra.mxu0 0.0
    %824 = vmatprep.subr.mxu0 0.0
    %825 = vmatpush1.msra.mxu0 0.0
    %826 = vmatprep.subr.mxu0 0.0
    %827 = vmatpush1.msra.mxu0 0.0
    %828 = vmatprep.subr.mxu0 0.0
    %829 = vmatpush1.msra.mxu0 0.0
    %830 = vmatprep.subr.mxu0 0.0
    %831 = vmatpush1.msra.mxu0 0.0
    %832 = vmatprep.subr.mxu0 0.0
    %833 = vmatpush1.msra.mxu0 0.0
    %834 = vmatprep.mubr.f32.mxu0 0.0
    %835 = vmatmul.mubr.f32.gmra.mrb[0].mxu0 %v768
    %v836 = vpop.f32.mrb[0].mxu0
    %v837 = vadd.f32 0.0, %v836
    %v838 = vpop.f32.mrb[0].mxu0
    %839 = vdwg.mxu0
    %840 = vrot.lane.b32.xlu0 %v162, 120
    %v841 = vpop.permute.xlu0 %840
    %842 = vrot.lane.b32.xlu0 %v162, 104
    %v843 = vpop.permute.xlu0 %842
    %v844 = vsel %vm173, %v841, 0
    %v846 = vsel %vm173, %v843, 0
    %848 = vmatprep.subr.mxu0 0.0
    %849 = vmatpush1.xpose.msra.mxu0 %v846
    %850 = vmatprep.subr.mxu0 0.0
    %851 = vmatpush1.xpose.msra.mxu0 0.0
    %852 = vmatprep.subr.mxu0 0.0
    %853 = vmatpush1.xpose.msra.mxu0 0.0
    %854 = vmatprep.subr.mxu0 0.0
    %855 = vmatpush1.xpose.msra.mxu0 0.0
    %856 = vmatprep.subr.mxu0 0.0
    %857 = vmatpush1.xpose.msra.mxu0 0.0
    %858 = vmatprep.subr.mxu0 0.0
    %859 = vmatpush1.xpose.msra.mxu0 0.0
    %860 = vmatprep.subr.mxu0 0.0
    %861 = vmatpush1.xpose.msra.mxu0 0.0
    %862 = vmatprep.subr.mxu0 0.0
    %863 = vmatpush1.xpose.msra.mxu0 0.0
    %864 = vmatprep.subr.mxu0 0.0
    %865 = vmatpush1.xpose.msra.mxu0 0.0
    %866 = vmatprep.subr.mxu0 0.0
    %867 = vmatpush1.xpose.msra.mxu0 0.0
    %868 = vmatprep.subr.mxu0 0.0
    %869 = vmatpush1.xpose.msra.mxu0 0.0
    %870 = vmatprep.subr.mxu0 0.0
    %871 = vmatpush1.xpose.msra.mxu0 0.0
    %872 = vmatprep.subr.mxu0 0.0
    %873 = vmatpush1.xpose.msra.mxu0 0.0
    %874 = vmatprep.subr.mxu0 0.0
    %875 = vmatpush1.xpose.msra.mxu0 0.0
    %876 = vmatprep.subr.mxu0 0.0
    %877 = vmatpush1.xpose.msra.mxu0 0.0
    %878 = vmatprep.subr.mxu0 0.0
    %879 = vmatpush1.xpose.msra.mxu0 0.0
    %880 = vmatprep.subr.mxu0 0.0
    %881 = vmatpush1.xpose.msra.mxu0 0.0
    %882 = vmatprep.subr.mxu0 0.0
    %883 = vmatpush1.xpose.msra.mxu0 0.0
    %884 = vmatprep.subr.mxu0 0.0
    %885 = vmatpush1.xpose.msra.mxu0 0.0
    %886 = vmatprep.subr.mxu0 0.0
    %887 = vmatpush1.xpose.msra.mxu0 0.0
    %888 = vmatprep.subr.mxu0 0.0
    %889 = vmatpush1.xpose.msra.mxu0 0.0
    %890 = vmatprep.subr.mxu0 0.0
    %891 = vmatpush1.xpose.msra.mxu0 0.0
    %892 = vmatprep.subr.mxu0 0.0
    %893 = vmatpush1.xpose.msra.mxu0 0.0
    %894 = vmatprep.subr.mxu0 0.0
    %895 = vmatpush1.xpose.msra.mxu0 0.0
    %896 = vmatprep.subr.mxu0 0.0
    %897 = vmatpush1.xpose.msra.mxu0 0.0
    %898 = vmatprep.subr.mxu0 0.0
    %899 = vmatpush1.xpose.msra.mxu0 0.0
    %900 = vmatprep.subr.mxu0 0.0
    %901 = vmatpush1.xpose.msra.mxu0 0.0
    %902 = vmatprep.subr.mxu0 0.0
    %903 = vmatpush1.xpose.msra.mxu0 0.0
    %904 = vmatprep.subr.mxu0 0.0
    %905 = vmatpush1.xpose.msra.mxu0 0.0
    %906 = vmatprep.subr.mxu0 0.0
    %907 = vmatpush1.xpose.msra.mxu0 0.0
    %908 = vmatprep.subr.mxu0 0.0
    %909 = vmatpush1.xpose.msra.mxu0 0.0
    %910 = vmatprep.subr.mxu0 0.0
    %911 = vmatpush1.xpose.msra.mxu0 0.0
    %912 = vmatprep.mubr.f32.mxu0 0.0
    %913 = vmatmul.mubr.f32.gmra.mrb[0].mxu0 %v844
    %v914 = vpop.f32.mrb[0].mxu0
    %v915 = vadd.f32 0.0, %v914
    %v916 = vpop.f32.mrb[0].mxu0
    %917 = vdwg.mxu0
    %918 = vrot.lane.b32.xlu0 %v167, 120
    %v919 = vpop.permute.xlu0 %918
    %920 = vrot.lane.b32.xlu0 %v167, 104
    %v921 = vpop.permute.xlu0 %920
    %v922 = vsel %vm173, %v919, 0
    %v924 = vsel %vm173, %v921, 0
    %926 = vmatprep.subr.mxu0 0.0
    %927 = vmatpush1.xpose.msra.mxu0 %v924
    %928 = vmatprep.subr.mxu0 0.0
    %929 = vmatpush1.xpose.msra.mxu0 0.0
    %930 = vmatprep.subr.mxu0 0.0
    %931 = vmatpush1.xpose.msra.mxu0 0.0
    %932 = vmatprep.subr.mxu0 0.0
    %933 = vmatpush1.xpose.msra.mxu0 0.0
    %934 = vmatprep.subr.mxu0 0.0
    %935 = vmatpush1.xpose.msra.mxu0 0.0
    %936 = vmatprep.subr.mxu0 0.0
    %937 = vmatpush1.xpose.msra.mxu0 0.0
    %938 = vmatprep.subr.mxu0 0.0
    %939 = vmatpush1.xpose.msra.mxu0 0.0
    %940 = vmatprep.subr.mxu0 0.0
    %941 = vmatpush1.xpose.msra.mxu0 0.0
    %942 = vmatprep.subr.mxu0 0.0
    %943 = vmatpush1.xpose.msra.mxu0 0.0
    %944 = vmatprep.subr.mxu0 0.0
    %945 = vmatpush1.xpose.msra.mxu0 0.0
    %946 = vmatprep.subr.mxu0 0.0
    %947 = vmatpush1.xpose.msra.mxu0 0.0
    %948 = vmatprep.subr.mxu0 0.0
    %949 = vmatpush1.xpose.msra.mxu0 0.0
    %950 = vmatprep.subr.mxu0 0.0
    %951 = vmatpush1.xpose.msra.mxu0 0.0
    %952 = vmatprep.subr.mxu0 0.0
    %953 = vmatpush1.xpose.msra.mxu0 0.0
    %954 = vmatprep.subr.mxu0 0.0
    %955 = vmatpush1.xpose.msra.mxu0 0.0
    %956 = vmatprep.subr.mxu0 0.0
    %957 = vmatpush1.xpose.msra.mxu0 0.0
    %958 = vmatprep.subr.mxu0 0.0
    %959 = vmatpush1.xpose.msra.mxu0 0.0
    %960 = vmatprep.subr.mxu0 0.0
    %961 = vmatpush1.xpose.msra.mxu0 0.0
    %962 = vmatprep.subr.mxu0 0.0
    %963 = vmatpush1.xpose.msra.mxu0 0.0
    %964 = vmatprep.subr.mxu0 0.0
    %965 = vmatpush1.xpose.msra.mxu0 0.0
    %966 = vmatprep.subr.mxu0 0.0
    %967 = vmatpush1.xpose.msra.mxu0 0.0
    %968 = vmatprep.subr.mxu0 0.0
    %969 = vmatpush1.xpose.msra.mxu0 0.0
    %970 = vmatprep.subr.mxu0 0.0
    %971 = vmatpush1.xpose.msra.mxu0 0.0
    %972 = vmatprep.subr.mxu0 0.0
    %973 = vmatpush1.xpose.msra.mxu0 0.0
    %974 = vmatprep.subr.mxu0 0.0
    %975 = vmatpush1.xpose.msra.mxu0 0.0
    %976 = vmatprep.subr.mxu0 0.0
    %977 = vmatpush1.xpose.msra.mxu0 0.0
    %978 = vmatprep.subr.mxu0 0.0
    %979 = vmatpush1.xpose.msra.mxu0 0.0
    %980 = vmatprep.subr.mxu0 0.0
    %981 = vmatpush1.xpose.msra.mxu0 0.0
    %982 = vmatprep.subr.mxu0 0.0
    %983 = vmatpush1.xpose.msra.mxu0 0.0
    %984 = vmatprep.subr.mxu0 0.0
    %985 = vmatpush1.xpose.msra.mxu0 0.0
    %986 = vmatprep.subr.mxu0 0.0
    %987 = vmatpush1.xpose.msra.mxu0 0.0
    %988 = vmatprep.subr.mxu0 0.0
    %989 = vmatpush1.xpose.msra.mxu0 0.0
    %990 = vmatprep.mubr.f32.mxu0 0.0
    %991 = vmatmul.mubr.f32.gmra.mrb[0].mxu0 %v922
    %v992 = vpop.f32.mrb[0].mxu0
    %v993 = vadd.f32 0.0, %v992
    %v994 = vpop.f32.mrb[0].mxu0
    %995 = vdwg.mxu0
    %v996 = vmul.f32 %v915, 0.5
    %v997 = vmul.f32 %v993, 0.5
    %v998 = vsel %vm328, %v996, -inf
    %v999 = vsel %vm328, %v997, -inf
    %v1000 = vsel %vm331, %v998, -inf
    %1001 = vmax.xlane.f32.xlu0 %v1000
    %v1002 = vpop.xlane.xlu0 %1001
    %v1003 = vsel %vm331, %v999, -inf
    %1004 = vmax.xlane.f32.xlu0 %v1003
    %v1005 = vpop.xlane.xlu0 %1004
    %v1006 = vsub.f32 %v998, %v1002
    %v1007 = vsub.f32 %v999, %v1005
    %v1008 = vmul.f32 %v1006, 1.442695
    %v1009 = vpow.pop %v1008
    %v1010 = vmul.f32 %v1007, 1.442695
    %v1011 = vpow.pop %v1010
    %v1012 = vsel %vm331, %v1009, 0.0
    %1013 = vadd.xlane.f32.xlu0 %v1012
    %v1014 = vpop.xlane.xlu0 %1013
    %v1015 = vsel %vm331, %v1011, 0.0
    %1016 = vadd.xlane.f32.xlu0 %v1015
    %v1017 = vpop.xlane.xlu0 %1016
    %v1018 = vrcp.pop %v1014
    %v1019 = vmul.f32 %v1009, %v1018
    %v1020 = vrcp.pop %v1017
    %v1021 = vmul.f32 %v1011, %v1020
    %1022 = vrot.lane.b32.xlu0 %v162, 88
    %v1023 = vpop.permute.xlu0 %1022
    %v1026 = vsel %vm331, %v1019, 0
    %1028 = vmatprep.subr.mxu0 0.0
    %1029 = vmatpush1.msra.mxu0 %v1023
    %1030 = vmatprep.subr.mxu0 0.0
    %1031 = vmatpush1.msra.mxu0 0.0
    %1032 = vmatprep.subr.mxu0 0.0
    %1033 = vmatpush1.msra.mxu0 0.0
    %1034 = vmatprep.subr.mxu0 0.0
    %1035 = vmatpush1.msra.mxu0 0.0
    %1036 = vmatprep.subr.mxu0 0.0
    %1037 = vmatpush1.msra.mxu0 0.0
    %1038 = vmatprep.subr.mxu0 0.0
    %1039 = vmatpush1.msra.mxu0 0.0
    %1040 = vmatprep.subr.mxu0 0.0
    %1041 = vmatpush1.msra.mxu0 0.0
    %1042 = vmatprep.subr.mxu0 0.0
    %1043 = vmatpush1.msra.mxu0 0.0
    %1044 = vmatprep.subr.mxu0 0.0
    %1045 = vmatpush1.msra.mxu0 0.0
    %1046 = vmatprep.subr.mxu0 0.0
    %1047 = vmatpush1.msra.mxu0 0.0
    %1048 = vmatprep.subr.mxu0 0.0
    %1049 = vmatpush1.msra.mxu0 0.0
    %1050 = vmatprep.subr.mxu0 0.0
    %1051 = vmatpush1.msra.mxu0 0.0
    %1052 = vmatprep.subr.mxu0 0.0
    %1053 = vmatpush1.msra.mxu0 0.0
    %1054 = vmatprep.subr.mxu0 0.0
    %1055 = vmatpush1.msra.mxu0 0.0
    %1056 = vmatprep.subr.mxu0 0.0
    %1057 = vmatpush1.msra.mxu0 0.0
    %1058 = vmatprep.subr.mxu0 0.0
    %1059 = vmatpush1.msra.mxu0 0.0
    %1060 = vmatprep.subr.mxu0 0.0
    %1061 = vmatpush1.msra.mxu0 0.0
    %1062 = vmatprep.subr.mxu0 0.0
    %1063 = vmatpush1.msra.mxu0 0.0
    %1064 = vmatprep.subr.mxu0 0.0
    %1065 = vmatpush1.msra.mxu0 0.0
    %1066 = vmatprep.subr.mxu0 0.0
    %1067 = vmatpush1.msra.mxu0 0.0
    %1068 = vmatprep.subr.mxu0 0.0
    %1069 = vmatpush1.msra.mxu0 0.0
    %1070 = vmatprep.subr.mxu0 0.0
    %1071 = vmatpush1.msra.mxu0 0.0
    %1072 = vmatprep.subr.mxu0 0.0
    %1073 = vmatpush1.msra.mxu0 0.0
    %1074 = vmatprep.subr.mxu0 0.0
    %1075 = vmatpush1.msra.mxu0 0.0
    %1076 = vmatprep.subr.mxu0 0.0
    %1077 = vmatpush1.msra.mxu0 0.0
    %1078 = vmatprep.subr.mxu0 0.0
    %1079 = vmatpush1.msra.mxu0 0.0
    %1080 = vmatprep.subr.mxu0 0.0
    %1081 = vmatpush1.msra.mxu0 0.0
    %1082 = vmatprep.subr.mxu0 0.0
    %1083 = vmatpush1.msra.mxu0 0.0
    %1084 = vmatprep.subr.mxu0 0.0
    %1085 = vmatpush1.msra.mxu0 0.0
    %1086 = vmatprep.subr.mxu0 0.0
    %1087 = vmatpush1.msra.mxu0 0.0
    %1088 = vmatprep.subr.mxu0 0.0
    %1089 = vmatpush1.msra.mxu0 0.0
    %1090 = vmatprep.subr.mxu0 0.0
    %1091 = vmatpush1.msra.mxu0 0.0
    %1092 = vmatprep.mubr.f32.mxu0 0.0
    %1093 = vmatmul.mubr.f32.gmra.mrb[0].mxu0 %v1026
    %v1094 = vpop.f32.mrb[0].mxu0
    %v1095 = vadd.f32 0.0, %v1094
    %v1096 = vpop.f32.mrb[0].mxu0
    %1097 = vdwg.mxu0
    %1098 = vrot.lane.b32.xlu0 %v167, 88
    %v1099 = vpop.permute.xlu0 %1098
    %v1102 = vsel %vm331, %v1021, 0
    %1104 = vmatprep.subr.mxu0 0.0
    %1105 = vmatpush1.msra.mxu0 %v1099
    %1106 = vmatprep.subr.mxu0 0.0
    %1107 = vmatpush1.msra.mxu0 0.0
    %1108 = vmatprep.subr.mxu0 0.0
    %1109 = vmatpush1.msra.mxu0 0.0
    %1110 = vmatprep.subr.mxu0 0.0
    %1111 = vmatpush1.msra.mxu0 0.0
    %1112 = vmatprep.subr.mxu0 0.0
    %1113 = vmatpush1.msra.mxu0 0.0
    %1114 = vmatprep.subr.mxu0 0.0
    %1115 = vmatpush1.msra.mxu0 0.0
    %1116 = vmatprep.subr.mxu0 0.0
    %1117 = vmatpush1.msra.mxu0 0.0
    %1118 = vmatprep.subr.mxu0 0.0
    %1119 = vmatpush1.msra.mxu0 0.0
    %1120 = vmatprep.subr.mxu0 0.0
    %1121 = vmatpush1.msra.mxu0 0.0
    %1122 = vmatprep.subr.mxu0 0.0
    %1123 = vmatpush1.msra.mxu0 0.0
    %1124 = vmatprep.subr.mxu0 0.0
    %1125 = vmatpush1.msra.mxu0 0.0
    %1126 = vmatprep.subr.mxu0 0.0
    %1127 = vmatpush1.msra.mxu0 0.0
    %1128 = vmatprep.subr.mxu0 0.0
    %1129 = vmatpush1.msra.mxu0 0.0
    %1130 = vmatprep.subr.mxu0 0.0
    %1131 = vmatpush1.msra.mxu0 0.0
    %1132 = vmatprep.subr.mxu0 0.0
    %1133 = vmatpush1.msra.mxu0 0.0
    %1134 = vmatprep.subr.mxu0 0.0
    %1135 = vmatpush1.msra.mxu0 0.0
    %1136 = vmatprep.subr.mxu0 0.0
    %1137 = vmatpush1.msra.mxu0 0.0
    %1138 = vmatprep.subr.mxu0 0.0
    %1139 = vmatpush1.msra.mxu0 0.0
    %1140 = vmatprep.subr.mxu0 0.0
    %1141 = vmatpush1.msra.mxu0 0.0
    %1142 = vmatprep.subr.mxu0 0.0
    %1143 = vmatpush1.msra.mxu0 0.0
    %1144 = vmatprep.subr.mxu0 0.0
    %1145 = vmatpush1.msra.mxu0 0.0
    %1146 = vmatprep.subr.mxu0 0.0
    %1147 = vmatpush1.msra.mxu0 0.0
    %1148 = vmatprep.subr.mxu0 0.0
    %1149 = vmatpush1.msra.mxu0 0.0
    %1150 = vmatprep.subr.mxu0 0.0
    %1151 = vmatpush1.msra.mxu0 0.0
    %1152 = vmatprep.subr.mxu0 0.0
    %1153 = vmatpush1.msra.mxu0 0.0
    %1154 = vmatprep.subr.mxu0 0.0
    %1155 = vmatpush1.msra.mxu0 0.0
    %1156 = vmatprep.subr.mxu0 0.0
    %1157 = vmatpush1.msra.mxu0 0.0
    %1158 = vmatprep.subr.mxu0 0.0
    %1159 = vmatpush1.msra.mxu0 0.0
    %1160 = vmatprep.subr.mxu0 0.0
    %1161 = vmatpush1.msra.mxu0 0.0
    %1162 = vmatprep.subr.mxu0 0.0
    %1163 = vmatpush1.msra.mxu0 0.0
    %1164 = vmatprep.subr.mxu0 0.0
    %1165 = vmatpush1.msra.mxu0 0.0
    %1166 = vmatprep.subr.mxu0 0.0
    %1167 = vmatpush1.msra.mxu0 0.0
    %1168 = vmatprep.mubr.f32.mxu0 0.0
    %1169 = vmatmul.mubr.f32.gmra.mrb[0].mxu0 %v1102
    %v1170 = vpop.f32.mrb[0].mxu0
    %v1171 = vadd.f32 0.0, %v1170
    %v1172 = vpop.f32.mrb[0].mxu0
    %1173 = vdwg.mxu0
    %1174 = vrot.lane.b32.xlu0 %v162, 116
    %v1175 = vpop.permute.xlu0 %1174
    %1176 = vrot.lane.b32.xlu0 %v162, 100
    %v1177 = vpop.permute.xlu0 %1176
    %v1178 = vsel %vm173, %v1175, 0
    %v1180 = vsel %vm173, %v1177, 0
    %1182 = vmatprep.subr.mxu0 0.0
    %1183 = vmatpush1.xpose.msra.mxu0 %v1180
    %1184 = vmatprep.subr.mxu0 0.0
    %1185 = vmatpush1.xpose.msra.mxu0 0.0
    %1186 = vmatprep.subr.mxu0 0.0
    %1187 = vmatpush1.xpose.msra.mxu0 0.0
    %1188 = vmatprep.subr.mxu0 0.0
    %1189 = vmatpush1.xpose.msra.mxu0 0.0
    %1190 = vmatprep.subr.mxu0 0.0
    %1191 = vmatpush1.xpose.msra.mxu0 0.0
    %1192 = vmatprep.subr.mxu0 0.0
    %1193 = vmatpush1.xpose.msra.mxu0 0.0
    %1194 = vmatprep.subr.mxu0 0.0
    %1195 = vmatpush1.xpose.msra.mxu0 0.0
    %1196 = vmatprep.subr.mxu0 0.0
    %1197 = vmatpush1.xpose.msra.mxu0 0.0
    %1198 = vmatprep.subr.mxu0 0.0
    %1199 = vmatpush1.xpose.msra.mxu0 0.0
    %1200 = vmatprep.subr.mxu0 0.0
    %1201 = vmatpush1.xpose.msra.mxu0 0.0
    %1202 = vmatprep.subr.mxu0 0.0
    %1203 = vmatpush1.xpose.msra.mxu0 0.0
    %1204 = vmatprep.subr.mxu0 0.0
    %1205 = vmatpush1.xpose.msra.mxu0 0.0
    %1206 = vmatprep.subr.mxu0 0.0
    %1207 = vmatpush1.xpose.msra.mxu0 0.0
    %1208 = vmatprep.subr.mxu0 0.0
    %1209 = vmatpush1.xpose.msra.mxu0 0.0
    %1210 = vmatprep.subr.mxu0 0.0
    %1211 = vmatpush1.xpose.msra.mxu0 0.0
    %1212 = vmatprep.subr.mxu0 0.0
    %1213 = vmatpush1.xpose.msra.mxu0 0.0
    %1214 = vmatprep.subr.mxu0 0.0
    %1215 = vmatpush1.xpose.msra.mxu0 0.0
    %1216 = vmatprep.subr.mxu0 0.0
    %1217 = vmatpush1.xpose.msra.mxu0 0.0
    %1218 = vmatprep.subr.mxu0 0.0
    %1219 = vmatpush1.xpose.msra.mxu0 0.0
    %1220 = vmatprep.subr.mxu0 0.0
    %1221 = vmatpush1.xpose.msra.mxu0 0.0
    %1222 = vmatprep.subr.mxu0 0.0
    %1223 = vmatpush1.xpose.msra.mxu0 0.0
    %1224 = vmatprep.subr.mxu0 0.0
    %1225 = vmatpush1.xpose.msra.mxu0 0.0
    %1226 = vmatprep.subr.mxu0 0.0
    %1227 = vmatpush1.xpose.msra.mxu0 0.0
    %1228 = vmatprep.subr.mxu0 0.0
    %1229 = vmatpush1.xpose.msra.mxu0 0.0
    %1230 = vmatprep.subr.mxu0 0.0
    %1231 = vmatpush1.xpose.msra.mxu0 0.0
    %1232 = vmatprep.subr.mxu0 0.0
    %1233 = vmatpush1.xpose.msra.mxu0 0.0
    %1234 = vmatprep.subr.mxu0 0.0
    %1235 = vmatpush1.xpose.msra.mxu0 0.0
    %1236 = vmatprep.subr.mxu0 0.0
    %1237 = vmatpush1.xpose.msra.mxu0 0.0
    %1238 = vmatprep.subr.mxu0 0.0
    %1239 = vmatpush1.xpose.msra.mxu0 0.0
    %1240 = vmatprep.subr.mxu0 0.0
    %1241 = vmatpush1.xpose.msra.mxu0 0.0
    %1242 = vmatprep.subr.mxu0 0.0
    %1243 = vmatpush1.xpose.msra.mxu0 0.0
    %1244 = vmatprep.subr.mxu0 0.0
    %1245 = vmatpush1.xpose.msra.mxu0 0.0
    %1246 = vmatprep.mubr.f32.mxu0 0.0
    %1247 = vmatmul.mubr.f32.gmra.mrb[0].mxu0 %v1178
    %v1248 = vpop.f32.mrb[0].mxu0
    %v1249 = vadd.f32 0.0, %v1248
    %v1250 = vpop.f32.mrb[0].mxu0
    %1251 = vdwg.mxu0
    %1252 = vrot.lane.b32.xlu0 %v167, 116
    %v1253 = vpop.permute.xlu0 %1252
    %1254 = vrot.lane.b32.xlu0 %v167, 100
    %v1255 = vpop.permute.xlu0 %1254
    %v1256 = vsel %vm173, %v1253, 0
    %v1258 = vsel %vm173, %v1255, 0
    %1260 = vmatprep.subr.mxu0 0.0
    %1261 = vmatpush1.xpose.msra.mxu0 %v1258
    %1262 = vmatprep.subr.mxu0 0.0
    %1263 = vmatpush1.xpose.msra.mxu0 0.0
    %1264 = vmatprep.subr.mxu0 0.0
    %1265 = vmatpush1.xpose.msra.mxu0 0.0
    %1266 = vmatprep.subr.mxu0 0.0
    %1267 = vmatpush1.xpose.msra.mxu0 0.0
    %1268 = vmatprep.subr.mxu0 0.0
    %1269 = vmatpush1.xpose.msra.mxu0 0.0
    %1270 = vmatprep.subr.mxu0 0.0
    %1271 = vmatpush1.xpose.msra.mxu0 0.0
    %1272 = vmatprep.subr.mxu0 0.0
    %1273 = vmatpush1.xpose.msra.mxu0 0.0
    %1274 = vmatprep.subr.mxu0 0.0
    %1275 = vmatpush1.xpose.msra.mxu0 0.0
    %1276 = vmatprep.subr.mxu0 0.0
    %1277 = vmatpush1.xpose.msra.mxu0 0.0
    %1278 = vmatprep.subr.mxu0 0.0
    %1279 = vmatpush1.xpose.msra.mxu0 0.0
    %1280 = vmatprep.subr.mxu0 0.0
    %1281 = vmatpush1.xpose.msra.mxu0 0.0
    %1282 = vmatprep.subr.mxu0 0.0
    %1283 = vmatpush1.xpose.msra.mxu0 0.0
    %1284 = vmatprep.subr.mxu0 0.0
    %1285 = vmatpush1.xpose.msra.mxu0 0.0
    %1286 = vmatprep.subr.mxu0 0.0
    %1287 = vmatpush1.xpose.msra.mxu0 0.0
    %1288 = vmatprep.subr.mxu0 0.0
    %1289 = vmatpush1.xpose.msra.mxu0 0.0
    %1290 = vmatprep.subr.mxu0 0.0
    %1291 = vmatpush1.xpose.msra.mxu0 0.0
    %1292 = vmatprep.subr.mxu0 0.0
    %1293 = vmatpush1.xpose.msra.mxu0 0.0
    %1294 = vmatprep.subr.mxu0 0.0
    %1295 = vmatpush1.xpose.msra.mxu0 0.0
    %1296 = vmatprep.subr.mxu0 0.0
    %1297 = vmatpush1.xpose.msra.mxu0 0.0
    %1298 = vmatprep.subr.mxu0 0.0
    %1299 = vmatpush1.xpose.msra.mxu0 0.0
    %1300 = vmatprep.subr.mxu0 0.0
    %1301 = vmatpush1.xpose.msra.mxu0 0.0
    %1302 = vmatprep.subr.mxu0 0.0
    %1303 = vmatpush1.xpose.msra.mxu0 0.0
    %1304 = vmatprep.subr.mxu0 0.0
    %1305 = vmatpush1.xpose.msra.mxu0 0.0
    %1306 = vmatprep.subr.mxu0 0.0
    %1307 = vmatpush1.xpose.msra.mxu0 0.0
    %1308 = vmatprep.subr.mxu0 0.0
    %1309 = vmatpush1.xpose.msra.mxu0 0.0
    %1310 = vmatprep.subr.mxu0 0.0
    %1311 = vmatpush1.xpose.msra.mxu0 0.0
    %1312 = vmatprep.subr.mxu0 0.0
    %1313 = vmatpush1.xpose.msra.mxu0 0.0
    %1314 = vmatprep.subr.mxu0 0.0
    %1315 = vmatpush1.xpose.msra.mxu0 0.0
    %1316 = vmatprep.subr.mxu0 0.0
    %1317 = vmatpush1.xpose.msra.mxu0 0.0
    %1318 = vmatprep.subr.mxu0 0.0
    %1319 = vmatpush1.xpose.msra.mxu0 0.0
    %1320 = vmatprep.subr.mxu0 0.0
    %1321 = vmatpush1.xpose.msra.mxu0 0.0
    %1322 = vmatprep.subr.mxu0 0.0
    %1323 = vmatpush1.xpose.msra.mxu0 0.0
    %1324 = vmatprep.mubr.f32.mxu0 0.0
    %1325 = vmatmul.mubr.f32.gmra.mrb[0].mxu0 %v1256
    %v1326 = vpop.f32.mrb[0].mxu0
    %v1327 = vadd.f32 0.0, %v1326
    %v1328 = vpop.f32.mrb[0].mxu0
    %1329 = vdwg.mxu0
    %v1330 = vmul.f32 %v1249, 0.5
    %v1331 = vmul.f32 %v1327, 0.5
    %v1332 = vsel %vm328, %v1330, -inf
    %v1333 = vsel %vm328, %v1331, -inf
    %v1334 = vsel %vm331, %v1332, -inf
    %1335 = vmax.xlane.f32.xlu0 %v1334
    %v1336 = vpop.xlane.xlu0 %1335
    %v1337 = vsel %vm331, %v1333, -inf
    %1338 = vmax.xlane.f32.xlu0 %v1337
    %v1339 = vpop.xlane.xlu0 %1338
    %v1340 = vsub.f32 %v1332, %v1336
    %v1341 = vsub.f32 %v1333, %v1339
    %v1342 = vmul.f32 %v1340, 1.442695
    %v1343 = vpow.pop %v1342
    %v1344 = vmul.f32 %v1341, 1.442695
    %v1345 = vpow.pop %v1344
    %v1346 = vsel %vm331, %v1343, 0.0
    %1347 = vadd.xlane.f32.xlu0 %v1346
    %v1348 = vpop.xlane.xlu0 %1347
    %v1349 = vsel %vm331, %v1345, 0.0
    %1350 = vadd.xlane.f32.xlu0 %v1349
    %v1351 = vpop.xlane.xlu0 %1350
    %v1352 = vrcp.pop %v1348
    %v1353 = vmul.f32 %v1343, %v1352
    %v1354 = vrcp.pop %v1351
    %v1355 = vmul.f32 %v1345, %v1354
    %1356 = vrot.lane.b32.xlu0 %v162, 84
    %v1357 = vpop.permute.xlu0 %1356
    %v1360 = vsel %vm331, %v1353, 0
    %1362 = vmatprep.subr.mxu0 0.0
    %1363 = vmatpush1.msra.mxu0 %v1357
    %1364 = vmatprep.subr.mxu0 0.0
    %1365 = vmatpush1.msra.mxu0 0.0
    %1366 = vmatprep.subr.mxu0 0.0
    %1367 = vmatpush1.msra.mxu0 0.0
    %1368 = vmatprep.subr.mxu0 0.0
    %1369 = vmatpush1.msra.mxu0 0.0
    %1370 = vmatprep.subr.mxu0 0.0
    %1371 = vmatpush1.msra.mxu0 0.0
    %1372 = vmatprep.subr.mxu0 0.0
    %1373 = vmatpush1.msra.mxu0 0.0
    %1374 = vmatprep.subr.mxu0 0.0
    %1375 = vmatpush1.msra.mxu0 0.0
    %1376 = vmatprep.subr.mxu0 0.0
    %1377 = vmatpush1.msra.mxu0 0.0
    %1378 = vmatprep.subr.mxu0 0.0
    %1379 = vmatpush1.msra.mxu0 0.0
    %1380 = vmatprep.subr.mxu0 0.0
    %1381 = vmatpush1.msra.mxu0 0.0
    %1382 = vmatprep.subr.mxu0 0.0
    %1383 = vmatpush1.msra.mxu0 0.0
    %1384 = vmatprep.subr.mxu0 0.0
    %1385 = vmatpush1.msra.mxu0 0.0
    %1386 = vmatprep.subr.mxu0 0.0
    %1387 = vmatpush1.msra.mxu0 0.0
    %1388 = vmatprep.subr.mxu0 0.0
    %1389 = vmatpush1.msra.mxu0 0.0
    %1390 = vmatprep.subr.mxu0 0.0
    %1391 = vmatpush1.msra.mxu0 0.0
    %1392 = vmatprep.subr.mxu0 0.0
    %1393 = vmatpush1.msra.mxu0 0.0
    %1394 = vmatprep.subr.mxu0 0.0
    %1395 = vmatpush1.msra.mxu0 0.0
    %1396 = vmatprep.subr.mxu0 0.0
    %1397 = vmatpush1.msra.mxu0 0.0
    %1398 = vmatprep.subr.mxu0 0.0
    %1399 = vmatpush1.msra.mxu0 0.0
    %1400 = vmatprep.subr.mxu0 0.0
    %1401 = vmatpush1.msra.mxu0 0.0
    %1402 = vmatprep.subr.mxu0 0.0
    %1403 = vmatpush1.msra.mxu0 0.0
    %1404 = vmatprep.subr.mxu0 0.0
    %1405 = vmatpush1.msra.mxu0 0.0
    %1406 = vmatprep.subr.mxu0 0.0
    %1407 = vmatpush1.msra.mxu0 0.0
    %1408 = vmatprep.subr.mxu0 0.0
    %1409 = vmatpush1.msra.mxu0 0.0
    %1410 = vmatprep.subr.mxu0 0.0
    %1411 = vmatpush1.msra.mxu0 0.0
    %1412 = vmatprep.subr.mxu0 0.0
    %1413 = vmatpush1.msra.mxu0 0.0
    %1414 = vmatprep.subr.mxu0 0.0
    %1415 = vmatpush1.msra.mxu0 0.0
    %1416 = vmatprep.subr.mxu0 0.0
    %1417 = vmatpush1.msra.mxu0 0.0
    %1418 = vmatprep.subr.mxu0 0.0
    %1419 = vmatpush1.msra.mxu0 0.0
    %1420 = vmatprep.subr.mxu0 0.0
    %1421 = vmatpush1.msra.mxu0 0.0
    %1422 = vmatprep.subr.mxu0 0.0
    %1423 = vmatpush1.msra.mxu0 0.0
    %1424 = vmatprep.subr.mxu0 0.0
    %1425 = vmatpush1.msra.mxu0 0.0
    %1426 = vmatprep.mubr.f32.mxu0 0.0
    %1427 = vmatmul.mubr.f32.gmra.mrb[0].mxu0 %v1360
    %v1428 = vpop.f32.mrb[0].mxu0
    %v1429 = vadd.f32 0.0, %v1428
    %v1430 = vpop.f32.mrb[0].mxu0
    %1431 = vdwg.mxu0
    %1432 = vrot.lane.b32.xlu0 %v167, 84
    %v1433 = vpop.permute.xlu0 %1432
    %v1436 = vsel %vm331, %v1355, 0
    %1438 = vmatprep.subr.mxu0 0.0
    %1439 = vmatpush1.msra.mxu0 %v1433
    %1440 = vmatprep.subr.mxu0 0.0
    %1441 = vmatpush1.msra.mxu0 0.0
    %1442 = vmatprep.subr.mxu0 0.0
    %1443 = vmatpush1.msra.mxu0 0.0
    %1444 = vmatprep.subr.mxu0 0.0
    %1445 = vmatpush1.msra.mxu0 0.0
    %1446 = vmatprep.subr.mxu0 0.0
    %1447 = vmatpush1.msra.mxu0 0.0
    %1448 = vmatprep.subr.mxu0 0.0
    %1449 = vmatpush1.msra.mxu0 0.0
    %1450 = vmatprep.subr.mxu0 0.0
    %1451 = vmatpush1.msra.mxu0 0.0
    %1452 = vmatprep.subr.mxu0 0.0
    %1453 = vmatpush1.msra.mxu0 0.0
    %1454 = vmatprep.subr.mxu0 0.0
    %1455 = vmatpush1.msra.mxu0 0.0
    %1456 = vmatprep.subr.mxu0 0.0
    %1457 = vmatpush1.msra.mxu0 0.0
    %1458 = vmatprep.subr.mxu0 0.0
    %1459 = vmatpush1.msra.mxu0 0.0
    %1460 = vmatprep.subr.mxu0 0.0
    %1461 = vmatpush1.msra.mxu0 0.0
    %1462 = vmatprep.subr.mxu0 0.0
    %1463 = vmatpush1.msra.mxu0 0.0
    %1464 = vmatprep.subr.mxu0 0.0
    %1465 = vmatpush1.msra.mxu0 0.0
    %1466 = vmatprep.subr.mxu0 0.0
    %1467 = vmatpush1.msra.mxu0 0.0
    %1468 = vmatprep.subr.mxu0 0.0
    %1469 = vmatpush1.msra.mxu0 0.0
    %1470 = vmatprep.subr.mxu0 0.0
    %1471 = vmatpush1.msra.mxu0 0.0
    %1472 = vmatprep.subr.mxu0 0.0
    %1473 = vmatpush1.msra.mxu0 0.0
    %1474 = vmatprep.subr.mxu0 0.0
    %1475 = vmatpush1.msra.mxu0 0.0
    %1476 = vmatprep.subr.mxu0 0.0
    %1477 = vmatpush1.msra.mxu0 0.0
    %1478 = vmatprep.subr.mxu0 0.0
    %1479 = vmatpush1.msra.mxu0 0.0
    %1480 = vmatprep.subr.mxu0 0.0
    %1481 = vmatpush1.msra.mxu0 0.0
    %1482 = vmatprep.subr.mxu0 0.0
    %1483 = vmatpush1.msra.mxu0 0.0
    %1484 = vmatprep.subr.mxu0 0.0
    %1485 = vmatpush1.msra.mxu0 0.0
    %1486 = vmatprep.subr.mxu0 0.0
    %1487 = vmatpush1.msra.mxu0 0.0
    %1488 = vmatprep.subr.mxu0 0.0
    %1489 = vmatpush1.msra.mxu0 0.0
    %1490 = vmatprep.subr.mxu0 0.0
    %1491 = vmatpush1.msra.mxu0 0.0
    %1492 = vmatprep.subr.mxu0 0.0
    %1493 = vmatpush1.msra.mxu0 0.0
    %1494 = vmatprep.subr.mxu0 0.0
    %1495 = vmatpush1.msra.mxu0 0.0
    %1496 = vmatprep.subr.mxu0 0.0
    %1497 = vmatpush1.msra.mxu0 0.0
    %1498 = vmatprep.subr.mxu0 0.0
    %1499 = vmatpush1.msra.mxu0 0.0
    %1500 = vmatprep.subr.mxu0 0.0
    %1501 = vmatpush1.msra.mxu0 0.0
    %1502 = vmatprep.mubr.f32.mxu0 0.0
    %1503 = vmatmul.mubr.f32.gmra.mrb[0].mxu0 %v1436
    %v1504 = vpop.f32.mrb[0].mxu0
    %v1505 = vadd.f32 0.0, %v1504
    %v1506 = vpop.f32.mrb[0].mxu0
    %1507 = vdwg.mxu0
    %1510 = vrot.lane.b32.xlu0 %v761, 4
    %v1511 = vpop.permute.xlu0 %1510
    %1512 = vrot.lane.b32.xlu0 %v837, 4
    %v1513 = vpop.permute.xlu0 %1512
    %1518 = vrot.lane.b32.xlu0 %v1095, 8
    %v1519 = vpop.permute.xlu0 %1518
    %1520 = vrot.lane.b32.xlu0 %v1171, 8
    %v1521 = vpop.permute.xlu0 %1520
    %1526 = vrot.lane.b32.xlu0 %v1429, 12
    %v1527 = vpop.permute.xlu0 %1526
    %1528 = vrot.lane.b32.xlu0 %v1505, 12
    %v1529 = vpop.permute.xlu0 %1528
    %v1532 = vsel %vm173, %v427, %v1511
    %v1533 = vsel %vm173, %v503, %v1513
    %v1534 = vsel %vm331, %v1532, %v1519
    %v1535 = vsel %vm331, %v1533, %v1521
    %vm1536 = vcmask 97280
    %v1537 = vsel %vm1536, %v1534, %v1527
    %v1538 = vsel %vm1536, %v1535, %v1529
    %v1539 = vld [vmem:[%s3] sm:$0xff]
    %v1540 = vld [vmem:[%s3 + $0x8] sm:$0xff]
    %v1542 = vsel %vm43, %v1537, 0
    %v1545 = vsel %vm43, %v1538, 0
    %1547 = vmatprep.subr.mxu0 0.0
    %1548 = vmatpush1.msra.mxu0 %v1539
    %1549 = vmatprep.subr.mxu0 0.0
    %1550 = vmatpush1.msra.mxu0 %v1540
    %1551 = vmatprep.subr.mxu0 0.0
    %1552 = vmatpush1.msra.mxu0 0.0
    %1553 = vmatprep.subr.mxu0 0.0
    %1554 = vmatpush1.msra.mxu0 0.0
    %1555 = vmatprep.subr.mxu0 0.0
    %1556 = vmatpush1.msra.mxu0 0.0
    %1557 = vmatprep.subr.mxu0 0.0
    %1558 = vmatpush1.msra.mxu0 0.0
    %1559 = vmatprep.subr.mxu0 0.0
    %1560 = vmatpush1.msra.mxu0 0.0
    %1561 = vmatprep.subr.mxu0 0.0
    %1562 = vmatpush1.msra.mxu0 0.0
    %1563 = vmatprep.subr.mxu0 0.0
    %1564 = vmatpush1.msra.mxu0 0.0
    %1565 = vmatprep.subr.mxu0 0.0
    %1566 = vmatpush1.msra.mxu0 0.0
    %1567 = vmatprep.subr.mxu0 0.0
    %1568 = vmatpush1.msra.mxu0 0.0
    %1569 = vmatprep.subr.mxu0 0.0
    %1570 = vmatpush1.msra.mxu0 0.0
    %1571 = vmatprep.subr.mxu0 0.0
    %1572 = vmatpush1.msra.mxu0 0.0
    %1573 = vmatprep.subr.mxu0 0.0
    %1574 = vmatpush1.msra.mxu0 0.0
    %1575 = vmatprep.subr.mxu0 0.0
    %1576 = vmatpush1.msra.mxu0 0.0
    %1577 = vmatprep.subr.mxu0 0.0
    %1578 = vmatpush1.msra.mxu0 0.0
    %1579 = vmatprep.subr.mxu0 0.0
    %1580 = vmatpush1.msra.mxu0 0.0
    %1581 = vmatprep.subr.mxu0 0.0
    %1582 = vmatpush1.msra.mxu0 0.0
    %1583 = vmatprep.subr.mxu0 0.0
    %1584 = vmatpush1.msra.mxu0 0.0
    %1585 = vmatprep.subr.mxu0 0.0
    %1586 = vmatpush1.msra.mxu0 0.0
    %1587 = vmatprep.subr.mxu0 0.0
    %1588 = vmatpush1.msra.mxu0 0.0
    %1589 = vmatprep.subr.mxu0 0.0
    %1590 = vmatpush1.msra.mxu0 0.0
    %1591 = vmatprep.subr.mxu0 0.0
    %1592 = vmatpush1.msra.mxu0 0.0
    %1593 = vmatprep.subr.mxu0 0.0
    %1594 = vmatpush1.msra.mxu0 0.0
    %1595 = vmatprep.subr.mxu0 0.0
    %1596 = vmatpush1.msra.mxu0 0.0
    %1597 = vmatprep.subr.mxu0 0.0
    %1598 = vmatpush1.msra.mxu0 0.0
    %1599 = vmatprep.subr.mxu0 0.0
    %1600 = vmatpush1.msra.mxu0 0.0
    %1601 = vmatprep.subr.mxu0 0.0
    %1602 = vmatpush1.msra.mxu0 0.0
    %1603 = vmatprep.subr.mxu0 0.0
    %1604 = vmatpush1.msra.mxu0 0.0
    %1605 = vmatprep.subr.mxu0 0.0
    %1606 = vmatpush1.msra.mxu0 0.0
    %1607 = vmatprep.subr.mxu0 0.0
    %1608 = vmatpush1.msra.mxu0 0.0
    %1609 = vmatprep.subr.mxu0 0.0
    %1610 = vmatpush1.msra.mxu0 0.0
    %1611 = vmatprep.mubr.f32.mxu0 0.0
    %1612 = vmatmul.mubr.f32.gmra.mrb[0].mxu0 %v1542
    %v1613 = vpop.f32.mrb[0].mxu0
    %v1614 = vadd.f32 0.0, %v1613
    %v1615 = vpop.f32.mrb[0].mxu0
    %1616 = vmatprep.mubr.f32.mxu0 0.0
    %1617 = vmatmul.mubr.f32.gmra.mrb[0].mxu0 %v1545
    %v1618 = vpop.f32.mrb[0].mxu0
    %v1619 = vadd.f32 0.0, %v1618
    %v1620 = vpop.f32.mrb[0].mxu0
    %1621 = vdwg.mxu0
    %v1622 = vadd.f32 %v33, %v1614
    %v1623 = vadd.f32 %v34, %v1619
    %s1624 = scalar_lea.vmem %s1, 2
    %v1625 = vld [vmem:[%s1624] sm:$0x1]
    %s1626 = scalar_lea.vmem %s1, 3
    %v1627 = vld [vmem:[%s1626] sm:$0x1]
    %v1628 = vsel %vm43, %v1622, 0.0
    %1629 = vadd.xlane.f32.xlu0 %v1628
    %v1630 = vpop.xlane.xlu0 %1629
    %v1631 = vsel %vm43, %v1623, 0.0
    %1632 = vadd.xlane.f32.xlu0 %v1631
    %v1633 = vpop.xlane.xlu0 %1632
    %v1634 = vmul.f32 %v1630, %v50
    %v1635 = vmul.f32 %v1633, %v50
    %v1636 = vsub.f32 %v1622, %v1634
    %v1637 = vsub.f32 %v1623, %v1635
    %v1638 = vmul.f32 %v1636, %v1636
    %v1639 = vmul.f32 %v1637, %v1637
    %v1640 = vsel %vm43, %v1638, 0.0
    %1641 = vadd.xlane.f32.xlu0 %v1640
    %v1642 = vpop.xlane.xlu0 %1641
    %v1643 = vsel %vm43, %v1639, 0.0
    %1644 = vadd.xlane.f32.xlu0 %v1643
    %v1645 = vpop.xlane.xlu0 %1644
    %v1646 = vmul.f32 %v1642, %v50
    %v1647 = vmul.f32 %v1645, %v50
    %v1648 = vadd.f32 %v1646, 1e-05
    %v1649 = vadd.f32 %v1647, 1e-05
    %v1650 = vrsqrt.pop %v1648
    %v1651 = vrsqrt.pop %v1649
    %v1652 = vmul.f32 %v1636, %v1650
    %v1653 = vmul.f32 %v1637, %v1651
    %v1655 = vlaneseq
    %v1656 = vshrl.u32 %v1655, 7
    %v1657 = vsub.s32 0, %v1656
    %v1658 = vrot.slane %v1625, %v1657
    %v1660 = vmul.f32 %v1652, %v1658
    %v1661 = vmul.f32 %v1653, %v1658
    %v1663 = vlaneseq
    %v1664 = vshrl.u32 %v1663, 7
    %v1665 = vsub.s32 0, %v1664
    %v1666 = vrot.slane %v1627, %v1665
    %v1668 = vadd.f32 %v1660, %v1666
    %v1669 = vadd.f32 %v1661, %v1666
    %v1670 = vld [vmem:[%s4] sm:$0xff]
    %v1671 = vld [vmem:[%s4 + $0x8] sm:$0xff]
    %v1672 = vld [vmem:[%s5] sm:$0x1]
    %v1674 = vlaneseq
    %v1675 = vshrl.u32 %v1674, 7
    %v1676 = vsub.s32 0, %v1675
    %v1677 = vrot.slane %v1672, %v1676
    %v1680 = vsel %vm43, %v1668, 0
    %v1683 = vsel %vm43, %v1669, 0
    %1685 = vmatprep.subr.mxu0 0.0
    %1686 = vmatpush1.msra.mxu0 %v1670
    %1687 = vmatprep.subr.mxu0 0.0
    %1688 = vmatpush1.msra.mxu0 %v1671
    %1689 = vmatprep.subr.mxu0 0.0
    %1690 = vmatpush1.msra.mxu0 0.0
    %1691 = vmatprep.subr.mxu0 0.0
    %1692 = vmatpush1.msra.mxu0 0.0
    %1693 = vmatprep.subr.mxu0 0.0
    %1694 = vmatpush1.msra.mxu0 0.0
    %1695 = vmatprep.subr.mxu0 0.0
    %1696 = vmatpush1.msra.mxu0 0.0
    %1697 = vmatprep.subr.mxu0 0.0
    %1698 = vmatpush1.msra.mxu0 0.0
    %1699 = vmatprep.subr.mxu0 0.0
    %1700 = vmatpush1.msra.mxu0 0.0
    %1701 = vmatprep.subr.mxu0 0.0
    %1702 = vmatpush1.msra.mxu0 0.0
    %1703 = vmatprep.subr.mxu0 0.0
    %1704 = vmatpush1.msra.mxu0 0.0
    %1705 = vmatprep.subr.mxu0 0.0
    %1706 = vmatpush1.msra.mxu0 0.0
    %1707 = vmatprep.subr.mxu0 0.0
    %1708 = vmatpush1.msra.mxu0 0.0
    %1709 = vmatprep.subr.mxu0 0.0
    %1710 = vmatpush1.msra.mxu0 0.0
    %1711 = vmatprep.subr.mxu0 0.0
    %1712 = vmatpush1.msra.mxu0 0.0
    %1713 = vmatprep.subr.mxu0 0.0
    %1714 = vmatpush1.msra.mxu0 0.0
    %1715 = vmatprep.subr.mxu0 0.0
    %1716 = vmatpush1.msra.mxu0 0.0
    %1717 = vmatprep.subr.mxu0 0.0
    %1718 = vmatpush1.msra.mxu0 0.0
    %1719 = vmatprep.subr.mxu0 0.0
    %1720 = vmatpush1.msra.mxu0 0.0
    %1721 = vmatprep.subr.mxu0 0.0
    %1722 = vmatpush1.msra.mxu0 0.0
    %1723 = vmatprep.subr.mxu0 0.0
    %1724 = vmatpush1.msra.mxu0 0.0
    %1725 = vmatprep.subr.mxu0 0.0
    %1726 = vmatpush1.msra.mxu0 0.0
    %1727 = vmatprep.subr.mxu0 0.0
    %1728 = vmatpush1.msra.mxu0 0.0
    %1729 = vmatprep.subr.mxu0 0.0
    %1730 = vmatpush1.msra.mxu0 0.0
    %1731 = vmatprep.subr.mxu0 0.0
    %1732 = vmatpush1.msra.mxu0 0.0
    %1733 = vmatprep.subr.mxu0 0.0
    %1734 = vmatpush1.msra.mxu0 0.0
    %1735 = vmatprep.subr.mxu0 0.0
    %1736 = vmatpush1.msra.mxu0 0.0
    %1737 = vmatprep.subr.mxu0 0.0
    %1738 = vmatpush1.msra.mxu0 0.0
    %1739 = vmatprep.subr.mxu0 0.0
    %1740 = vmatpush1.msra.mxu0 0.0
    %1741 = vmatprep.subr.mxu0 0.0
    %1742 = vmatpush1.msra.mxu0 0.0
    %1743 = vmatprep.subr.mxu0 0.0
    %1744 = vmatpush1.msra.mxu0 0.0
    %1745 = vmatprep.subr.mxu0 0.0
    %1746 = vmatpush1.msra.mxu0 0.0
    %1747 = vmatprep.subr.mxu0 0.0
    %1748 = vmatpush1.msra.mxu0 0.0
    %1749 = vmatprep.mubr.f32.mxu0 0.0
    %1750 = vmatmul.mubr.f32.gmra.mrb[0].mxu0 %v1680
    %v1751 = vpop.f32.mrb[0].mxu0
    %v1752 = vadd.f32 %v1677, %v1751
    %v1753 = vpop.f32.mrb[0].mxu0
    %1754 = vmatprep.mubr.f32.mxu0 0.0
    %1755 = vmatmul.mubr.f32.gmra.mrb[0].mxu0 %v1683
    %v1756 = vpop.f32.mrb[0].mxu0
    %v1757 = vadd.f32 %v1677, %v1756
    %v1758 = vpop.f32.mrb[0].mxu0
    %1759 = vdwg.mxu0
    %v1760 = vmul.f32 %v1752, 0.5
    %v1761 = vmul.f32 %v1757, 0.5
    %v1762 = vmul.f32 %v1752, 0.70710677
    %v1763 = vmul.f32 %v1757, 0.70710677
    %v1764 = verf.f32.pop %v1762
    %v1765 = verf.f32.pop %v1763
    %v1766 = vadd.f32 %v1764, 1.0
    %v1767 = vadd.f32 %v1765, 1.0
    %v1768 = vmul.f32 %v1760, %v1766
    %v1769 = vmul.f32 %v1761, %v1767
    %v1770 = vld [vmem:[%s6] sm:$0xff]
    %v1771 = vld [vmem:[%s6 + $0x8] sm:$0xff]
    %v1772 = vld [vmem:[%s6 + $0x10] sm:$0xff]
    %v1773 = vld [vmem:[%s6 + $0x18] sm:$0xff]
    %v1774 = vld [vmem:[%s6 + $0x20] sm:$0xff]
    %v1775 = vld [vmem:[%s6 + $0x28] sm:$0xff]
    %v1776 = vld [vmem:[%s6 + $0x30] sm:$0xff]
    %v1777 = vld [vmem:[%s6 + $0x38] sm:$0xff]
    %v1778 = vld [vmem:[%s7] sm:$0x1]
    %v1780 = vlaneseq
    %v1781 = vshrl.u32 %v1780, 7
    %v1782 = vsub.s32 0, %v1781
    %v1783 = vrot.slane %v1778, %v1782
    %vm1785 = vcmask 523264
    %v1787 = vsel %vm1785, %v1768, 0
    %v1790 = vsel %vm1785, %v1769, 0
    %1792 = vmatprep.subr.mxu0 0.0
    %1793 = vmatpush1.msra.mxu0 %v1770
    %1794 = vmatprep.subr.mxu0 0.0
    %1795 = vmatpush1.msra.mxu0 %v1771
    %1796 = vmatprep.subr.mxu0 0.0
    %1797 = vmatpush1.msra.mxu0 %v1772
    %1798 = vmatprep.subr.mxu0 0.0
    %1799 = vmatpush1.msra.mxu0 %v1773
    %1800 = vmatprep.subr.mxu0 0.0
    %1801 = vmatpush1.msra.mxu0 %v1774
    %1802 = vmatprep.subr.mxu0 0.0
    %1803 = vmatpush1.msra.mxu0 %v1775
    %1804 = vmatprep.subr.mxu0 0.0
    %1805 = vmatpush1.msra.mxu0 %v1776
    %1806 = vmatprep.subr.mxu0 0.0
    %1807 = vmatpush1.msra.mxu0 %v1777
    %1808 = vmatprep.subr.mxu0 0.0
    %1809 = vmatpush1.msra.mxu0 0.0
    %1810 = vmatprep.subr.mxu0 0.0
    %1811 = vmatpush1.msra.mxu0 0.0
    %1812 = vmatprep.subr.mxu0 0.0
    %1813 = vmatpush1.msra.mxu0 0.0
    %1814 = vmatprep.subr.mxu0 0.0
    %1815 = vmatpush1.msra.mxu0 0.0
    %1816 = vmatprep.subr.mxu0 0.0
    %1817 = vmatpush1.msra.mxu0 0.0
    %1818 = vmatprep.subr.mxu0 0.0
    %1819 = vmatpush1.msra.mxu0 0.0
    %1820 = vmatprep.subr.mxu0 0.0
    %1821 = vmatpush1.msra.mxu0 0.0
    %1822 = vmatprep.subr.mxu0 0.0
    %1823 = vmatpush1.msra.mxu0 0.0
    %1824 = vmatprep.subr.mxu0 0.0
    %1825 = vmatpush1.msra.mxu0 0.0
    %1826 = vmatprep.subr.mxu0 0.0
    %1827 = vmatpush1.msra.mxu0 0.0
    %1828 = vmatprep.subr.mxu0 0.0
    %1829 = vmatpush1.msra.mxu0 0.0
    %1830 = vmatprep.subr.mxu0 0.0
    %1831 = vmatpush1.msra.mxu0 0.0
    %1832 = vmatprep.subr.mxu0 0.0
    %1833 = vmatpush1.msra.mxu0 0.0
    %1834 = vmatprep.subr.mxu0 0.0
    %1835 = vmatpush1.msra.mxu0 0.0
    %1836 = vmatprep.subr.mxu0 0.0
    %1837 = vmatpush1.msra.mxu0 0.0
    %1838 = vmatprep.subr.mxu0 0.0
    %1839 = vmatpush1.msra.mxu0 0.0
    %1840 = vmatprep.subr.mxu0 0.0
    %1841 = vmatpush1.msra.mxu0 0.0
    %1842 = vmatprep.subr.mxu0 0.0
    %1843 = vmatpush1.msra.mxu0 0.0
    %1844 = vmatprep.subr.mxu0 0.0
    %1845 = vmatpush1.msra.mxu0 0.0
    %1846 = vmatprep.subr.mxu0 0.0
    %1847 = vmatpush1.msra.mxu0 0.0
    %1848 = vmatprep.subr.mxu0 0.0
    %1849 = vmatpush1.msra.mxu0 0.0
    %1850 = vmatprep.subr.mxu0 0.0
    %1851 = vmatpush1.msra.mxu0 0.0
    %1852 = vmatprep.subr.mxu0 0.0
    %1853 = vmatpush1.msra.mxu0 0.0
    %1854 = vmatprep.subr.mxu0 0.0
    %1855 = vmatpush1.msra.mxu0 0.0
    %1856 = vmatprep.mubr.f32.mxu0 0.0
    %1857 = vmatmul.mubr.f32.gmra.mrb[0].mxu0 %v1787
    %v1858 = vpop.f32.mrb[0].mxu0
    %v1859 = vadd.f32 %v1783, %v1858
    %v1860 = vpop.f32.mrb[0].mxu0
    %1861 = vmatprep.mubr.f32.mxu0 0.0
    %1862 = vmatmul.mubr.f32.gmra.mrb[0].mxu0 %v1790
    %v1863 = vpop.f32.mrb[0].mxu0
    %v1864 = vadd.f32 %v1783, %v1863
    %v1865 = vpop.f32.mrb[0].mxu0
    %1866 = vdwg.mxu0
    %v1867 = vadd.f32 %v1622, %v1859
    %v1868 = vadd.f32 %v1623, %v1864
    %s1869 = scalar_lea.vmem %s1, 4
    %v1870 = vld [vmem:[%s1869] sm:$0x1]
    %s1871 = scalar_lea.vmem %s1, 5
    %v1872 = vld [vmem:[%s1871] sm:$0x1]
    %v1873 = vsel %vm43, %v1867, 0.0
    %1874 = vadd.xlane.f32.xlu0 %v1873
    %v1875 = vpop.xlane.xlu0 %1874
    %v1876 = vsel %vm43, %v1868, 0.0
    %1877 = vadd.xlane.f32.xlu0 %v1876
    %v1878 = vpop.xlane.xlu0 %1877
    %v1879 = vmul.f32 %v1875, %v50
    %v1880 = vmul.f32 %v1878, %v50
    %v1881 = vsub.f32 %v1867, %v1879
    %v1882 = vsub.f32 %v1868, %v1880
    %v1883 = vmul.f32 %v1881, %v1881
    %v1884 = vmul.f32 %v1882, %v1882
    %v1885 = vsel %vm43, %v1883, 0.0
    %1886 = vadd.xlane.f32.xlu0 %v1885
    %v1887 = vpop.xlane.xlu0 %1886
    %v1888 = vsel %vm43, %v1884, 0.0
    %1889 = vadd.xlane.f32.xlu0 %v1888
    %v1890 = vpop.xlane.xlu0 %1889
    %v1891 = vmul.f32 %v1887, %v50
    %v1892 = vmul.f32 %v1890, %v50
    %v1893 = vadd.f32 %v1891, 1e-05
    %v1894 = vadd.f32 %v1892, 1e-05
    %v1895 = vrsqrt.pop %v1893
    %v1896 = vrsqrt.pop %v1894
    %v1897 = vmul.f32 %v1881, %v1895
    %v1898 = vmul.f32 %v1882, %v1896
    %v1900 = vlaneseq
    %v1901 = vshrl.u32 %v1900, 7
    %v1902 = vsub.s32 0, %v1901
    %v1903 = vrot.slane %v1870, %v1902
    %v1905 = vmul.f32 %v1897, %v1903
    %v1906 = vmul.f32 %v1898, %v1903
    %v1908 = vlaneseq
    %v1909 = vshrl.u32 %v1908, 7
    %v1910 = vsub.s32 0, %v1909
    %v1911 = vrot.slane %v1872, %v1910
    %v1913 = vadd.f32 %v1905, %v1911
    %v1914 = vadd.f32 %v1906, %v1911
    %s1915 = scalar_lea.vmem %s2, 16
    %v1916 = vld [vmem:[%s1915] sm:$0xff]
    %v1917 = vld [vmem:[%s1915 + $0x8] sm:$0xff]
    %v1919 = vsel %vm43, %v1913, 0
    %v1922 = vsel %vm43, %v1914, 0
    %1924 = vmatprep.subr.mxu0 0.0
    %1925 = vmatpush1.msra.mxu0 %v1916
    %1926 = vmatprep.subr.mxu0 0.0
    %1927 = vmatpush1.msra.mxu0 %v1917
    %1928 = vmatprep.subr.mxu0 0.0
    %1929 = vmatpush1.msra.mxu0 0.0
    %1930 = vmatprep.subr.mxu0 0.0
    %1931 = vmatpush1.msra.mxu0 0.0
    %1932 = vmatprep.subr.mxu0 0.0
    %1933 = vmatpush1.msra.mxu0 0.0
    %1934 = vmatprep.subr.mxu0 0.0
    %1935 = vmatpush1.msra.mxu0 0.0
    %1936 = vmatprep.subr.mxu0 0.0
    %1937 = vmatpush1.msra.mxu0 0.0
    %1938 = vmatprep.subr.mxu0 0.0
    %1939 = vmatpush1.msra.mxu0 0.0
    %1940 = vmatprep.subr.mxu0 0.0
    %1941 = vmatpush1.msra.mxu0 0.0
    %1942 = vmatprep.subr.mxu0 0.0
    %1943 = vmatpush1.msra.mxu0 0.0
    %1944 = vmatprep.subr.mxu0 0.0
    %1945 = vmatpush1.msra.mxu0 0.0
    %1946 = vmatprep.subr.mxu0 0.0
    %1947 = vmatpush1.msra.mxu0 0.0
    %1948 = vmatprep.subr.mxu0 0.0
    %1949 = vmatpush1.msra.mxu0 0.0
    %1950 = vmatprep.subr.mxu0 0.0
    %1951 = vmatpush1.msra.mxu0 0.0
    %1952 = vmatprep.subr.mxu0 0.0
    %1953 = vmatpush1.msra.mxu0 0.0
    %1954 = vmatprep.subr.mxu0 0.0
    %1955 = vmatpush1.msra.mxu0 0.0
    %1956 = vmatprep.subr.mxu0 0.0
    %1957 = vmatpush1.msra.mxu0 0.0
    %1958 = vmatprep.subr.mxu0 0.0
    %1959 = vmatpush1.msra.mxu0 0.0
    %1960 = vmatprep.subr.mxu0 0.0
    %1961 = vmatpush1.msra.mxu0 0.0
    %1962 = vmatprep.subr.mxu0 0.0
    %1963 = vmatpush1.msra.mxu0 0.0
    %1964 = vmatprep.subr.mxu0 0.0
    %1965 = vmatpush1.msra.mxu0 0.0
    %1966 = vmatprep.subr.mxu0 0.0
    %1967 = vmatpush1.msra.mxu0 0.0
    %1968 = vmatprep.subr.mxu0 0.0
    %1969 = vmatpush1.msra.mxu0 0.0
    %1970 = vmatprep.subr.mxu0 0.0
    %1971 = vmatpush1.msra.mxu0 0.0
    %1972 = vmatprep.subr.mxu0 0.0
    %1973 = vmatpush1.msra.mxu0 0.0
    %1974 = vmatprep.subr.mxu0 0.0
    %1975 = vmatpush1.msra.mxu0 0.0
    %1976 = vmatprep.subr.mxu0 0.0
    %1977 = vmatpush1.msra.mxu0 0.0
    %1978 = vmatprep.subr.mxu0 0.0
    %1979 = vmatpush1.msra.mxu0 0.0
    %1980 = vmatprep.subr.mxu0 0.0
    %1981 = vmatpush1.msra.mxu0 0.0
    %1982 = vmatprep.subr.mxu0 0.0
    %1983 = vmatpush1.msra.mxu0 0.0
    %1984 = vmatprep.subr.mxu0 0.0
    %1985 = vmatpush1.msra.mxu0 0.0
    %1986 = vmatprep.subr.mxu0 0.0
    %1987 = vmatpush1.msra.mxu0 0.0
    %1988 = vmatprep.mubr.f32.mxu0 0.0
    %1989 = vmatmul.mubr.f32.gmra.mrb[0].mxu0 %v1919
    %v1990 = vpop.f32.mrb[0].mxu0
    %v1991 = vadd.f32 0.0, %v1990
    %v1992 = vpop.f32.mrb[0].mxu0
    %1993 = vmatprep.mubr.f32.mxu0 0.0
    %1994 = vmatmul.mubr.f32.gmra.mrb[0].mxu0 %v1922
    %v1995 = vpop.f32.mrb[0].mxu0
    %v1996 = vadd.f32 0.0, %v1995
    %v1997 = vpop.f32.mrb[0].mxu0
    %1998 = vdwg.mxu0
    %2000 = vrot.lane.b32.xlu0 %v1991, 112
    %v2001 = vpop.permute.xlu0 %2000
    %v2002 = vsel %vm173, %v1991, 0
    %v2004 = vsel %vm173, %v2001, 0
    %2006 = vmatprep.subr.mxu0 0.0
    %2007 = vmatpush1.xpose.msra.mxu0 %v2004
    %2008 = vmatprep.subr.mxu0 0.0
    %2009 = vmatpush1.xpose.msra.mxu0 0.0
    %2010 = vmatprep.subr.mxu0 0.0
    %2011 = vmatpush1.xpose.msra.mxu0 0.0
    %2012 = vmatprep.subr.mxu0 0.0
    %2013 = vmatpush1.xpose.msra.mxu0 0.0
    %2014 = vmatprep.subr.mxu0 0.0
    %2015 = vmatpush1.xpose.msra.mxu0 0.0
    %2016 = vmatprep.subr.mxu0 0.0
    %2017 = vmatpush1.xpose.msra.mxu0 0.0
    %2018 = vmatprep.subr.mxu0 0.0
    %2019 = vmatpush1.xpose.msra.mxu0 0.0
    %2020 = vmatprep.subr.mxu0 0.0
    %2021 = vmatpush1.xpose.msra.mxu0 0.0
    %2022 = vmatprep.subr.mxu0 0.0
    %2023 = vmatpush1.xpose.msra.mxu0 0.0
    %2024 = vmatprep.subr.mxu0 0.0
    %2025 = vmatpush1.xpose.msra.mxu0 0.0
    %2026 = vmatprep.subr.mxu0 0.0
    %2027 = vmatpush1.xpose.msra.mxu0 0.0
    %2028 = vmatprep.subr.mxu0 0.0
    %2029 = vmatpush1.xpose.msra.mxu0 0.0
    %2030 = vmatprep.subr.mxu0 0.0
    %2031 = vmatpush1.xpose.msra.mxu0 0.0
    %2032 = vmatprep.subr.mxu0 0.0
    %2033 = vmatpush1.xpose.msra.mxu0 0.0
    %2034 = vmatprep.subr.mxu0 0.0
    %2035 = vmatpush1.xpose.msra.mxu0 0.0
    %2036 = vmatprep.subr.mxu0 0.0
    %2037 = vmatpush1.xpose.msra.mxu0 0.0
    %2038 = vmatprep.subr.mxu0 0.0
    %2039 = vmatpush1.xpose.msra.mxu0 0.0
    %2040 = vmatprep.subr.mxu0 0.0
    %2041 = vmatpush1.xpose.msra.mxu0 0.0
    %2042 = vmatprep.subr.mxu0 0.0
    %2043 = vmatpush1.xpose.msra.mxu0 0.0
    %2044 = vmatprep.subr.mxu0 0.0
    %2045 = vmatpush1.xpose.msra.mxu0 0.0
    %2046 = vmatprep.subr.mxu0 0.0
    %2047 = vmatpush1.xpose.msra.mxu0 0.0
    %2048 = vmatprep.subr.mxu0 0.0
    %2049 = vmatpush1.xpose.msra.mxu0 0.0
    %2050 = vmatprep.subr.mxu0 0.0
    %2051 = vmatpush1.xpose.msra.mxu0 0.0
    %2052 = vmatprep.subr.mxu0 0.0
    %2053 = vmatpush1.xpose.msra.mxu0 0.0
    %2054 = vmatprep.subr.mxu0 0.0
    %2055 = vmatpush1.xpose.msra.mxu0 0.0
    %2056 = vmatprep.subr.mxu0 0.0
    %2057 = vmatpush1.xpose.msra.mxu0 0.0
    %2058 = vmatprep.subr.mxu0 0.0
    %2059 = vmatpush1.xpose.msra.mxu0 0.0
    %2060 = vmatprep.subr.mxu0 0.0
    %2061 = vmatpush1.xpose.msra.mxu0 0.0
    %2062 = vmatprep.subr.mxu0 0.0
    %2063 = vmatpush1.xpose.msra.mxu0 0.0
    %2064 = vmatprep.subr.mxu0 0.0
    %2065 = vmatpush1.xpose.msra.mxu0 0.0
    %2066 = vmatprep.subr.mxu0 0.0
    %2067 = vmatpush1.xpose.msra.mxu0 0.0
    %2068 = vmatprep.subr.mxu0 0.0
    %2069 = vmatpush1.xpose.msra.mxu0 0.0
    %2070 = vmatprep.mubr.f32.mxu0 0.0
    %2071 = vmatmul.mubr.f32.gmra.mrb[0].mxu0 %v2002
    %v2072 = vpop.f32.mrb[0].mxu0
    %v2073 = vadd.f32 0.0, %v2072
    %v2074 = vpop.f32.mrb[0].mxu0
    %2075 = vdwg.mxu0
    %2077 = vrot.lane.b32.xlu0 %v1996, 112
    %v2078 = vpop.permute.xlu0 %2077
    %v2079 = vsel %vm173, %v1996, 0
    %v2081 = vsel %vm173, %v2078, 0
    %2083 = vmatprep.subr.mxu0 0.0
    %2084 = vmatpush1.xpose.msra.mxu0 %v2081
    %2085 = vmatprep.subr.mxu0 0.0
    %2086 = vmatpush1.xpose.msra.mxu0 0.0
    %2087 = vmatprep.subr.mxu0 0.0
    %2088 = vmatpush1.xpose.msra.mxu0 0.0
    %2089 = vmatprep.subr.mxu0 0.0
    %2090 = vmatpush1.xpose.msra.mxu0 0.0
    %2091 = vmatprep.subr.mxu0 0.0
    %2092 = vmatpush1.xpose.msra.mxu0 0.0
    %2093 = vmatprep.subr.mxu0 0.0
    %2094 = vmatpush1.xpose.msra.mxu0 0.0
    %2095 = vmatprep.subr.mxu0 0.0
    %2096 = vmatpush1.xpose.msra.mxu0 0.0
    %2097 = vmatprep.subr.mxu0 0.0
    %2098 = vmatpush1.xpose.msra.mxu0 0.0
    %2099 = vmatprep.subr.mxu0 0.0
    %2100 = vmatpush1.xpose.msra.mxu0 0.0
    %2101 = vmatprep.subr.mxu0 0.0
    %2102 = vmatpush1.xpose.msra.mxu0 0.0
    %2103 = vmatprep.subr.mxu0 0.0
    %2104 = vmatpush1.xpose.msra.mxu0 0.0
    %2105 = vmatprep.subr.mxu0 0.0
    %2106 = vmatpush1.xpose.msra.mxu0 0.0
    %2107 = vmatprep.subr.mxu0 0.0
    %2108 = vmatpush1.xpose.msra.mxu0 0.0
    %2109 = vmatprep.subr.mxu0 0.0
    %2110 = vmatpush1.xpose.msra.mxu0 0.0
    %2111 = vmatprep.subr.mxu0 0.0
    %2112 = vmatpush1.xpose.msra.mxu0 0.0
    %2113 = vmatprep.subr.mxu0 0.0
    %2114 = vmatpush1.xpose.msra.mxu0 0.0
    %2115 = vmatprep.subr.mxu0 0.0
    %2116 = vmatpush1.xpose.msra.mxu0 0.0
    %2117 = vmatprep.subr.mxu0 0.0
    %2118 = vmatpush1.xpose.msra.mxu0 0.0
    %2119 = vmatprep.subr.mxu0 0.0
    %2120 = vmatpush1.xpose.msra.mxu0 0.0
    %2121 = vmatprep.subr.mxu0 0.0
    %2122 = vmatpush1.xpose.msra.mxu0 0.0
    %2123 = vmatprep.subr.mxu0 0.0
    %2124 = vmatpush1.xpose.msra.mxu0 0.0
    %2125 = vmatprep.subr.mxu0 0.0
    %2126 = vmatpush1.xpose.msra.mxu0 0.0
    %2127 = vmatprep.subr.mxu0 0.0
    %2128 = vmatpush1.xpose.msra.mxu0 0.0
    %2129 = vmatprep.subr.mxu0 0.0
    %2130 = vmatpush1.xpose.msra.mxu0 0.0
    %2131 = vmatprep.subr.mxu0 0.0
    %2132 = vmatpush1.xpose.msra.mxu0 0.0
    %2133 = vmatprep.subr.mxu0 0.0
    %2134 = vmatpush1.xpose.msra.mxu0 0.0
    %2135 = vmatprep.subr.mxu0 0.0
    %2136 = vmatpush1.xpose.msra.mxu0 0.0
    %2137 = vmatprep.subr.mxu0 0.0
    %2138 = vmatpush1.xpose.msra.mxu0 0.0
    %2139 = vmatprep.subr.mxu0 0.0
    %2140 = vmatpush1.xpose.msra.mxu0 0.0
    %2141 = vmatprep.subr.mxu0 0.0
    %2142 = vmatpush1.xpose.msra.mxu0 0.0
    %2143 = vmatprep.subr.mxu0 0.0
    %2144 = vmatpush1.xpose.msra.mxu0 0.0
    %2145 = vmatprep.subr.mxu0 0.0
    %2146 = vmatpush1.xpose.msra.mxu0 0.0
    %2147 = vmatprep.mubr.f32.mxu0 0.0
    %2148 = vmatmul.mubr.f32.gmra.mrb[0].mxu0 %v2079
    %v2149 = vpop.f32.mrb[0].mxu0
    %v2150 = vadd.f32 0.0, %v2149
    %v2151 = vpop.f32.mrb[0].mxu0
    %2152 = vdwg.mxu0
    %v2153 = vmul.f32 %v2073, 0.5
    %v2154 = vmul.f32 %v2150, 0.5
    %v2155 = vsel %vm328, %v2153, -inf
    %v2156 = vsel %vm328, %v2154, -inf
    %v2157 = vsel %vm331, %v2155, -inf
    %2158 = vmax.xlane.f32.xlu0 %v2157
    %v2159 = vpop.xlane.xlu0 %2158
    %v2160 = vsel %vm331, %v2156, -inf
    %2161 = vmax.xlane.f32.xlu0 %v2160
    %v2162 = vpop.xlane.xlu0 %2161
    %v2163 = vsub.f32 %v2155, %v2159
    %v2164 = vsub.f32 %v2156, %v2162
    %v2165 = vmul.f32 %v2163, 1.442695
    %v2166 = vpow.pop %v2165
    %v2167 = vmul.f32 %v2164, 1.442695
    %v2168 = vpow.pop %v2167
    %v2169 = vsel %vm331, %v2166, 0.0
    %2170 = vadd.xlane.f32.xlu0 %v2169
    %v2171 = vpop.xlane.xlu0 %2170
    %v2172 = vsel %vm331, %v2168, 0.0
    %2173 = vadd.xlane.f32.xlu0 %v2172
    %v2174 = vpop.xlane.xlu0 %2173
    %v2175 = vrcp.pop %v2171
    %v2176 = vmul.f32 %v2166, %v2175
    %v2177 = vrcp.pop %v2174
    %v2178 = vmul.f32 %v2168, %v2177
    %2179 = vrot.lane.b32.xlu0 %v1991, 96
    %v2180 = vpop.permute.xlu0 %2179
    %v2183 = vsel %vm331, %v2176, 0
    %2185 = vmatprep.subr.mxu0 0.0
    %2186 = vmatpush1.msra.mxu0 %v2180
    %2187 = vmatprep.subr.mxu0 0.0
    %2188 = vmatpush1.msra.mxu0 0.0
    %2189 = vmatprep.subr.mxu0 0.0
    %2190 = vmatpush1.msra.mxu0 0.0
    %2191 = vmatprep.subr.mxu0 0.0
    %2192 = vmatpush1.msra.mxu0 0.0
    %2193 = vmatprep.subr.mxu0 0.0
    %2194 = vmatpush1.msra.mxu0 0.0
    %2195 = vmatprep.subr.mxu0 0.0
    %2196 = vmatpush1.msra.mxu0 0.0
    %2197 = vmatprep.subr.mxu0 0.0
    %2198 = vmatpush1.msra.mxu0 0.0
    %2199 = vmatprep.subr.mxu0 0.0
    %2200 = vmatpush1.msra.mxu0 0.0
    %2201 = vmatprep.subr.mxu0 0.0
    %2202 = vmatpush1.msra.mxu0 0.0
    %2203 = vmatprep.subr.mxu0 0.0
    %2204 = vmatpush1.msra.mxu0 0.0
    %2205 = vmatprep.subr.mxu0 0.0
    %2206 = vmatpush1.msra.mxu0 0.0
    %2207 = vmatprep.subr.mxu0 0.0
    %2208 = vmatpush1.msra.mxu0 0.0
    %2209 = vmatprep.subr.mxu0 0.0
    %2210 = vmatpush1.msra.mxu0 0.0
    %2211 = vmatprep.subr.mxu0 0.0
    %2212 = vmatpush1.msra.mxu0 0.0
    %2213 = vmatprep.subr.mxu0 0.0
    %2214 = vmatpush1.msra.mxu0 0.0
    %2215 = vmatprep.subr.mxu0 0.0
    %2216 = vmatpush1.msra.mxu0 0.0
    %2217 = vmatprep.subr.mxu0 0.0
    %2218 = vmatpush1.msra.mxu0 0.0
    %2219 = vmatprep.subr.mxu0 0.0
    %2220 = vmatpush1.msra.mxu0 0.0
    %2221 = vmatprep.subr.mxu0 0.0
    %2222 = vmatpush1.msra.mxu0 0.0
    %2223 = vmatprep.subr.mxu0 0.0
    %2224 = vmatpush1.msra.mxu0 0.0
    %2225 = vmatprep.subr.mxu0 0.0
    %2226 = vmatpush1.msra.mxu0 0.0
    %2227 = vmatprep.subr.mxu0 0.0
    %2228 = vmatpush1.msra.mxu0 0.0
    %2229 = vmatprep.subr.mxu0 0.0
    %2230 = vmatpush1.msra.mxu0 0.0
    %2231 = vmatprep.subr.mxu0 0.0
    %2232 = vmatpush1.msra.mxu0 0.0
    %2233 = vmatprep.subr.mxu0 0.0
    %2234 = vmatpush1.msra.mxu0 0.0
    %2235 = vmatprep.subr.mxu0 0.0
    %2236 = vmatpush1.msra.mxu0 0.0
    %2237 = vmatprep.subr.mxu0 0.0
    %2238 = vmatpush1.msra.mxu0 0.0
    %2239 = vmatprep.subr.mxu0 0.0
    %2240 = vmatpush1.msra.mxu0 0.0
    %2241 = vmatprep.subr.mxu0 0.0
    %2242 = vmatpush1.msra.mxu0 0.0
    %2243 = vmatprep.subr.mxu0 0.0
    %2244 = vmatpush1.msra.mxu0 0.0
    %2245 = vmatprep.subr.mxu0 0.0
    %2246 = vmatpush1.msra.mxu0 0.0
    %2247 = vmatprep.subr.mxu0 0.0
    %2248 = vmatpush1.msra.mxu0 0.0
    %2249 = vmatprep.mubr.f32.mxu0 0.0
    %2250 = vmatmul.mubr.f32.gmra.mrb[0].mxu0 %v2183
    %v2251 = vpop.f32.mrb[0].mxu0
    %v2252 = vadd.f32 0.0, %v2251
    %v2253 = vpop.f32.mrb[0].mxu0
    %2254 = vdwg.mxu0
    %2255 = vrot.lane.b32.xlu0 %v1996, 96
    %v2256 = vpop.permute.xlu0 %2255
    %v2259 = vsel %vm331, %v2178, 0
    %2261 = vmatprep.subr.mxu0 0.0
    %2262 = vmatpush1.msra.mxu0 %v2256
    %2263 = vmatprep.subr.mxu0 0.0
    %2264 = vmatpush1.msra.mxu0 0.0
    %2265 = vmatprep.subr.mxu0 0.0
    %2266 = vmatpush1.msra.mxu0 0.0
    %2267 = vmatprep.subr.mxu0 0.0
    %2268 = vmatpush1.msra.mxu0 0.0
    %2269 = vmatprep.subr.mxu0 0.0
    %2270 = vmatpush1.msra.mxu0 0.0
    %2271 = vmatprep.subr.mxu0 0.0
    %2272 = vmatpush1.msra.mxu0 0.0
    %2273 = vmatprep.subr.mxu0 0.0
    %2274 = vmatpush1.msra.mxu0 0.0
    %2275 = vmatprep.subr.mxu0 0.0
    %2276 = vmatpush1.msra.mxu0 0.0
    %2277 = vmatprep.subr.mxu0 0.0
    %2278 = vmatpush1.msra.mxu0 0.0
    %2279 = vmatprep.subr.mxu0 0.0
    %2280 = vmatpush1.msra.mxu0 0.0
    %2281 = vmatprep.subr.mxu0 0.0
    %2282 = vmatpush1.msra.mxu0 0.0
    %2283 = vmatprep.subr.mxu0 0.0
    %2284 = vmatpush1.msra.mxu0 0.0
    %2285 = vmatprep.subr.mxu0 0.0
    %2286 = vmatpush1.msra.mxu0 0.0
    %2287 = vmatprep.subr.mxu0 0.0
    %2288 = vmatpush1.msra.mxu0 0.0
    %2289 = vmatprep.subr.mxu0 0.0
    %2290 = vmatpush1.msra.mxu0 0.0
    %2291 = vmatprep.subr.mxu0 0.0
    %2292 = vmatpush1.msra.mxu0 0.0
    %2293 = vmatprep.subr.mxu0 0.0
    %2294 = vmatpush1.msra.mxu0 0.0
    %2295 = vmatprep.subr.mxu0 0.0
    %2296 = vmatpush1.msra.mxu0 0.0
    %2297 = vmatprep.subr.mxu0 0.0
    %2298 = vmatpush1.msra.mxu0 0.0
    %2299 = vmatprep.subr.mxu0 0.0
    %2300 = vmatpush1.msra.mxu0 0.0
    %2301 = vmatprep.subr.mxu0 0.0
    %2302 = vmatpush1.msra.mxu0 0.0
    %2303 = vmatprep.subr.mxu0 0.0
    %2304 = vmatpush1.msra.mxu0 0.0
    %2305 = vmatprep.subr.mxu0 0.0
    %2306 = vmatpush1.msra.mxu0 0.0
    %2307 = vmatprep.subr.mxu0 0.0
    %2308 = vmatpush1.msra.mxu0 0.0
    %2309 = vmatprep.subr.mxu0 0.0
    %2310 = vmatpush1.msra.mxu0 0.0
    %2311 = vmatprep.subr.mxu0 0.0
    %2312 = vmatpush1.msra.mxu0 0.0
    %2313 = vmatprep.subr.mxu0 0.0
    %2314 = vmatpush1.msra.mxu0 0.0
    %2315 = vmatprep.subr.mxu0 0.0
    %2316 = vmatpush1.msra.mxu0 0.0
    %2317 = vmatprep.subr.mxu0 0.0
    %2318 = vmatpush1.msra.mxu0 0.0
    %2319 = vmatprep.subr.mxu0 0.0
    %2320 = vmatpush1.msra.mxu0 0.0
    %2321 = vmatprep.subr.mxu0 0.0
    %2322 = vmatpush1.msra.mxu0 0.0
    %2323 = vmatprep.subr.mxu0 0.0
    %2324 = vmatpush1.msra.mxu0 0.0
    %2325 = vmatprep.mubr.f32.mxu0 0.0
    %2326 = vmatmul.mubr.f32.gmra.mrb[0].mxu0 %v2259
    %v2327 = vpop.f32.mrb[0].mxu0
    %v2328 = vadd.f32 0.0, %v2327
    %v2329 = vpop.f32.mrb[0].mxu0
    %2330 = vdwg.mxu0
    %2331 = vrot.lane.b32.xlu0 %v1991, 124
    %v2332 = vpop.permute.xlu0 %2331
    %2333 = vrot.lane.b32.xlu0 %v1991, 108
    %v2334 = vpop.permute.xlu0 %2333
    %v2335 = vsel %vm173, %v2332, 0
    %v2337 = vsel %vm173, %v2334, 0
    %2339 = vmatprep.subr.mxu0 0.0
    %2340 = vmatpush1.xpose.msra.mxu0 %v2337
    %2341 = vmatprep.subr.mxu0 0.0
    %2342 = vmatpush1.xpose.msra.mxu0 0.0
    %2343 = vmatprep.subr.mxu0 0.0
    %2344 = vmatpush1.xpose.msra.mxu0 0.0
    %2345 = vmatprep.subr.mxu0 0.0
    %2346 = vmatpush1.xpose.msra.mxu0 0.0
    %2347 = vmatprep.subr.mxu0 0.0
    %2348 = vmatpush1.xpose.msra.mxu0 0.0
    %2349 = vmatprep.subr.mxu0 0.0
    %2350 = vmatpush1.xpose.msra.mxu0 0.0
    %2351 = vmatprep.subr.mxu0 0.0
    %2352 = vmatpush1.xpose.msra.mxu0 0.0
    %2353 = vmatprep.subr.mxu0 0.0
    %2354 = vmatpush1.xpose.msra.mxu0 0.0
    %2355 = vmatprep.subr.mxu0 0.0
    %2356 = vmatpush1.xpose.msra.mxu0 0.0
    %2357 = vmatprep.subr.mxu0 0.0
    %2358 = vmatpush1.xpose.msra.mxu0 0.0
    %2359 = vmatprep.subr.mxu0 0.0
    %2360 = vmatpush1.xpose.msra.mxu0 0.0
    %2361 = vmatprep.subr.mxu0 0.0
    %2362 = vmatpush1.xpose.msra.mxu0 0.0
    %2363 = vmatprep.subr.mxu0 0.0
    %2364 = vmatpush1.xpose.msra.mxu0 0.0
    %2365 = vmatprep.subr.mxu0 0.0
    %2366 = vmatpush1.xpose.msra.mxu0 0.0
    %2367 = vmatprep.subr.mxu0 0.0
    %2368 = vmatpush1.xpose.msra.mxu0 0.0
    %2369 = vmatprep.subr.mxu0 0.0
    %2370 = vmatpush1.xpose.msra.mxu0 0.0
    %2371 = vmatprep.subr.mxu0 0.0
    %2372 = vmatpush1.xpose.msra.mxu0 0.0
    %2373 = vmatprep.subr.mxu0 0.0
    %2374 = vmatpush1.xpose.msra.mxu0 0.0
    %2375 = vmatprep.subr.mxu0 0.0
    %2376 = vmatpush1.xpose.msra.mxu0 0.0
    %2377 = vmatprep.subr.mxu0 0.0
    %2378 = vmatpush1.xpose.msra.mxu0 0.0
    %2379 = vmatprep.subr.mxu0 0.0
    %2380 = vmatpush1.xpose.msra.mxu0 0.0
    %2381 = vmatprep.subr.mxu0 0.0
    %2382 = vmatpush1.xpose.msra.mxu0 0.0
    %2383 = vmatprep.subr.mxu0 0.0
    %2384 = vmatpush1.xpose.msra.mxu0 0.0
    %2385 = vmatprep.subr.mxu0 0.0
    %2386 = vmatpush1.xpose.msra.mxu0 0.0
    %2387 = vmatprep.subr.mxu0 0.0
    %2388 = vmatpush1.xpose.msra.mxu0 0.0
    %2389 = vmatprep.subr.mxu0 0.0
    %2390 = vmatpush1.xpose.msra.mxu0 0.0
    %2391 = vmatprep.subr.mxu0 0.0
    %2392 = vmatpush1.xpose.msra.mxu0 0.0
    %2393 = vmatprep.subr.mxu0 0.0
    %2394 = vmatpush1.xpose.msra.mxu0 0.0
    %2395 = vmatprep.subr.mxu0 0.0
    %2396 = vmatpush1.xpose.msra.mxu0 0.0
    %2397 = vmatprep.subr.mxu0 0.0
    %2398 = vmatpush1.xpose.msra.mxu0 0.0
    %2399 = vmatprep.subr.mxu0 0.0
    %2400 = vmatpush1.xpose.msra.mxu0 0.0
    %2401 = vmatprep.subr.mxu0 0.0
    %2402 = vmatpush1.xpose.msra.mxu0 0.0
    %2403 = vmatprep.mubr.f32.mxu0 0.0
    %2404 = vmatmul.mubr.f32.gmra.mrb[0].mxu0 %v2335
    %v2405 = vpop.f32.mrb[0].mxu0
    %v2406 = vadd.f32 0.0, %v2405
    %v2407 = vpop.f32.mrb[0].mxu0
    %2408 = vdwg.mxu0
    %2409 = vrot.lane.b32.xlu0 %v1996, 124
    %v2410 = vpop.permute.xlu0 %2409
    %2411 = vrot.lane.b32.xlu0 %v1996, 108
    %v2412 = vpop.permute.xlu0 %2411
    %v2413 = vsel %vm173, %v2410, 0
    %v2415 = vsel %vm173, %v2412, 0
    %2417 = vmatprep.subr.mxu0 0.0
    %2418 = vmatpush1.xpose.msra.mxu0 %v2415
    %2419 = vmatprep.subr.mxu0 0.0
    %2420 = vmatpush1.xpose.msra.mxu0 0.0
    %2421 = vmatprep.subr.mxu0 0.0
    %2422 = vmatpush1.xpose.msra.mxu0 0.0
    %2423 = vmatprep.subr.mxu0 0.0
    %2424 = vmatpush1.xpose.msra.mxu0 0.0
    %2425 = vmatprep.subr.mxu0 0.0
    %2426 = vmatpush1.xpose.msra.mxu0 0.0
    %2427 = vmatprep.subr.mxu0 0.0
    %2428 = vmatpush1.xpose.msra.mxu0 0.0
    %2429 = vmatprep.subr.mxu0 0.0
    %2430 = vmatpush1.xpose.msra.mxu0 0.0
    %2431 = vmatprep.subr.mxu0 0.0
    %2432 = vmatpush1.xpose.msra.mxu0 0.0
    %2433 = vmatprep.subr.mxu0 0.0
    %2434 = vmatpush1.xpose.msra.mxu0 0.0
    %2435 = vmatprep.subr.mxu0 0.0
    %2436 = vmatpush1.xpose.msra.mxu0 0.0
    %2437 = vmatprep.subr.mxu0 0.0
    %2438 = vmatpush1.xpose.msra.mxu0 0.0
    %2439 = vmatprep.subr.mxu0 0.0
    %2440 = vmatpush1.xpose.msra.mxu0 0.0
    %2441 = vmatprep.subr.mxu0 0.0
    %2442 = vmatpush1.xpose.msra.mxu0 0.0
    %2443 = vmatprep.subr.mxu0 0.0
    %2444 = vmatpush1.xpose.msra.mxu0 0.0
    %2445 = vmatprep.subr.mxu0 0.0
    %2446 = vmatpush1.xpose.msra.mxu0 0.0
    %2447 = vmatprep.subr.mxu0 0.0
    %2448 = vmatpush1.xpose.msra.mxu0 0.0
    %2449 = vmatprep.subr.mxu0 0.0
    %2450 = vmatpush1.xpose.msra.mxu0 0.0
    %2451 = vmatprep.subr.mxu0 0.0
    %2452 = vmatpush1.xpose.msra.mxu0 0.0
    %2453 = vmatprep.subr.mxu0 0.0
    %2454 = vmatpush1.xpose.msra.mxu0 0.0
    %2455 = vmatprep.subr.mxu0 0.0
    %2456 = vmatpush1.xpose.msra.mxu0 0.0
    %2457 = vmatprep.subr.mxu0 0.0
    %2458 = vmatpush1.xpose.msra.mxu0 0.0
    %2459 = vmatprep.subr.mxu0 0.0
    %2460 = vmatpush1.xpose.msra.mxu0 0.0
    %2461 = vmatprep.subr.mxu0 0.0
    %2462 = vmatpush1.xpose.msra.mxu0 0.0
    %2463 = vmatprep.subr.mxu0 0.0
    %2464 = vmatpush1.xpose.msra.mxu0 0.0
    %2465 = vmatprep.subr.mxu0 0.0
    %2466 = vmatpush1.xpose.msra.mxu0 0.0
    %2467 = vmatprep.subr.mxu0 0.0
    %2468 = vmatpush1.xpose.msra.mxu0 0.0
    %2469 = vmatprep.subr.mxu0 0.0
    %2470 = vmatpush1.xpose.msra.mxu0 0.0
    %2471 = vmatprep.subr.mxu0 0.0
    %2472 = vmatpush1.xpose.msra.mxu0 0.0
    %2473 = vmatprep.subr.mxu0 0.0
    %2474 = vmatpush1.xpose.msra.mxu0 0.0
    %2475 = vmatprep.subr.mxu0 0.0
    %2476 = vmatpush1.xpose.msra.mxu0 0.0
    %2477 = vmatprep.subr.mxu0 0.0
    %2478 = vmatpush1.xpose.msra.mxu0 0.0
    %2479 = vmatprep.subr.mxu0 0.0
    %2480 = vmatpush1.xpose.msra.mxu0 0.0
    %2481 = vmatprep.mubr.f32.mxu0 0.0
    %2482 = vmatmul.mubr.f32.gmra.mrb[0].mxu0 %v2413
    %v2483 = vpop.f32.mrb[0].mxu0
    %v2484 = vadd.f32 0.0, %v2483
    %v2485 = vpop.f32.mrb[0].mxu0
    %2486 = vdwg.mxu0
    %v2487 = vmul.f32 %v2406, 0.5
    %v2488 = vmul.f32 %v2484, 0.5
    %v2489 = vsel %vm328, %v2487, -inf
    %v2490 = vsel %vm328, %v2488, -inf
    %v2491 = vsel %vm331, %v2489, -inf
    %2492 = vmax.xlane.f32.xlu0 %v2491
    %v2493 = vpop.xlane.xlu0 %2492
    %v2494 = vsel %vm331, %v2490, -inf
    %2495 = vmax.xlane.f32.xlu0 %v2494
    %v2496 = vpop.xlane.xlu0 %2495
    %v2497 = vsub.f32 %v2489, %v2493
    %v2498 = vsub.f32 %v2490, %v2496
    %v2499 = vmul.f32 %v2497, 1.442695
    %v2500 = vpow.pop %v2499
    %v2501 = vmul.f32 %v2498, 1.442695
    %v2502 = vpow.pop %v2501
    %v2503 = vsel %vm331, %v2500, 0.0
    %2504 = vadd.xlane.f32.xlu0 %v2503
    %v2505 = vpop.xlane.xlu0 %2504
    %v2506 = vsel %vm331, %v2502, 0.0
    %2507 = vadd.xlane.f32.xlu0 %v2506
    %v2508 = vpop.xlane.xlu0 %2507
    %v2509 = vrcp.pop %v2505
    %v2510 = vmul.f32 %v2500, %v2509
    %v2511 = vrcp.pop %v2508
    %v2512 = vmul.f32 %v2502, %v2511
    %2513 = vrot.lane.b32.xlu0 %v1991, 92
    %v2514 = vpop.permute.xlu0 %2513
    %v2517 = vsel %vm331, %v2510, 0
    %2519 = vmatprep.subr.mxu0 0.0
    %2520 = vmatpush1.msra.mxu0 %v2514
    %2521 = vmatprep.subr.mxu0 0.0
    %2522 = vmatpush1.msra.mxu0 0.0
    %2523 = vmatprep.subr.mxu0 0.0
    %2524 = vmatpush1.msra.mxu0 0.0
    %2525 = vmatprep.subr.mxu0 0.0
    %2526 = vmatpush1.msra.mxu0 0.0
    %2527 = vmatprep.subr.mxu0 0.0
    %2528 = vmatpush1.msra.mxu0 0.0
    %2529 = vmatprep.subr.mxu0 0.0
    %2530 = vmatpush1.msra.mxu0 0.0
    %2531 = vmatprep.subr.mxu0 0.0
    %2532 = vmatpush1.msra.mxu0 0.0
    %2533 = vmatprep.subr.mxu0 0.0
    %2534 = vmatpush1.msra.mxu0 0.0
    %2535 = vmatprep.subr.mxu0 0.0
    %2536 = vmatpush1.msra.mxu0 0.0
    %2537 = vmatprep.subr.mxu0 0.0
    %2538 = vmatpush1.msra.mxu0 0.0
    %2539 = vmatprep.subr.mxu0 0.0
    %2540 = vmatpush1.msra.mxu0 0.0
    %2541 = vmatprep.subr.mxu0 0.0
    %2542 = vmatpush1.msra.mxu0 0.0
    %2543 = vmatprep.subr.mxu0 0.0
    %2544 = vmatpush1.msra.mxu0 0.0
    %2545 = vmatprep.subr.mxu0 0.0
    %2546 = vmatpush1.msra.mxu0 0.0
    %2547 = vmatprep.subr.mxu0 0.0
    %2548 = vmatpush1.msra.mxu0 0.0
    %2549 = vmatprep.subr.mxu0 0.0
    %2550 = vmatpush1.msra.mxu0 0.0
    %2551 = vmatprep.subr.mxu0 0.0
    %2552 = vmatpush1.msra.mxu0 0.0
    %2553 = vmatprep.subr.mxu0 0.0
    %2554 = vmatpush1.msra.mxu0 0.0
    %2555 = vmatprep.subr.mxu0 0.0
    %2556 = vmatpush1.msra.mxu0 0.0
    %2557 = vmatprep.subr.mxu0 0.0
    %2558 = vmatpush1.msra.mxu0 0.0
    %2559 = vmatprep.subr.mxu0 0.0
    %2560 = vmatpush1.msra.mxu0 0.0
    %2561 = vmatprep.subr.mxu0 0.0
    %2562 = vmatpush1.msra.mxu0 0.0
    %2563 = vmatprep.subr.mxu0 0.0
    %2564 = vmatpush1.msra.mxu0 0.0
    %2565 = vmatprep.subr.mxu0 0.0
    %2566 = vmatpush1.msra.mxu0 0.0
    %2567 = vmatprep.subr.mxu0 0.0
    %2568 = vmatpush1.msra.mxu0 0.0
    %2569 = vmatprep.subr.mxu0 0.0
    %2570 = vmatpush1.msra.mxu0 0.0
    %2571 = vmatprep.subr.mxu0 0.0
    %2572 = vmatpush1.msra.mxu0 0.0
    %2573 = vmatprep.subr.mxu0 0.0
    %2574 = vmatpush1.msra.mxu0 0.0
    %2575 = vmatprep.subr.mxu0 0.0
    %2576 = vmatpush1.msra.mxu0 0.0
    %2577 = vmatprep.subr.mxu0 0.0
    %2578 = vmatpush1.msra.mxu0 0.0
    %2579 = vmatprep.subr.mxu0 0.0
    %2580 = vmatpush1.msra.mxu0 0.0
    %2581 = vmatprep.subr.mxu0 0.0
    %2582 = vmatpush1.msra.mxu0 0.0
    %2583 = vmatprep.mubr.f32.mxu0 0.0
    %2584 = vmatmul.mubr.f32.gmra.mrb[0].mxu0 %v2517
    %v2585 = vpop.f32.mrb[0].mxu0
    %v2586 = vadd.f32 0.0, %v2585
    %v2587 = vpop.f32.mrb[0].mxu0
    %2588 = vdwg.mxu0
    %2589 = vrot.lane.b32.xlu0 %v1996, 92
    %v2590 = vpop.permute.xlu0 %2589
    %v2593 = vsel %vm331, %v2512, 0
    %2595 = vmatprep.subr.mxu0 0.0
    %2596 = vmatpush1.msra.mxu0 %v2590
    %2597 = vmatprep.subr.mxu0 0.0
    %2598 = vmatpush1.msra.mxu0 0.0
    %2599 = vmatprep.subr.mxu0 0.0
    %2600 = vmatpush1.msra.mxu0 0.0
    %2601 = vmatprep.subr.mxu0 0.0
    %2602 = vmatpush1.msra.mxu0 0.0
    %2603 = vmatprep.subr.mxu0 0.0
    %2604 = vmatpush1.msra.mxu0 0.0
    %2605 = vmatprep.subr.mxu0 0.0
    %2606 = vmatpush1.msra.mxu0 0.0
    %2607 = vmatprep.subr.mxu0 0.0
    %2608 = vmatpush1.msra.mxu0 0.0
    %2609 = vmatprep.subr.mxu0 0.0
    %2610 = vmatpush1.msra.mxu0 0.0
    %2611 = vmatprep.subr.mxu0 0.0
    %2612 = vmatpush1.msra.mxu0 0.0
    %2613 = vmatprep.subr.mxu0 0.0
    %2614 = vmatpush1.msra.mxu0 0.0
    %2615 = vmatprep.subr.mxu0 0.0
    %2616 = vmatpush1.msra.mxu0 0.0
    %2617 = vmatprep.subr.mxu0 0.0
    %2618 = vmatpush1.msra.mxu0 0.0
    %2619 = vmatprep.subr.mxu0 0.0
    %2620 = vmatpush1.msra.mxu0 0.0
    %2621 = vmatprep.subr.mxu0 0.0
    %2622 = vmatpush1.msra.mxu0 0.0
    %2623 = vmatprep.subr.mxu0 0.0
    %2624 = vmatpush1.msra.mxu0 0.0
    %2625 = vmatprep.subr.mxu0 0.0
    %2626 = vmatpush1.msra.mxu0 0.0
    %2627 = vmatprep.subr.mxu0 0.0
    %2628 = vmatpush1.msra.mxu0 0.0
    %2629 = vmatprep.subr.mxu0 0.0
    %2630 = vmatpush1.msra.mxu0 0.0
    %2631 = vmatprep.subr.mxu0 0.0
    %2632 = vmatpush1.msra.mxu0 0.0
    %2633 = vmatprep.subr.mxu0 0.0
    %2634 = vmatpush1.msra.mxu0 0.0
    %2635 = vmatprep.subr.mxu0 0.0
    %2636 = vmatpush1.msra.mxu0 0.0
    %2637 = vmatprep.subr.mxu0 0.0
    %2638 = vmatpush1.msra.mxu0 0.0
    %2639 = vmatprep.subr.mxu0 0.0
    %2640 = vmatpush1.msra.mxu0 0.0
    %2641 = vmatprep.subr.mxu0 0.0
    %2642 = vmatpush1.msra.mxu0 0.0
    %2643 = vmatprep.subr.mxu0 0.0
    %2644 = vmatpush1.msra.mxu0 0.0
    %2645 = vmatprep.subr.mxu0 0.0
    %2646 = vmatpush1.msra.mxu0 0.0
    %2647 = vmatprep.subr.mxu0 0.0
    %2648 = vmatpush1.msra.mxu0 0.0
    %2649 = vmatprep.subr.mxu0 0.0
    %2650 = vmatpush1.msra.mxu0 0.0
    %2651 = vmatprep.subr.mxu0 0.0
    %2652 = vmatpush1.msra.mxu0 0.0
    %2653 = vmatprep.subr.mxu0 0.0
    %2654 = vmatpush1.msra.mxu0 0.0
    %2655 = vmatprep.subr.mxu0 0.0
    %2656 = vmatpush1.msra.mxu0 0.0
    %2657 = vmatprep.subr.mxu0 0.0
    %2658 = vmatpush1.msra.mxu0 0.0
    %2659 = vmatprep.mubr.f32.mxu0 0.0
    %2660 = vmatmul.mubr.f32.gmra.mrb[0].mxu0 %v2593
    %v2661 = vpop.f32.mrb[0].mxu0
    %v2662 = vadd.f32 0.0, %v2661
    %v2663 = vpop.f32.mrb[0].mxu0
    %2664 = vdwg.mxu0
    %2665 = vrot.lane.b32.xlu0 %v1991, 120
    %v2666 = vpop.permute.xlu0 %2665
    %2667 = vrot.lane.b32.xlu0 %v1991, 104
    %v2668 = vpop.permute.xlu0 %2667
    %v2669 = vsel %vm173, %v2666, 0
    %v2671 = vsel %vm173, %v2668, 0
    %2673 = vmatprep.subr.mxu0 0.0
    %2674 = vmatpush1.xpose.msra.mxu0 %v2671
    %2675 = vmatprep.subr.mxu0 0.0
    %2676 = vmatpush1.xpose.msra.mxu0 0.0
    %2677 = vmatprep.subr.mxu0 0.0
    %2678 = vmatpush1.xpose.msra.mxu0 0.0
    %2679 = vmatprep.subr.mxu0 0.0
    %2680 = vmatpush1.xpose.msra.mxu0 0.0
    %2681 = vmatprep.subr.mxu0 0.0
    %2682 = vmatpush1.xpose.msra.mxu0 0.0
    %2683 = vmatprep.subr.mxu0 0.0
    %2684 = vmatpush1.xpose.msra.mxu0 0.0
    %2685 = vmatprep.subr.mxu0 0.0
    %2686 = vmatpush1.xpose.msra.mxu0 0.0
    %2687 = vmatprep.subr.mxu0 0.0
    %2688 = vmatpush1.xpose.msra.mxu0 0.0
    %2689 = vmatprep.subr.mxu0 0.0
    %2690 = vmatpush1.xpose.msra.mxu0 0.0
    %2691 = vmatprep.subr.mxu0 0.0
    %2692 = vmatpush1.xpose.msra.mxu0 0.0
    %2693 = vmatprep.subr.mxu0 0.0
    %2694 = vmatpush1.xpose.msra.mxu0 0.0
    %2695 = vmatprep.subr.mxu0 0.0
    %2696 = vmatpush1.xpose.msra.mxu0 0.0
    %2697 = vmatprep.subr.mxu0 0.0
    %2698 = vmatpush1.xpose.msra.mxu0 0.0
    %2699 = vmatprep.subr.mxu0 0.0
    %2700 = vmatpush1.xpose.msra.mxu0 0.0
    %2701 = vmatprep.subr.mxu0 0.0
    %2702 = vmatpush1.xpose.msra.mxu0 0.0
    %2703 = vmatprep.subr.mxu0 0.0
    %2704 = vmatpush1.xpose.msra.mxu0 0.0
    %2705 = vmatprep.subr.mxu0 0.0
    %2706 = vmatpush1.xpose.msra.mxu0 0.0
    %2707 = vmatprep.subr.mxu0 0.0
    %2708 = vmatpush1.xpose.msra.mxu0 0.0
    %2709 = vmatprep.subr.mxu0 0.0
    %2710 = vmatpush1.xpose.msra.mxu0 0.0
    %2711 = vmatprep.subr.mxu0 0.0
    %2712 = vmatpush1.xpose.msra.mxu0 0.0
    %2713 = vmatprep.subr.mxu0 0.0
    %2714 = vmatpush1.xpose.msra.mxu0 0.0
    %2715 = vmatprep.subr.mxu0 0.0
    %2716 = vmatpush1.xpose.msra.mxu0 0.0
    %2717 = vmatprep.subr.mxu0 0.0
    %2718 = vmatpush1.xpose.msra.mxu0 0.0
    %2719 = vmatprep.subr.mxu0 0.0
    %2720 = vmatpush1.xpose.msra.mxu0 0.0
    %2721 = vmatprep.subr.mxu0 0.0
    %2722 = vmatpush1.xpose.msra.mxu0 0.0
    %2723 = vmatprep.subr.mxu0 0.0
    %2724 = vmatpush1.xpose.msra.mxu0 0.0
    %2725 = vmatprep.subr.mxu0 0.0
    %2726 = vmatpush1.xpose.msra.mxu0 0.0
    %2727 = vmatprep.subr.mxu0 0.0
    %2728 = vmatpush1.xpose.msra.mxu0 0.0
    %2729 = vmatprep.subr.mxu0 0.0
    %2730 = vmatpush1.xpose.msra.mxu0 0.0
    %2731 = vmatprep.subr.mxu0 0.0
    %2732 = vmatpush1.xpose.msra.mxu0 0.0
    %2733 = vmatprep.subr.mxu0 0.0
    %2734 = vmatpush1.xpose.msra.mxu0 0.0
    %2735 = vmatprep.subr.mxu0 0.0
    %2736 = vmatpush1.xpose.msra.mxu0 0.0
    %2737 = vmatprep.mubr.f32.mxu0 0.0
    %2738 = vmatmul.mubr.f32.gmra.mrb[0].mxu0 %v2669
    %v2739 = vpop.f32.mrb[0].mxu0
    %v2740 = vadd.f32 0.0, %v2739
    %v2741 = vpop.f32.mrb[0].mxu0
    %2742 = vdwg.mxu0
    %2743 = vrot.lane.b32.xlu0 %v1996, 120
    %v2744 = vpop.permute.xlu0 %2743
    %2745 = vrot.lane.b32.xlu0 %v1996, 104
    %v2746 = vpop.permute.xlu0 %2745
    %v2747 = vsel %vm173, %v2744, 0
    %v2749 = vsel %vm173, %v2746, 0
    %2751 = vmatprep.subr.mxu0 0.0
    %2752 = vmatpush1.xpose.msra.mxu0 %v2749
    %2753 = vmatprep.subr.mxu0 0.0
    %2754 = vmatpush1.xpose.msra.mxu0 0.0
    %2755 = vmatprep.subr.mxu0 0.0
    %2756 = vmatpush1.xpose.msra.mxu0 0.0
    %2757 = vmatprep.subr.mxu0 0.0
    %2758 = vmatpush1.xpose.msra.mxu0 0.0
    %2759 = vmatprep.subr.mxu0 0.0
    %2760 = vmatpush1.xpose.msra.mxu0 0.0
    %2761 = vmatprep.subr.mxu0 0.0
    %2762 = vmatpush1.xpose.msra.mxu0 0.0
    %2763 = vmatprep.subr.mxu0 0.0
    %2764 = vmatpush1.xpose.msra.mxu0 0.0
    %2765 = vmatprep.subr.mxu0 0.0
    %2766 = vmatpush1.xpose.msra.mxu0 0.0
    %2767 = vmatprep.subr.mxu0 0.0
    %2768 = vmatpush1.xpose.msra.mxu0 0.0
    %2769 = vmatprep.subr.mxu0 0.0
    %2770 = vmatpush1.xpose.msra.mxu0 0.0
    %2771 = vmatprep.subr.mxu0 0.0
    %2772 = vmatpush1.xpose.msra.mxu0 0.0
    %2773 = vmatprep.subr.mxu0 0.0
    %2774 = vmatpush1.xpose.msra.mxu0 0.0
    %2775 = vmatprep.subr.mxu0 0.0
    %2776 = vmatpush1.xpose.msra.mxu0 0.0
    %2777 = vmatprep.subr.mxu0 0.0
    %2778 = vmatpush1.xpose.msra.mxu0 0.0
    %2779 = vmatprep.subr.mxu0 0.0
    %2780 = vmatpush1.xpose.msra.mxu0 0.0
    %2781 = vmatprep.subr.mxu0 0.0
    %2782 = vmatpush1.xpose.msra.mxu0 0.0
    %2783 = vmatprep.subr.mxu0 0.0
    %2784 = vmatpush1.xpose.msra.mxu0 0.0
    %2785 = vmatprep.subr.mxu0 0.0
    %2786 = vmatpush1.xpose.msra.mxu0 0.0
    %2787 = vmatprep.subr.mxu0 0.0
    %2788 = vmatpush1.xpose.msra.mxu0 0.0
    %2789 = vmatprep.subr.mxu0 0.0
    %2790 = vmatpush1.xpose.msra.mxu0 0.0
    %2791 = vmatprep.subr.mxu0 0.0
    %2792 = vmatpush1.xpose.msra.mxu0 0.0
    %2793 = vmatprep.subr.mxu0 0.0
    %2794 = vmatpush1.xpose.msra.mxu0 0.0
    %2795 = vmatprep.subr.mxu0 0.0
    %2796 = vmatpush1.xpose.msra.mxu0 0.0
    %2797 = vmatprep.subr.mxu0 0.0
    %2798 = vmatpush1.xpose.msra.mxu0 0.0
    %2799 = vmatprep.subr.mxu0 0.0
    %2800 = vmatpush1.xpose.msra.mxu0 0.0
    %2801 = vmatprep.subr.mxu0 0.0
    %2802 = vmatpush1.xpose.msra.mxu0 0.0
    %2803 = vmatprep.subr.mxu0 0.0
    %2804 = vmatpush1.xpose.msra.mxu0 0.0
    %2805 = vmatprep.subr.mxu0 0.0
    %2806 = vmatpush1.xpose.msra.mxu0 0.0
    %2807 = vmatprep.subr.mxu0 0.0
    %2808 = vmatpush1.xpose.msra.mxu0 0.0
    %2809 = vmatprep.subr.mxu0 0.0
    %2810 = vmatpush1.xpose.msra.mxu0 0.0
    %2811 = vmatprep.subr.mxu0 0.0
    %2812 = vmatpush1.xpose.msra.mxu0 0.0
    %2813 = vmatprep.subr.mxu0 0.0
    %2814 = vmatpush1.xpose.msra.mxu0 0.0
    %2815 = vmatprep.mubr.f32.mxu0 0.0
    %2816 = vmatmul.mubr.f32.gmra.mrb[0].mxu0 %v2747
    %v2817 = vpop.f32.mrb[0].mxu0
    %v2818 = vadd.f32 0.0, %v2817
    %v2819 = vpop.f32.mrb[0].mxu0
    %2820 = vdwg.mxu0
    %v2821 = vmul.f32 %v2740, 0.5
    %v2822 = vmul.f32 %v2818, 0.5
    %v2823 = vsel %vm328, %v2821, -inf
    %v2824 = vsel %vm328, %v2822, -inf
    %v2825 = vsel %vm331, %v2823, -inf
    %2826 = vmax.xlane.f32.xlu0 %v2825
    %v2827 = vpop.xlane.xlu0 %2826
    %v2828 = vsel %vm331, %v2824, -inf
    %2829 = vmax.xlane.f32.xlu0 %v2828
    %v2830 = vpop.xlane.xlu0 %2829
    %v2831 = vsub.f32 %v2823, %v2827
    %v2832 = vsub.f32 %v2824, %v2830
    %v2833 = vmul.f32 %v2831, 1.442695
    %v2834 = vpow.pop %v2833
    %v2835 = vmul.f32 %v2832, 1.442695
    %v2836 = vpow.pop %v2835
    %v2837 = vsel %vm331, %v2834, 0.0
    %2838 = vadd.xlane.f32.xlu0 %v2837
    %v2839 = vpop.xlane.xlu0 %2838
    %v2840 = vsel %vm331, %v2836, 0.0
    %2841 = vadd.xlane.f32.xlu0 %v2840
    %v2842 = vpop.xlane.xlu0 %2841
    %v2843 = vrcp.pop %v2839
    %v2844 = vmul.f32 %v2834, %v2843
    %v2845 = vrcp.pop %v2842
    %v2846 = vmul.f32 %v2836, %v2845
    %2847 = vrot.lane.b32.xlu0 %v1991, 88
    %v2848 = vpop.permute.xlu0 %2847
    %v2851 = vsel %vm331, %v2844, 0
    %2853 = vmatprep.subr.mxu0 0.0
    %2854 = vmatpush1.msra.mxu0 %v2848
    %2855 = vmatprep.subr.mxu0 0.0
    %2856 = vmatpush1.msra.mxu0 0.0
    %2857 = vmatprep.subr.mxu0 0.0
    %2858 = vmatpush1.msra.mxu0 0.0
    %2859 = vmatprep.subr.mxu0 0.0
    %2860 = vmatpush1.msra.mxu0 0.0
    %2861 = vmatprep.subr.mxu0 0.0
    %2862 = vmatpush1.msra.mxu0 0.0
    %2863 = vmatprep.subr.mxu0 0.0
    %2864 = vmatpush1.msra.mxu0 0.0
    %2865 = vmatprep.subr.mxu0 0.0
    %2866 = vmatpush1.msra.mxu0 0.0
    %2867 = vmatprep.subr.mxu0 0.0
    %2868 = vmatpush1.msra.mxu0 0.0
    %2869 = vmatprep.subr.mxu0 0.0
    %2870 = vmatpush1.msra.mxu0 0.0
    %2871 = vmatprep.subr.mxu0 0.0
    %2872 = vmatpush1.msra.mxu0 0.0
    %2873 = vmatprep.subr.mxu0 0.0
    %2874 = vmatpush1.msra.mxu0 0.0
    %2875 = vmatprep.subr.mxu0 0.0
    %2876 = vmatpush1.msra.mxu0 0.0
    %2877 = vmatprep.subr.mxu0 0.0
    %2878 = vmatpush1.msra.mxu0 0.0
    %2879 = vmatprep.subr.mxu0 0.0
    %2880 = vmatpush1.msra.mxu0 0.0
    %2881 = vmatprep.subr.mxu0 0.0
    %2882 = vmatpush1.msra.mxu0 0.0
    %2883 = vmatprep.subr.mxu0 0.0
    %2884 = vmatpush1.msra.mxu0 0.0
    %2885 = vmatprep.subr.mxu0 0.0
    %2886 = vmatpush1.msra.mxu0 0.0
    %2887 = vmatprep.subr.mxu0 0.0
    %2888 = vmatpush1.msra.mxu0 0.0
    %2889 = vmatprep.subr.mxu0 0.0
    %2890 = vmatpush1.msra.mxu0 0.0
    %2891 = vmatprep.subr.mxu0 0.0
    %2892 = vmatpush1.msra.mxu0 0.0
    %2893 = vmatprep.subr.mxu0 0.0
    %2894 = vmatpush1.msra.mxu0 0.0
    %2895 = vmatprep.subr.mxu0 0.0
    %2896 = vmatpush1.msra.mxu0 0.0
    %2897 = vmatprep.subr.mxu0 0.0
    %2898 = vmatpush1.msra.mxu0 0.0
    %2899 = vmatprep.subr.mxu0 0.0
    %2900 = vmatpush1.msra.mxu0 0.0
    %2901 = vmatprep.subr.mxu0 0.0
    %2902 = vmatpush1.msra.mxu0 0.0
    %2903 = vmatprep.subr.mxu0 0.0
    %2904 = vmatpush1.msra.mxu0 0.0
    %2905 = vmatprep.subr.mxu0 0.0
    %2906 = vmatpush1.msra.mxu0 0.0
    %2907 = vmatprep.subr.mxu0 0.0
    %2908 = vmatpush1.msra.mxu0 0.0
    %2909 = vmatprep.subr.mxu0 0.0
    %2910 = vmatpush1.msra.mxu0 0.0
    %2911 = vmatprep.subr.mxu0 0.0
    %2912 = vmatpush1.msra.mxu0 0.0
    %2913 = vmatprep.subr.mxu0 0.0
    %2914 = vmatpush1.msra.mxu0 0.0
    %2915 = vmatprep.subr.mxu0 0.0
    %2916 = vmatpush1.msra.mxu0 0.0
    %2917 = vmatprep.mubr.f32.mxu0 0.0
    %2918 = vmatmul.mubr.f32.gmra.mrb[0].mxu0 %v2851
    %v2919 = vpop.f32.mrb[0].mxu0
    %v2920 = vadd.f32 0.0, %v2919
    %v2921 = vpop.f32.mrb[0].mxu0
    %2922 = vdwg.mxu0
    %2923 = vrot.lane.b32.xlu0 %v1996, 88
    %v2924 = vpop.permute.xlu0 %2923
    %v2927 = vsel %vm331, %v2846, 0
    %2929 = vmatprep.subr.mxu0 0.0
    %2930 = vmatpush1.msra.mxu0 %v2924
    %2931 = vmatprep.subr.mxu0 0.0
    %2932 = vmatpush1.msra.mxu0 0.0
    %2933 = vmatprep.subr.mxu0 0.0
    %2934 = vmatpush1.msra.mxu0 0.0
    %2935 = vmatprep.subr.mxu0 0.0
    %2936 = vmatpush1.msra.mxu0 0.0
    %2937 = vmatprep.subr.mxu0 0.0
    %2938 = vmatpush1.msra.mxu0 0.0
    %2939 = vmatprep.subr.mxu0 0.0
    %2940 = vmatpush1.msra.mxu0 0.0
    %2941 = vmatprep.subr.mxu0 0.0
    %2942 = vmatpush1.msra.mxu0 0.0
    %2943 = vmatprep.subr.mxu0 0.0
    %2944 = vmatpush1.msra.mxu0 0.0
    %2945 = vmatprep.subr.mxu0 0.0
    %2946 = vmatpush1.msra.mxu0 0.0
    %2947 = vmatprep.subr.mxu0 0.0
    %2948 = vmatpush1.msra.mxu0 0.0
    %2949 = vmatprep.subr.mxu0 0.0
    %2950 = vmatpush1.msra.mxu0 0.0
    %2951 = vmatprep.subr.mxu0 0.0
    %2952 = vmatpush1.msra.mxu0 0.0
    %2953 = vmatprep.subr.mxu0 0.0
    %2954 = vmatpush1.msra.mxu0 0.0
    %2955 = vmatprep.subr.mxu0 0.0
    %2956 = vmatpush1.msra.mxu0 0.0
    %2957 = vmatprep.subr.mxu0 0.0
    %2958 = vmatpush1.msra.mxu0 0.0
    %2959 = vmatprep.subr.mxu0 0.0
    %2960 = vmatpush1.msra.mxu0 0.0
    %2961 = vmatprep.subr.mxu0 0.0
    %2962 = vmatpush1.msra.mxu0 0.0
    %2963 = vmatprep.subr.mxu0 0.0
    %2964 = vmatpush1.msra.mxu0 0.0
    %2965 = vmatprep.subr.mxu0 0.0
    %2966 = vmatpush1.msra.mxu0 0.0
    %2967 = vmatprep.subr.mxu0 0.0
    %2968 = vmatpush1.msra.mxu0 0.0
    %2969 = vmatprep.subr.mxu0 0.0
    %2970 = vmatpush1.msra.mxu0 0.0
    %2971 = vmatprep.subr.mxu0 0.0
    %2972 = vmatpush1.msra.mxu0 0.0
    %2973 = vmatprep.subr.mxu0 0.0
    %2974 = vmatpush1.msra.mxu0 0.0
    %2975 = vmatprep.subr.mxu0 0.0
    %2976 = vmatpush1.msra.mxu0 0.0
    %2977 = vmatprep.subr.mxu0 0.0
    %2978 = vmatpush1.msra.mxu0 0.0
    %2979 = vmatprep.subr.mxu0 0.0
    %2980 = vmatpush1.msra.mxu0 0.0
    %2981 = vmatprep.subr.mxu0 0.0
    %2982 = vmatpush1.msra.mxu0 0.0
    %2983 = vmatprep.subr.mxu0 0.0
    %2984 = vmatpush1.msra.mxu0 0.0
    %2985 = vmatprep.subr.mxu0 0.0
    %2986 = vmatpush1.msra.mxu0 0.0
    %2987 = vmatprep.subr.mxu0 0.0
    %2988 = vmatpush1.msra.mxu0 0.0
    %2989 = vmatprep.subr.mxu0 0.0
    %2990 = vmatpush1.msra.mxu0 0.0
    %2991 = vmatprep.subr.mxu0 0.0
    %2992 = vmatpush1.msra.mxu0 0.0
    %2993 = vmatprep.mubr.f32.mxu0 0.0
    %2994 = vmatmul.mubr.f32.gmra.mrb[0].mxu0 %v2927
    %v2995 = vpop.f32.mrb[0].mxu0
    %v2996 = vadd.f32 0.0, %v2995
    %v2997 = vpop.f32.mrb[0].mxu0
    %2998 = vdwg.mxu0
    %2999 = vrot.lane.b32.xlu0 %v1991, 116
    %v3000 = vpop.permute.xlu0 %2999
    %3001 = vrot.lane.b32.xlu0 %v1991, 100
    %v3002 = vpop.permute.xlu0 %3001
    %v3003 = vsel %vm173, %v3000, 0
    %v3005 = vsel %vm173, %v3002, 0
    %3007 = vmatprep.subr.mxu0 0.0
    %3008 = vmatpush1.xpose.msra.mxu0 %v3005
    %3009 = vmatprep.subr.mxu0 0.0
    %3010 = vmatpush1.xpose.msra.mxu0 0.0
    %3011 = vmatprep.subr.mxu0 0.0
    %3012 = vmatpush1.xpose.msra.mxu0 0.0
    %3013 = vmatprep.subr.mxu0 0.0
    %3014 = vmatpush1.xpose.msra.mxu0 0.0
    %3015 = vmatprep.subr.mxu0 0.0
    %3016 = vmatpush1.xpose.msra.mxu0 0.0
    %3017 = vmatprep.subr.mxu0 0.0
    %3018 = vmatpush1.xpose.msra.mxu0 0.0
    %3019 = vmatprep.subr.mxu0 0.0
    %3020 = vmatpush1.xpose.msra.mxu0 0.0
    %3021 = vmatprep.subr.mxu0 0.0
    %3022 = vmatpush1.xpose.msra.mxu0 0.0
    %3023 = vmatprep.subr.mxu0 0.0
    %3024 = vmatpush1.xpose.msra.mxu0 0.0
    %3025 = vmatprep.subr.mxu0 0.0
    %3026 = vmatpush1.xpose.msra.mxu0 0.0
    %3027 = vmatprep.subr.mxu0 0.0
    %3028 = vmatpush1.xpose.msra.mxu0 0.0
    %3029 = vmatprep.subr.mxu0 0.0
    %3030 = vmatpush1.xpose.msra.mxu0 0.0
    %3031 = vmatprep.subr.mxu0 0.0
    %3032 = vmatpush1.xpose.msra.mxu0 0.0
    %3033 = vmatprep.subr.mxu0 0.0
    %3034 = vmatpush1.xpose.msra.mxu0 0.0
    %3035 = vmatprep.subr.mxu0 0.0
    %3036 = vmatpush1.xpose.msra.mxu0 0.0
    %3037 = vmatprep.subr.mxu0 0.0
    %3038 = vmatpush1.xpose.msra.mxu0 0.0
    %3039 = vmatprep.subr.mxu0 0.0
    %3040 = vmatpush1.xpose.msra.mxu0 0.0
    %3041 = vmatprep.subr.mxu0 0.0
    %3042 = vmatpush1.xpose.msra.mxu0 0.0
    %3043 = vmatprep.subr.mxu0 0.0
    %3044 = vmatpush1.xpose.msra.mxu0 0.0
    %3045 = vmatprep.subr.mxu0 0.0
    %3046 = vmatpush1.xpose.msra.mxu0 0.0
    %3047 = vmatprep.subr.mxu0 0.0
    %3048 = vmatpush1.xpose.msra.mxu0 0.0
    %3049 = vmatprep.subr.mxu0 0.0
    %3050 = vmatpush1.xpose.msra.mxu0 0.0
    %3051 = vmatprep.subr.mxu0 0.0
    %3052 = vmatpush1.xpose.msra.mxu0 0.0
    %3053 = vmatprep.subr.mxu0 0.0
    %3054 = vmatpush1.xpose.msra.mxu0 0.0
    %3055 = vmatprep.subr.mxu0 0.0
    %3056 = vmatpush1.xpose.msra.mxu0 0.0
    %3057 = vmatprep.subr.mxu0 0.0
    %3058 = vmatpush1.xpose.msra.mxu0 0.0
    %3059 = vmatprep.subr.mxu0 0.0
    %3060 = vmatpush1.xpose.msra.mxu0 0.0
    %3061 = vmatprep.subr.mxu0 0.0
    %3062 = vmatpush1.xpose.msra.mxu0 0.0
    %3063 = vmatprep.subr.mxu0 0.0
    %3064 = vmatpush1.xpose.msra.mxu0 0.0
    %3065 = vmatprep.subr.mxu0 0.0
    %3066 = vmatpush1.xpose.msra.mxu0 0.0
    %3067 = vmatprep.subr.mxu0 0.0
    %3068 = vmatpush1.xpose.msra.mxu0 0.0
    %3069 = vmatprep.subr.mxu0 0.0
    %3070 = vmatpush1.xpose.msra.mxu0 0.0
    %3071 = vmatprep.mubr.f32.mxu0 0.0
    %3072 = vmatmul.mubr.f32.gmra.mrb[0].mxu0 %v3003
    %v3073 = vpop.f32.mrb[0].mxu0
    %v3074 = vadd.f32 0.0, %v3073
    %v3075 = vpop.f32.mrb[0].mxu0
    %3076 = vdwg.mxu0
    %3077 = vrot.lane.b32.xlu0 %v1996, 116
    %v3078 = vpop.permute.xlu0 %3077
    %3079 = vrot.lane.b32.xlu0 %v1996, 100
    %v3080 = vpop.permute.xlu0 %3079
    %v3081 = vsel %vm173, %v3078, 0
    %v3083 = vsel %vm173, %v3080, 0
    %3085 = vmatprep.subr.mxu0 0.0
    %3086 = vmatpush1.xpose.msra.mxu0 %v3083
    %3087 = vmatprep.subr.mxu0 0.0
    %3088 = vmatpush1.xpose.msra.mxu0 0.0
    %3089 = vmatprep.subr.mxu0 0.0
    %3090 = vmatpush1.xpose.msra.mxu0 0.0
    %3091 = vmatprep.subr.mxu0 0.0
    %3092 = vmatpush1.xpose.msra.mxu0 0.0
    %3093 = vmatprep.subr.mxu0 0.0
    %3094 = vmatpush1.xpose.msra.mxu0 0.0
    %3095 = vmatprep.subr.mxu0 0.0
    %3096 = vmatpush1.xpose.msra.mxu0 0.0
    %3097 = vmatprep.subr.mxu0 0.0
    %3098 = vmatpush1.xpose.msra.mxu0 0.0
    %3099 = vmatprep.subr.mxu0 0.0
    %3100 = vmatpush1.xpose.msra.mxu0 0.0
    %3101 = vmatprep.subr.mxu0 0.0
    %3102 = vmatpush1.xpose.msra.mxu0 0.0
    %3103 = vmatprep.subr.mxu0 0.0
    %3104 = vmatpush1.xpose.msra.mxu0 0.0
    %3105 = vmatprep.subr.mxu0 0.0
    %3106 = vmatpush1.xpose.msra.mxu0 0.0
    %3107 = vmatprep.subr.mxu0 0.0
    %3108 = vmatpush1.xpose.msra.mxu0 0.0
    %3109 = vmatprep.subr.mxu0 0.0
    %3110 = vmatpush1.xpose.msra.mxu0 0.0
    %3111 = vmatprep.subr.mxu0 0.0
    %3112 = vmatpush1.xpose.msra.mxu0 0.0
    %3113 = vmatprep.subr.mxu0 0.0
    %3114 = vmatpush1.xpose.msra.mxu0 0.0
    %3115 = vmatprep.subr.mxu0 0.0
    %3116 = vmatpush1.xpose.msra.mxu0 0.0
    %3117 = vmatprep.subr.mxu0 0.0
    %3118 = vmatpush1.xpose.msra.mxu0 0.0
    %3119 = vmatprep.subr.mxu0 0.0
    %3120 = vmatpush1.xpose.msra.mxu0 0.0
    %3121 = vmatprep.subr.mxu0 0.0
    %3122 = vmatpush1.xpose.msra.mxu0 0.0
    %3123 = vmatprep.subr.mxu0 0.0
    %3124 = vmatpush1.xpose.msra.mxu0 0.0
    %3125 = vmatprep.subr.mxu0 0.0
    %3126 = vmatpush1.xpose.msra.mxu0 0.0
    %3127 = vmatprep.subr.mxu0 0.0
    %3128 = vmatpush1.xpose.msra.mxu0 0.0
    %3129 = vmatprep.subr.mxu0 0.0
    %3130 = vmatpush1.xpose.msra.mxu0 0.0
    %3131 = vmatprep.subr.mxu0 0.0
    %3132 = vmatpush1.xpose.msra.mxu0 0.0
    %3133 = vmatprep.subr.mxu0 0.0
    %3134 = vmatpush1.xpose.msra.mxu0 0.0
    %3135 = vmatprep.subr.mxu0 0.0
    %3136 = vmatpush1.xpose.msra.mxu0 0.0
    %3137 = vmatprep.subr.mxu0 0.0
    %3138 = vmatpush1.xpose.msra.mxu0 0.0
    %3139 = vmatprep.subr.mxu0 0.0
    %3140 = vmatpush1.xpose.msra.mxu0 0.0
    %3141 = vmatprep.subr.mxu0 0.0
    %3142 = vmatpush1.xpose.msra.mxu0 0.0
    %3143 = vmatprep.subr.mxu0 0.0
    %3144 = vmatpush1.xpose.msra.mxu0 0.0
    %3145 = vmatprep.subr.mxu0 0.0
    %3146 = vmatpush1.xpose.msra.mxu0 0.0
    %3147 = vmatprep.subr.mxu0 0.0
    %3148 = vmatpush1.xpose.msra.mxu0 0.0
    %3149 = vmatprep.mubr.f32.mxu0 0.0
    %3150 = vmatmul.mubr.f32.gmra.mrb[0].mxu0 %v3081
    %v3151 = vpop.f32.mrb[0].mxu0
    %v3152 = vadd.f32 0.0, %v3151
    %v3153 = vpop.f32.mrb[0].mxu0
    %3154 = vdwg.mxu0
    %v3155 = vmul.f32 %v3074, 0.5
    %v3156 = vmul.f32 %v3152, 0.5
    %v3157 = vsel %vm328, %v3155, -inf
    %v3158 = vsel %vm328, %v3156, -inf
    %v3159 = vsel %vm331, %v3157, -inf
    %3160 = vmax.xlane.f32.xlu0 %v3159
    %v3161 = vpop.xlane.xlu0 %3160
    %v3162 = vsel %vm331, %v3158, -inf
    %3163 = vmax.xlane.f32.xlu0 %v3162
    %v3164 = vpop.xlane.xlu0 %3163
    %v3165 = vsub.f32 %v3157, %v3161
    %v3166 = vsub.f32 %v3158, %v3164
    %v3167 = vmul.f32 %v3165, 1.442695
    %v3168 = vpow.pop %v3167
    %v3169 = vmul.f32 %v3166, 1.442695
    %v3170 = vpow.pop %v3169
    %v3171 = vsel %vm331, %v3168, 0.0
    %3172 = vadd.xlane.f32.xlu0 %v3171
    %v3173 = vpop.xlane.xlu0 %3172
    %v3174 = vsel %vm331, %v3170, 0.0
    %3175 = vadd.xlane.f32.xlu0 %v3174
    %v3176 = vpop.xlane.xlu0 %3175
    %v3177 = vrcp.pop %v3173
    %v3178 = vmul.f32 %v3168, %v3177
    %v3179 = vrcp.pop %v3176
    %v3180 = vmul.f32 %v3170, %v3179
    %3181 = vrot.lane.b32.xlu0 %v1991, 84
    %v3182 = vpop.permute.xlu0 %3181
    %v3185 = vsel %vm331, %v3178, 0
    %3187 = vmatprep.subr.mxu0 0.0
    %3188 = vmatpush1.msra.mxu0 %v3182
    %3189 = vmatprep.subr.mxu0 0.0
    %3190 = vmatpush1.msra.mxu0 0.0
    %3191 = vmatprep.subr.mxu0 0.0
    %3192 = vmatpush1.msra.mxu0 0.0
    %3193 = vmatprep.subr.mxu0 0.0
    %3194 = vmatpush1.msra.mxu0 0.0
    %3195 = vmatprep.subr.mxu0 0.0
    %3196 = vmatpush1.msra.mxu0 0.0
    %3197 = vmatprep.subr.mxu0 0.0
    %3198 = vmatpush1.msra.mxu0 0.0
    %3199 = vmatprep.subr.mxu0 0.0
    %3200 = vmatpush1.msra.mxu0 0.0
    %3201 = vmatprep.subr.mxu0 0.0
    %3202 = vmatpush1.msra.mxu0 0.0
    %3203 = vmatprep.subr.mxu0 0.0
    %3204 = vmatpush1.msra.mxu0 0.0
    %3205 = vmatprep.subr.mxu0 0.0
    %3206 = vmatpush1.msra.mxu0 0.0
    %3207 = vmatprep.subr.mxu0 0.0
    %3208 = vmatpush1.msra.mxu0 0.0
    %3209 = vmatprep.subr.mxu0 0.0
    %3210 = vmatpush1.msra.mxu0 0.0
    %3211 = vmatprep.subr.mxu0 0.0
    %3212 = vmatpush1.msra.mxu0 0.0
    %3213 = vmatprep.subr.mxu0 0.0
    %3214 = vmatpush1.msra.mxu0 0.0
    %3215 = vmatprep.subr.mxu0 0.0
    %3216 = vmatpush1.msra.mxu0 0.0
    %3217 = vmatprep.subr.mxu0 0.0
    %3218 = vmatpush1.msra.mxu0 0.0
    %3219 = vmatprep.subr.mxu0 0.0
    %3220 = vmatpush1.msra.mxu0 0.0
    %3221 = vmatprep.subr.mxu0 0.0
    %3222 = vmatpush1.msra.mxu0 0.0
    %3223 = vmatprep.subr.mxu0 0.0
    %3224 = vmatpush1.msra.mxu0 0.0
    %3225 = vmatprep.subr.mxu0 0.0
    %3226 = vmatpush1.msra.mxu0 0.0
    %3227 = vmatprep.subr.mxu0 0.0
    %3228 = vmatpush1.msra.mxu0 0.0
    %3229 = vmatprep.subr.mxu0 0.0
    %3230 = vmatpush1.msra.mxu0 0.0
    %3231 = vmatprep.subr.mxu0 0.0
    %3232 = vmatpush1.msra.mxu0 0.0
    %3233 = vmatprep.subr.mxu0 0.0
    %3234 = vmatpush1.msra.mxu0 0.0
    %3235 = vmatprep.subr.mxu0 0.0
    %3236 = vmatpush1.msra.mxu0 0.0
    %3237 = vmatprep.subr.mxu0 0.0
    %3238 = vmatpush1.msra.mxu0 0.0
    %3239 = vmatprep.subr.mxu0 0.0
    %3240 = vmatpush1.msra.mxu0 0.0
    %3241 = vmatprep.subr.mxu0 0.0
    %3242 = vmatpush1.msra.mxu0 0.0
    %3243 = vmatprep.subr.mxu0 0.0
    %3244 = vmatpush1.msra.mxu0 0.0
    %3245 = vmatprep.subr.mxu0 0.0
    %3246 = vmatpush1.msra.mxu0 0.0
    %3247 = vmatprep.subr.mxu0 0.0
    %3248 = vmatpush1.msra.mxu0 0.0
    %3249 = vmatprep.subr.mxu0 0.0
    %3250 = vmatpush1.msra.mxu0 0.0
    %3251 = vmatprep.mubr.f32.mxu0 0.0
    %3252 = vmatmul.mubr.f32.gmra.mrb[0].mxu0 %v3185
    %v3253 = vpop.f32.mrb[0].mxu0
    %v3254 = vadd.f32 0.0, %v3253
    %v3255 = vpop.f32.mrb[0].mxu0
    %3256 = vdwg.mxu0
    %3257 = vrot.lane.b32.xlu0 %v1996, 84
    %v3258 = vpop.permute.xlu0 %3257
    %v3261 = vsel %vm331, %v3180, 0
    %3263 = vmatprep.subr.mxu0 0.0
    %3264 = vmatpush1.msra.mxu0 %v3258
    %3265 = vmatprep.subr.mxu0 0.0
    %3266 = vmatpush1.msra.mxu0 0.0
    %3267 = vmatprep.subr.mxu0 0.0
    %3268 = vmatpush1.msra.mxu0 0.0
    %3269 = vmatprep.subr.mxu0 0.0
    %3270 = vmatpush1.msra.mxu0 0.0
    %3271 = vmatprep.subr.mxu0 0.0
    %3272 = vmatpush1.msra.mxu0 0.0
    %3273 = vmatprep.subr.mxu0 0.0
    %3274 = vmatpush1.msra.mxu0 0.0
    %3275 = vmatprep.subr.mxu0 0.0
    %3276 = vmatpush1.msra.mxu0 0.0
    %3277 = vmatprep.subr.mxu0 0.0
    %3278 = vmatpush1.msra.mxu0 0.0
    %3279 = vmatprep.subr.mxu0 0.0
    %3280 = vmatpush1.msra.mxu0 0.0
    %3281 = vmatprep.subr.mxu0 0.0
    %3282 = vmatpush1.msra.mxu0 0.0
    %3283 = vmatprep.subr.mxu0 0.0
    %3284 = vmatpush1.msra.mxu0 0.0
    %3285 = vmatprep.subr.mxu0 0.0
    %3286 = vmatpush1.msra.mxu0 0.0
    %3287 = vmatprep.subr.mxu0 0.0
    %3288 = vmatpush1.msra.mxu0 0.0
    %3289 = vmatprep.subr.mxu0 0.0
    %3290 = vmatpush1.msra.mxu0 0.0
    %3291 = vmatprep.subr.mxu0 0.0
    %3292 = vmatpush1.msra.mxu0 0.0
    %3293 = vmatprep.subr.mxu0 0.0
    %3294 = vmatpush1.msra.mxu0 0.0
    %3295 = vmatprep.subr.mxu0 0.0
    %3296 = vmatpush1.msra.mxu0 0.0
    %3297 = vmatprep.subr.mxu0 0.0
    %3298 = vmatpush1.msra.mxu0 0.0
    %3299 = vmatprep.subr.mxu0 0.0
    %3300 = vmatpush1.msra.mxu0 0.0
    %3301 = vmatprep.subr.mxu0 0.0
    %3302 = vmatpush1.msra.mxu0 0.0
    %3303 = vmatprep.subr.mxu0 0.0
    %3304 = vmatpush1.msra.mxu0 0.0
    %3305 = vmatprep.subr.mxu0 0.0
    %3306 = vmatpush1.msra.mxu0 0.0
    %3307 = vmatprep.subr.mxu0 0.0
    %3308 = vmatpush1.msra.mxu0 0.0
    %3309 = vmatprep.subr.mxu0 0.0
    %3310 = vmatpush1.msra.mxu0 0.0
    %3311 = vmatprep.subr.mxu0 0.0
    %3312 = vmatpush1.msra.mxu0 0.0
    %3313 = vmatprep.subr.mxu0 0.0
    %3314 = vmatpush1.msra.mxu0 0.0
    %3315 = vmatprep.subr.mxu0 0.0
    %3316 = vmatpush1.msra.mxu0 0.0
    %3317 = vmatprep.subr.mxu0 0.0
    %3318 = vmatpush1.msra.mxu0 0.0
    %3319 = vmatprep.subr.mxu0 0.0
    %3320 = vmatpush1.msra.mxu0 0.0
    %3321 = vmatprep.subr.mxu0 0.0
    %3322 = vmatpush1.msra.mxu0 0.0
    %3323 = vmatprep.subr.mxu0 0.0
    %3324 = vmatpush1.msra.mxu0 0.0
    %3325 = vmatprep.subr.mxu0 0.0
    %3326 = vmatpush1.msra.mxu0 0.0
    %3327 = vmatprep.mubr.f32.mxu0 0.0
    %3328 = vmatmul.mubr.f32.gmra.mrb[0].mxu0 %v3261
    %v3329 = vpop.f32.mrb[0].mxu0
    %v3330 = vadd.f32 0.0, %v3329
    %v3331 = vpop.f32.mrb[0].mxu0
    %3332 = vdwg.mxu0
    %3335 = vrot.lane.b32.xlu0 %v2586, 4
    %v3336 = vpop.permute.xlu0 %3335
    %3337 = vrot.lane.b32.xlu0 %v2662, 4
    %v3338 = vpop.permute.xlu0 %3337
    %3343 = vrot.lane.b32.xlu0 %v2920, 8
    %v3344 = vpop.permute.xlu0 %3343
    %3345 = vrot.lane.b32.xlu0 %v2996, 8
    %v3346 = vpop.permute.xlu0 %3345
    %3351 = vrot.lane.b32.xlu0 %v3254, 12
    %v3352 = vpop.permute.xlu0 %3351
    %3353 = vrot.lane.b32.xlu0 %v3330, 12
    %v3354 = vpop.permute.xlu0 %3353
    %v3357 = vsel %vm173, %v2252, %v3336
    %v3358 = vsel %vm173, %v2328, %v3338
    %v3359 = vsel %vm331, %v3357, %v3344
    %v3360 = vsel %vm331, %v3358, %v3346
    %v3361 = vsel %vm1536, %v3359, %v3352
    %v3362 = vsel %vm1536, %v3360, %v3354
    %s3363 = scalar_lea.vmem %s3, 16
    %v3364 = vld [vmem:[%s3363] sm:$0xff]
    %v3365 = vld [vmem:[%s3363 + $0x8] sm:$0xff]
    %v3367 = vsel %vm43, %v3361, 0
    %v3370 = vsel %vm43, %v3362, 0
    %3372 = vmatprep.subr.mxu0 0.0
    %3373 = vmatpush1.msra.mxu0 %v3364
    %3374 = vmatprep.subr.mxu0 0.0
    %3375 = vmatpush1.msra.mxu0 %v3365
    %3376 = vmatprep.subr.mxu0 0.0
    %3377 = vmatpush1.msra.mxu0 0.0
    %3378 = vmatprep.subr.mxu0 0.0
    %3379 = vmatpush1.msra.mxu0 0.0
    %3380 = vmatprep.subr.mxu0 0.0
    %3381 = vmatpush1.msra.mxu0 0.0
    %3382 = vmatprep.subr.mxu0 0.0
    %3383 = vmatpush1.msra.mxu0 0.0
    %3384 = vmatprep.subr.mxu0 0.0
    %3385 = vmatpush1.msra.mxu0 0.0
    %3386 = vmatprep.subr.mxu0 0.0
    %3387 = vmatpush1.msra.mxu0 0.0
    %3388 = vmatprep.subr.mxu0 0.0
    %3389 = vmatpush1.msra.mxu0 0.0
    %3390 = vmatprep.subr.mxu0 0.0
    %3391 = vmatpush1.msra.mxu0 0.0
    %3392 = vmatprep.subr.mxu0 0.0
    %3393 = vmatpush1.msra.mxu0 0.0
    %3394 = vmatprep.subr.mxu0 0.0
    %3395 = vmatpush1.msra.mxu0 0.0
    %3396 = vmatprep.subr.mxu0 0.0
    %3397 = vmatpush1.msra.mxu0 0.0
    %3398 = vmatprep.subr.mxu0 0.0
    %3399 = vmatpush1.msra.mxu0 0.0
    %3400 = vmatprep.subr.mxu0 0.0
    %3401 = vmatpush1.msra.mxu0 0.0
    %3402 = vmatprep.subr.mxu0 0.0
    %3403 = vmatpush1.msra.mxu0 0.0
    %3404 = vmatprep.subr.mxu0 0.0
    %3405 = vmatpush1.msra.mxu0 0.0
    %3406 = vmatprep.subr.mxu0 0.0
    %3407 = vmatpush1.msra.mxu0 0.0
    %3408 = vmatprep.subr.mxu0 0.0
    %3409 = vmatpush1.msra.mxu0 0.0
    %3410 = vmatprep.subr.mxu0 0.0
    %3411 = vmatpush1.msra.mxu0 0.0
    %3412 = vmatprep.subr.mxu0 0.0
    %3413 = vmatpush1.msra.mxu0 0.0
    %3414 = vmatprep.subr.mxu0 0.0
    %3415 = vmatpush1.msra.mxu0 0.0
    %3416 = vmatprep.subr.mxu0 0.0
    %3417 = vmatpush1.msra.mxu0 0.0
    %3418 = vmatprep.subr.mxu0 0.0
    %3419 = vmatpush1.msra.mxu0 0.0
    %3420 = vmatprep.subr.mxu0 0.0
    %3421 = vmatpush1.msra.mxu0 0.0
    %3422 = vmatprep.subr.mxu0 0.0
    %3423 = vmatpush1.msra.mxu0 0.0
    %3424 = vmatprep.subr.mxu0 0.0
    %3425 = vmatpush1.msra.mxu0 0.0
    %3426 = vmatprep.subr.mxu0 0.0
    %3427 = vmatpush1.msra.mxu0 0.0
    %3428 = vmatprep.subr.mxu0 0.0
    %3429 = vmatpush1.msra.mxu0 0.0
    %3430 = vmatprep.subr.mxu0 0.0
    %3431 = vmatpush1.msra.mxu0 0.0
    %3432 = vmatprep.subr.mxu0 0.0
    %3433 = vmatpush1.msra.mxu0 0.0
    %3434 = vmatprep.subr.mxu0 0.0
    %3435 = vmatpush1.msra.mxu0 0.0
    %3436 = vmatprep.mubr.f32.mxu0 0.0
    %3437 = vmatmul.mubr.f32.gmra.mrb[0].mxu0 %v3367
    %v3438 = vpop.f32.mrb[0].mxu0
    %v3439 = vadd.f32 0.0, %v3438
    %v3440 = vpop.f32.mrb[0].mxu0
    %3441 = vmatprep.mubr.f32.mxu0 0.0
    %3442 = vmatmul.mubr.f32.gmra.mrb[0].mxu0 %v3370
    %v3443 = vpop.f32.mrb[0].mxu0
    %v3444 = vadd.f32 0.0, %v3443
    %v3445 = vpop.f32.mrb[0].mxu0
    %3446 = vdwg.mxu0
    %v3447 = vadd.f32 %v1867, %v3439
    %v3448 = vadd.f32 %v1868, %v3444
    %s3449 = scalar_lea.vmem %s1, 6
    %v3450 = vld [vmem:[%s3449] sm:$0x1]
    %s3451 = scalar_lea.vmem %s1, 7
    %v3452 = vld [vmem:[%s3451] sm:$0x1]
    %v3453 = vsel %vm43, %v3447, 0.0
    %3454 = vadd.xlane.f32.xlu0 %v3453
    %v3455 = vpop.xlane.xlu0 %3454
    %v3456 = vsel %vm43, %v3448, 0.0
    %3457 = vadd.xlane.f32.xlu0 %v3456
    %v3458 = vpop.xlane.xlu0 %3457
    %v3459 = vmul.f32 %v3455, %v50
    %v3460 = vmul.f32 %v3458, %v50
    %v3461 = vsub.f32 %v3447, %v3459
    %v3462 = vsub.f32 %v3448, %v3460
    %v3463 = vmul.f32 %v3461, %v3461
    %v3464 = vmul.f32 %v3462, %v3462
    %v3465 = vsel %vm43, %v3463, 0.0
    %3466 = vadd.xlane.f32.xlu0 %v3465
    %v3467 = vpop.xlane.xlu0 %3466
    %v3468 = vsel %vm43, %v3464, 0.0
    %3469 = vadd.xlane.f32.xlu0 %v3468
    %v3470 = vpop.xlane.xlu0 %3469
    %v3471 = vmul.f32 %v3467, %v50
    %v3472 = vmul.f32 %v3470, %v50
    %v3473 = vadd.f32 %v3471, 1e-05
    %v3474 = vadd.f32 %v3472, 1e-05
    %v3475 = vrsqrt.pop %v3473
    %v3476 = vrsqrt.pop %v3474
    %v3477 = vmul.f32 %v3461, %v3475
    %v3478 = vmul.f32 %v3462, %v3476
    %v3480 = vlaneseq
    %v3481 = vshrl.u32 %v3480, 7
    %v3482 = vsub.s32 0, %v3481
    %v3483 = vrot.slane %v3450, %v3482
    %v3485 = vmul.f32 %v3477, %v3483
    %v3486 = vmul.f32 %v3478, %v3483
    %v3488 = vlaneseq
    %v3489 = vshrl.u32 %v3488, 7
    %v3490 = vsub.s32 0, %v3489
    %v3491 = vrot.slane %v3452, %v3490
    %v3493 = vadd.f32 %v3485, %v3491
    %v3494 = vadd.f32 %v3486, %v3491
    %s3495 = scalar_lea.vmem %s4, 16
    %v3496 = vld [vmem:[%s3495] sm:$0xff]
    %v3497 = vld [vmem:[%s3495 + $0x8] sm:$0xff]
    %s3498 = scalar_lea.vmem %s5, 1
    %v3499 = vld [vmem:[%s3498] sm:$0x1]
    %v3501 = vlaneseq
    %v3502 = vshrl.u32 %v3501, 7
    %v3503 = vsub.s32 0, %v3502
    %v3504 = vrot.slane %v3499, %v3503
    %v3507 = vsel %vm43, %v3493, 0
    %v3510 = vsel %vm43, %v3494, 0
    %3512 = vmatprep.subr.mxu0 0.0
    %3513 = vmatpush1.msra.mxu0 %v3496
    %3514 = vmatprep.subr.mxu0 0.0
    %3515 = vmatpush1.msra.mxu0 %v3497
    %3516 = vmatprep.subr.mxu0 0.0
    %3517 = vmatpush1.msra.mxu0 0.0
    %3518 = vmatprep.subr.mxu0 0.0
    %3519 = vmatpush1.msra.mxu0 0.0
    %3520 = vmatprep.subr.mxu0 0.0
    %3521 = vmatpush1.msra.mxu0 0.0
    %3522 = vmatprep.subr.mxu0 0.0
    %3523 = vmatpush1.msra.mxu0 0.0
    %3524 = vmatprep.subr.mxu0 0.0
    %3525 = vmatpush1.msra.mxu0 0.0
    %3526 = vmatprep.subr.mxu0 0.0
    %3527 = vmatpush1.msra.mxu0 0.0
    %3528 = vmatprep.subr.mxu0 0.0
    %3529 = vmatpush1.msra.mxu0 0.0
    %3530 = vmatprep.subr.mxu0 0.0
    %3531 = vmatpush1.msra.mxu0 0.0
    %3532 = vmatprep.subr.mxu0 0.0
    %3533 = vmatpush1.msra.mxu0 0.0
    %3534 = vmatprep.subr.mxu0 0.0
    %3535 = vmatpush1.msra.mxu0 0.0
    %3536 = vmatprep.subr.mxu0 0.0
    %3537 = vmatpush1.msra.mxu0 0.0
    %3538 = vmatprep.subr.mxu0 0.0
    %3539 = vmatpush1.msra.mxu0 0.0
    %3540 = vmatprep.subr.mxu0 0.0
    %3541 = vmatpush1.msra.mxu0 0.0
    %3542 = vmatprep.subr.mxu0 0.0
    %3543 = vmatpush1.msra.mxu0 0.0
    %3544 = vmatprep.subr.mxu0 0.0
    %3545 = vmatpush1.msra.mxu0 0.0
    %3546 = vmatprep.subr.mxu0 0.0
    %3547 = vmatpush1.msra.mxu0 0.0
    %3548 = vmatprep.subr.mxu0 0.0
    %3549 = vmatpush1.msra.mxu0 0.0
    %3550 = vmatprep.subr.mxu0 0.0
    %3551 = vmatpush1.msra.mxu0 0.0
    %3552 = vmatprep.subr.mxu0 0.0
    %3553 = vmatpush1.msra.mxu0 0.0
    %3554 = vmatprep.subr.mxu0 0.0
    %3555 = vmatpush1.msra.mxu0 0.0
    %3556 = vmatprep.subr.mxu0 0.0
    %3557 = vmatpush1.msra.mxu0 0.0
    %3558 = vmatprep.subr.mxu0 0.0
    %3559 = vmatpush1.msra.mxu0 0.0
    %3560 = vmatprep.subr.mxu0 0.0
    %3561 = vmatpush1.msra.mxu0 0.0
    %3562 = vmatprep.subr.mxu0 0.0
    %3563 = vmatpush1.msra.mxu0 0.0
    %3564 = vmatprep.subr.mxu0 0.0
    %3565 = vmatpush1.msra.mxu0 0.0
    %3566 = vmatprep.subr.mxu0 0.0
    %3567 = vmatpush1.msra.mxu0 0.0
    %3568 = vmatprep.subr.mxu0 0.0
    %3569 = vmatpush1.msra.mxu0 0.0
    %3570 = vmatprep.subr.mxu0 0.0
    %3571 = vmatpush1.msra.mxu0 0.0
    %3572 = vmatprep.subr.mxu0 0.0
    %3573 = vmatpush1.msra.mxu0 0.0
    %3574 = vmatprep.subr.mxu0 0.0
    %3575 = vmatpush1.msra.mxu0 0.0
    %3576 = vmatprep.mubr.f32.mxu0 0.0
    %3577 = vmatmul.mubr.f32.gmra.mrb[0].mxu0 %v3507
    %v3578 = vpop.f32.mrb[0].mxu0
    %v3579 = vadd.f32 %v3504, %v3578
    %v3580 = vpop.f32.mrb[0].mxu0
    %3581 = vmatprep.mubr.f32.mxu0 0.0
    %3582 = vmatmul.mubr.f32.gmra.mrb[0].mxu0 %v3510
    %v3583 = vpop.f32.mrb[0].mxu0
    %v3584 = vadd.f32 %v3504, %v3583
    %v3585 = vpop.f32.mrb[0].mxu0
    %3586 = vdwg.mxu0
    %v3587 = vmul.f32 %v3579, 0.5
    %v3588 = vmul.f32 %v3584, 0.5
    %v3589 = vmul.f32 %v3579, 0.70710677
    %v3590 = vmul.f32 %v3584, 0.70710677
    %v3591 = verf.f32.pop %v3589
    %v3592 = verf.f32.pop %v3590
    %v3593 = vadd.f32 %v3591, 1.0
    %v3594 = vadd.f32 %v3592, 1.0
    %v3595 = vmul.f32 %v3587, %v3593
    %v3596 = vmul.f32 %v3588, %v3594
    %s3597 = scalar_lea.vmem %s6, 64
    %v3598 = vld [vmem:[%s3597] sm:$0xff]
    %v3599 = vld [vmem:[%s3597 + $0x8] sm:$0xff]
    %v3600 = vld [vmem:[%s3597 + $0x10] sm:$0xff]
    %v3601 = vld [vmem:[%s3597 + $0x18] sm:$0xff]
    %v3602 = vld [vmem:[%s3597 + $0x20] sm:$0xff]
    %v3603 = vld [vmem:[%s3597 + $0x28] sm:$0xff]
    %v3604 = vld [vmem:[%s3597 + $0x30] sm:$0xff]
    %v3605 = vld [vmem:[%s3597 + $0x38] sm:$0xff]
    %s3606 = scalar_lea.vmem %s7, 1
    %v3607 = vld [vmem:[%s3606] sm:$0x1]
    %v3609 = vlaneseq
    %v3610 = vshrl.u32 %v3609, 7
    %v3611 = vsub.s32 0, %v3610
    %v3612 = vrot.slane %v3607, %v3611
    %v3615 = vsel %vm1785, %v3595, 0
    %v3618 = vsel %vm1785, %v3596, 0
    %3620 = vmatprep.subr.mxu0 0.0
    %3621 = vmatpush1.msra.mxu0 %v3598
    %3622 = vmatprep.subr.mxu0 0.0
    %3623 = vmatpush1.msra.mxu0 %v3599
    %3624 = vmatprep.subr.mxu0 0.0
    %3625 = vmatpush1.msra.mxu0 %v3600
    %3626 = vmatprep.subr.mxu0 0.0
    %3627 = vmatpush1.msra.mxu0 %v3601
    %3628 = vmatprep.subr.mxu0 0.0
    %3629 = vmatpush1.msra.mxu0 %v3602
    %3630 = vmatprep.subr.mxu0 0.0
    %3631 = vmatpush1.msra.mxu0 %v3603
    %3632 = vmatprep.subr.mxu0 0.0
    %3633 = vmatpush1.msra.mxu0 %v3604
    %3634 = vmatprep.subr.mxu0 0.0
    %3635 = vmatpush1.msra.mxu0 %v3605
    %3636 = vmatprep.subr.mxu0 0.0
    %3637 = vmatpush1.msra.mxu0 0.0
    %3638 = vmatprep.subr.mxu0 0.0
    %3639 = vmatpush1.msra.mxu0 0.0
    %3640 = vmatprep.subr.mxu0 0.0
    %3641 = vmatpush1.msra.mxu0 0.0
    %3642 = vmatprep.subr.mxu0 0.0
    %3643 = vmatpush1.msra.mxu0 0.0
    %3644 = vmatprep.subr.mxu0 0.0
    %3645 = vmatpush1.msra.mxu0 0.0
    %3646 = vmatprep.subr.mxu0 0.0
    %3647 = vmatpush1.msra.mxu0 0.0
    %3648 = vmatprep.subr.mxu0 0.0
    %3649 = vmatpush1.msra.mxu0 0.0
    %3650 = vmatprep.subr.mxu0 0.0
    %3651 = vmatpush1.msra.mxu0 0.0
    %3652 = vmatprep.subr.mxu0 0.0
    %3653 = vmatpush1.msra.mxu0 0.0
    %3654 = vmatprep.subr.mxu0 0.0
    %3655 = vmatpush1.msra.mxu0 0.0
    %3656 = vmatprep.subr.mxu0 0.0
    %3657 = vmatpush1.msra.mxu0 0.0
    %3658 = vmatprep.subr.mxu0 0.0
    %3659 = vmatpush1.msra.mxu0 0.0
    %3660 = vmatprep.subr.mxu0 0.0
    %3661 = vmatpush1.msra.mxu0 0.0
    %3662 = vmatprep.subr.mxu0 0.0
    %3663 = vmatpush1.msra.mxu0 0.0
    %3664 = vmatprep.subr.mxu0 0.0
    %3665 = vmatpush1.msra.mxu0 0.0
    %3666 = vmatprep.subr.mxu0 0.0
    %3667 = vmatpush1.msra.mxu0 0.0
    %3668 = vmatprep.subr.mxu0 0.0
    %3669 = vmatpush1.msra.mxu0 0.0
    %3670 = vmatprep.subr.mxu0 0.0
    %3671 = vmatpush1.msra.mxu0 0.0
    %3672 = vmatprep.subr.mxu0 0.0
    %3673 = vmatpush1.msra.mxu0 0.0
    %3674 = vmatprep.subr.mxu0 0.0
    %3675 = vmatpush1.msra.mxu0 0.0
    %3676 = vmatprep.subr.mxu0 0.0
    %3677 = vmatpush1.msra.mxu0 0.0
    %3678 = vmatprep.subr.mxu0 0.0
    %3679 = vmatpush1.msra.mxu0 0.0
    %3680 = vmatprep.subr.mxu0 0.0
    %3681 = vmatpush1.msra.mxu0 0.0
    %3682 = vmatprep.subr.mxu0 0.0
    %3683 = vmatpush1.msra.mxu0 0.0
    %3684 = vmatprep.mubr.f32.mxu0 0.0
    %3685 = vmatmul.mubr.f32.gmra.mrb[0].mxu0 %v3615
    %v3686 = vpop.f32.mrb[0].mxu0
    %v3687 = vadd.f32 %v3612, %v3686
    %v3688 = vpop.f32.mrb[0].mxu0
    %3689 = vmatprep.mubr.f32.mxu0 0.0
    %3690 = vmatmul.mubr.f32.gmra.mrb[0].mxu0 %v3618
    %v3691 = vpop.f32.mrb[0].mxu0
    %v3692 = vadd.f32 %v3612, %v3691
    %v3693 = vpop.f32.mrb[0].mxu0
    %3694 = vdwg.mxu0
    %v3695 = vadd.f32 %v3447, %v3687
    %v3696 = vadd.f32 %v3448, %v3692
    %s3697 = scalar_lea.vmem %s1, 8
    %v3698 = vld [vmem:[%s3697] sm:$0x1]
    %s3699 = scalar_lea.vmem %s1, 9
    %v3700 = vld [vmem:[%s3699] sm:$0x1]
    %v3701 = vsel %vm43, %v3695, 0.0
    %3702 = vadd.xlane.f32.xlu0 %v3701
    %v3703 = vpop.xlane.xlu0 %3702
    %v3704 = vsel %vm43, %v3696, 0.0
    %3705 = vadd.xlane.f32.xlu0 %v3704
    %v3706 = vpop.xlane.xlu0 %3705
    %v3707 = vmul.f32 %v3703, %v50
    %v3708 = vmul.f32 %v3706, %v50
    %v3709 = vsub.f32 %v3695, %v3707
    %v3710 = vsub.f32 %v3696, %v3708
    %v3711 = vmul.f32 %v3709, %v3709
    %v3712 = vmul.f32 %v3710, %v3710
    %v3713 = vsel %vm43, %v3711, 0.0
    %3714 = vadd.xlane.f32.xlu0 %v3713
    %v3715 = vpop.xlane.xlu0 %3714
    %v3716 = vsel %vm43, %v3712, 0.0
    %3717 = vadd.xlane.f32.xlu0 %v3716
    %v3718 = vpop.xlane.xlu0 %3717
    %v3719 = vmul.f32 %v3715, %v50
    %v3720 = vmul.f32 %v3718, %v50
    %v3721 = vadd.f32 %v3719, 1e-05
    %v3722 = vadd.f32 %v3720, 1e-05
    %v3723 = vrsqrt.pop %v3721
    %v3724 = vrsqrt.pop %v3722
    %v3725 = vmul.f32 %v3709, %v3723
    %v3726 = vmul.f32 %v3710, %v3724
    %v3728 = vlaneseq
    %v3729 = vshrl.u32 %v3728, 7
    %v3730 = vsub.s32 0, %v3729
    %v3731 = vrot.slane %v3698, %v3730
    %v3733 = vmul.f32 %v3725, %v3731
    %v3734 = vmul.f32 %v3726, %v3731
    %v3736 = vlaneseq
    %v3737 = vshrl.u32 %v3736, 7
    %v3738 = vsub.s32 0, %v3737
    %v3739 = vrot.slane %v3700, %v3738
    %v3741 = vadd.f32 %v3733, %v3739
    %v3742 = vadd.f32 %v3734, %v3739
    %v3743 = vld [vmem:[%s8] sm:$0xff]
    %v3744 = vld [vmem:[%s8 + $0x8] sm:$0xff]
    %v3746 = vsel %vm43, %v3741, 0
    %v3749 = vsel %vm43, %v3742, 0
    %3751 = vmatprep.subr.mxu0 0.0
    %3752 = vmatpush1.msra.mxu0 %v3743
    %3753 = vmatprep.subr.mxu0 0.0
    %3754 = vmatpush1.msra.mxu0 %v3744
    %3755 = vmatprep.subr.mxu0 0.0
    %3756 = vmatpush1.msra.mxu0 0.0
    %3757 = vmatprep.subr.mxu0 0.0
    %3758 = vmatpush1.msra.mxu0 0.0
    %3759 = vmatprep.subr.mxu0 0.0
    %3760 = vmatpush1.msra.mxu0 0.0
    %3761 = vmatprep.subr.mxu0 0.0
    %3762 = vmatpush1.msra.mxu0 0.0
    %3763 = vmatprep.subr.mxu0 0.0
    %3764 = vmatpush1.msra.mxu0 0.0
    %3765 = vmatprep.subr.mxu0 0.0
    %3766 = vmatpush1.msra.mxu0 0.0
    %3767 = vmatprep.subr.mxu0 0.0
    %3768 = vmatpush1.msra.mxu0 0.0
    %3769 = vmatprep.subr.mxu0 0.0
    %3770 = vmatpush1.msra.mxu0 0.0
    %3771 = vmatprep.subr.mxu0 0.0
    %3772 = vmatpush1.msra.mxu0 0.0
    %3773 = vmatprep.subr.mxu0 0.0
    %3774 = vmatpush1.msra.mxu0 0.0
    %3775 = vmatprep.subr.mxu0 0.0
    %3776 = vmatpush1.msra.mxu0 0.0
    %3777 = vmatprep.subr.mxu0 0.0
    %3778 = vmatpush1.msra.mxu0 0.0
    %3779 = vmatprep.subr.mxu0 0.0
    %3780 = vmatpush1.msra.mxu0 0.0
    %3781 = vmatprep.subr.mxu0 0.0
    %3782 = vmatpush1.msra.mxu0 0.0
    %3783 = vmatprep.subr.mxu0 0.0
    %3784 = vmatpush1.msra.mxu0 0.0
    %3785 = vmatprep.subr.mxu0 0.0
    %3786 = vmatpush1.msra.mxu0 0.0
    %3787 = vmatprep.subr.mxu0 0.0
    %3788 = vmatpush1.msra.mxu0 0.0
    %3789 = vmatprep.subr.mxu0 0.0
    %3790 = vmatpush1.msra.mxu0 0.0
    %3791 = vmatprep.subr.mxu0 0.0
    %3792 = vmatpush1.msra.mxu0 0.0
    %3793 = vmatprep.subr.mxu0 0.0
    %3794 = vmatpush1.msra.mxu0 0.0
    %3795 = vmatprep.subr.mxu0 0.0
    %3796 = vmatpush1.msra.mxu0 0.0
    %3797 = vmatprep.subr.mxu0 0.0
    %3798 = vmatpush1.msra.mxu0 0.0
    %3799 = vmatprep.subr.mxu0 0.0
    %3800 = vmatpush1.msra.mxu0 0.0
    %3801 = vmatprep.subr.mxu0 0.0
    %3802 = vmatpush1.msra.mxu0 0.0
    %3803 = vmatprep.subr.mxu0 0.0
    %3804 = vmatpush1.msra.mxu0 0.0
    %3805 = vmatprep.subr.mxu0 0.0
    %3806 = vmatpush1.msra.mxu0 0.0
    %3807 = vmatprep.subr.mxu0 0.0
    %3808 = vmatpush1.msra.mxu0 0.0
    %3809 = vmatprep.subr.mxu0 0.0
    %3810 = vmatpush1.msra.mxu0 0.0
    %3811 = vmatprep.subr.mxu0 0.0
    %3812 = vmatpush1.msra.mxu0 0.0
    %3813 = vmatprep.subr.mxu0 0.0
    %3814 = vmatpush1.msra.mxu0 0.0
    %3815 = vmatprep.mubr.f32.mxu0 0.0
    %3816 = vmatmul.mubr.f32.gmra.mrb[0].mxu0 %v3746
    %v3817 = vpop.f32.mrb[0].mxu0
    %v3818 = vadd.f32 0.0, %v3817
    %v3819 = vpop.f32.mrb[0].mxu0
    %3820 = vmatprep.mubr.f32.mxu0 0.0
    %3821 = vmatmul.mubr.f32.gmra.mrb[0].mxu0 %v3749
    %v3822 = vpop.f32.mrb[0].mxu0
    %v3823 = vadd.f32 0.0, %v3822
    %v3824 = vpop.f32.mrb[0].mxu0
    %3825 = vdwg.mxu0
    %3826 = vst [vmem:[#allocation2] sm:$0xff] %v3818
    %3827 = vst [vmem:[#allocation2 + $0x8] sm:$0xff] %v3823
    // Predicated region
    $region38: #{transformer_forward.1} parent=1 // pred_check
      _
    $region39: #{transformer_forward.1} parent=1 // pred_check_branch
      %3829 = sbr.rel (0) target = $region41
    $region40: #{transformer_forward.1} parent=1 // pred_region
      %s3831 = ssub.s32 256, 256
      %3832 = vsyncadd [#allocation3], %s3831
      %s3833 = sshll.u32 [#allocation2], 4
      %s3834 = int_to_ptr.vmem [resolvable:$true] %s3833
      %3839 = dma.vmem_to_hbm [thread:$0]  %s3834, 256, %s9, [#allocation3], 128, 128, 8
    $region41: #{transformer_forward.1} parent=1 // pred_fallthru
      _
    // Predicated region
    $region42: #{transformer_forward.1} parent=1 // pred_check
      _
    $region43: #{transformer_forward.1} parent=1 // pred_check_branch
      %3841 = sbr.rel (0) target = $region45
    $region44: #{transformer_forward.1} parent=1 // pred_region
      %3842 = dma.done [#allocation3], 256
    $region45: #{transformer_forward.1} parent=1 // pred_fallthru
      _
    %3843 = vsyncpa [#allocation3], 1

</llo_original>
